<compile_context>
chip_gen: v7x
topology: tpu7x:2x2x1
jax: 0.10.0
libtpu: 0.0.40
codegen_flags: <defaults>
</compile_context>

<pallas_src>
import functools
import math

import jax
import jax.numpy as jnp
from jax.experimental import pallas as pl
from jax.experimental.pallas import tpu as pltpu

LN_EPS = 1e-5

# Tile preferences (demo shapes are tiny, so full-extent blocks are used; at
# real ViT sizes these kick in).
MM_TM, MM_TN, MM_TK = 256, 256, 512   # generic tiled matmul
ROW_TM = 128                          # row tile for fused per-token kernels
LN_TM = 512                           # row tile for standalone layernorm
VMEM_LIMIT = 64 * 1024 * 1024


# ----------------------------------------------------------------------------
# In-kernel math helpers (all f32)
# ----------------------------------------------------------------------------
def _erf(x):
    # Abramowitz & Stegun 7.1.26 approximation (max abs error ~1.5e-7).
    a1, a2, a3, a4, a5 = (0.254829592, -0.284496736, 1.421413741,
                          -1.453152027, 1.061405429)
    p = 0.3275911
    sgn = jnp.where(x >= 0.0, 1.0, -1.0)
    ax = jnp.abs(x)
    t = 1.0 / (1.0 + p * ax)
    poly = ((((a5 * t + a4) * t + a3) * t + a2) * t + a1) * t
    return sgn * (1.0 - poly * jnp.exp(-ax * ax))


def _gelu(x):
    # exact (erf) GELU, matching torch.nn.GELU() default
    return 0.5 * x * (1.0 + _erf(x * (1.0 / math.sqrt(2.0))))


def _layernorm_f32(x, g, b):
    mu = jnp.mean(x, axis=-1, keepdims=True)
    xc = x - mu
    var = jnp.mean(xc * xc, axis=-1, keepdims=True)
    return xc * jax.lax.rsqrt(var + LN_EPS) * g + b


# ----------------------------------------------------------------------------
# Pallas kernels
# ----------------------------------------------------------------------------
def _matmul_kernel(x_ref, w_ref, b_ref, o_ref, acc_ref, *, activation):
    """Tiled x @ W + b (+ optional GELU); K-axis accumulated in f32 scratch."""
    @pl.when(pl.program_id(2) == 0)
    def _():
        acc_ref[...] = jnp.zeros_like(acc_ref)

    acc_ref[...] += jnp.dot(x_ref[...].astype(jnp.bfloat16), w_ref[...],
                            preferred_element_type=jnp.float32)

    @pl.when(pl.program_id(2) == pl.num_programs(2) - 1)
    def _():
        out = acc_ref[...] + b_ref[...]
        if activation == "gelu":
            out = _gelu(out)
        o_ref[...] = out.astype(o_ref.dtype)


def _ln_matmul_kernel(x_ref, g_ref, b_ref, w_ref, wb_ref, o_ref, *, activation):
    """Fused LayerNorm -> matmul (+bias, optional GELU)."""
    h = _layernorm_f32(x_ref[...].astype(jnp.float32), g_ref[...], b_ref[...])
    acc = jnp.dot(h.astype(jnp.bfloat16), w_ref[...],
                  preferred_element_type=jnp.float32)
    acc = acc + wb_ref[...]
    if activation == "gelu":
        acc = _gelu(acc)
    o_ref[...] = acc.astype(o_ref.dtype)


def _matmul_residual_kernel(x_ref, w_ref, b_ref, r_ref, o_ref):
    """Fused out-projection + residual add: r + x @ W + b."""
    acc = jnp.dot(x_ref[...].astype(jnp.bfloat16), w_ref[...],
                  preferred_element_type=jnp.float32)
    o_ref[...] = (acc + b_ref[...] + r_ref[...].astype(jnp.float32)
                  ).astype(o_ref.dtype)


def _mlp_block_kernel(x_ref, g_ref, b_ref, fcw_ref, fcb_ref, pw_ref, pb_ref,
                      o_ref):
    """Fused ln_2 -> c_fc -> GELU -> c_proj -> residual.

    The (tm, 4E) intermediate stays in VMEM/vregs; never written to HBM.
    """
    x = x_ref[...].astype(jnp.float32)
    h = _layernorm_f32(x, g_ref[...], b_ref[...])
    h = jnp.dot(h.astype(jnp.bfloat16), fcw_ref[...],
                preferred_element_type=jnp.float32)
    h = _gelu(h + fcb_ref[...])
    h = jnp.dot(h.astype(jnp.bfloat16), pw_ref[...],
                preferred_element_type=jnp.float32)
    o_ref[...] = (x + h + pb_ref[...]).astype(o_ref.dtype)


def _attention_kernel(qkv_ref, o_ref, *, num_heads, scale):
    """Self-attention for one batch element; all heads in one grid step,
    lane-dense (S, E) output slab."""
    qkv = qkv_ref[0].astype(jnp.float32)          # (S, 3E)
    E = qkv.shape[1] // 3
    Dh = E // num_heads
    outs = []
    for h in range(num_heads):                    # static loop over heads
        qh = qkv[:, h * Dh:(h + 1) * Dh].astype(jnp.bfloat16)
        kh = qkv[:, E + h * Dh:E + (h + 1) * Dh].astype(jnp.bfloat16)
        vh = qkv[:, 2 * E + h * Dh:2 * E + (h + 1) * Dh].astype(jnp.bfloat16)
        # Contract last axes directly (no explicit transpose through the XLU).
        s = jax.lax.dot_general(qh, kh, (((1,), (1,)), ((), ())),
                                preferred_element_type=jnp.float32) * scale
        s = s - jnp.max(s, axis=-1, keepdims=True)
        p = jnp.exp(s)
        p = p * pl.reciprocal(jnp.sum(p, axis=-1, keepdims=True), approx=True)
        outs.append(jnp.dot(p.astype(jnp.bfloat16), vh,
                            preferred_element_type=jnp.float32))
    o_ref[0] = jnp.concatenate(outs, axis=-1).astype(o_ref.dtype)


def _layernorm_kernel(x_ref, g_ref, b_ref, o_ref):
    y = _layernorm_f32(x_ref[...].astype(jnp.float32), g_ref[...], b_ref[...])
    o_ref[...] = y.astype(o_ref.dtype)


def _head_kernel(x_ref, g_ref, b_ref, w1_ref, b1_ref, w2_ref, b2_ref, o_ref):
    """Fused mlp_head: LayerNorm -> Linear -> Linear -> GELU."""
    h = _layernorm_f32(x_ref[...].astype(jnp.float32), g_ref[...], b_ref[...])
    h = jnp.dot(h.astype(jnp.bfloat16), w1_ref[...],
                preferred_element_type=jnp.float32) + b1_ref[...]
    h = jnp.dot(h.astype(jnp.bfloat16), w2_ref[...],
                preferred_element_type=jnp.float32) + b2_ref[...]
    o_ref[...] = _gelu(h).astype(o_ref.dtype)


# ----------------------------------------------------------------------------
# Wrappers (reshape glue in JAX, compute in Pallas)
# ----------------------------------------------------------------------------
def _pick_tile(dim, pref, align):
    """Largest tile <= pref that is a multiple of `align` and divides `dim`
    exactly (so no partial blocks ever corrupt reductions); falls back to the
    full extent."""
    if dim <= pref:
        return dim
    t = (pref // align) * align
    while t >= align:
        if dim % t == 0:
            return t
        t -= align
    return dim


def linear(x, w, b, activation=None):
    """x: (..., K) f32, w: (K, N) bf16, b: (N,) f32 -> (..., N)."""
    lead = x.shape[:-1]
    K = x.shape[-1]
    N = w.shape[1]
    M = int(math.prod(lead)) if lead else 1
    x2 = x.reshape(M, K)
    tm = _pick_tile(M, MM_TM, 8)
    tn = _pick_tile(N, MM_TN, 128)
    tk = _pick_tile(K, MM_TK, 128)
    out = pl.pallas_call(
        functools.partial(_matmul_kernel, activation=activation),
        grid=(M // tm, N // tn, K // tk),
        out_shape=jax.ShapeDtypeStruct((M, N), x.dtype),
        in_specs=[
            pl.BlockSpec((tm, tk), lambda i, j, k: (i, k)),
            pl.BlockSpec((tk, tn), lambda i, j, k: (k, j)),
            pl.BlockSpec((1, tn), lambda i, j, k: (0, j)),
        ],
        out_specs=pl.BlockSpec((tm, tn), lambda i, j, k: (i, j)),
        scratch_shapes=[pltpu.VMEM((tm, tn), jnp.float32)],
        compiler_params=pltpu.CompilerParams(
            dimension_semantics=("parallel", "parallel", "arbitrary"),
            vmem_limit_bytes=VMEM_LIMIT),
    )(x2, w, b.reshape(1, N))
    return out.reshape(lead + (N,))


def ln_linear(x, g, b, w, wb, activation=None):
    """Fused LayerNorm + Linear over the token axis."""
    lead = x.shape[:-1]
    E = x.shape[-1]
    N = w.shape[1]
    M = int(math.prod(lead)) if lead else 1
    x2 = x.reshape(M, E)
    tm = _pick_tile(M, ROW_TM, 8)
    out = pl.pallas_call(
        functools.partial(_ln_matmul_kernel, activation=activation),
        grid=(M // tm,),
        out_shape=jax.ShapeDtypeStruct((M, N), x.dtype),
        in_specs=[
            pl.BlockSpec((tm, E), lambda i: (i, 0)),
            pl.BlockSpec((1, E), lambda i: (0, 0)),
            pl.BlockSpec((1, E), lambda i: (0, 0)),
            pl.BlockSpec((E, N), lambda i: (0, 0)),
            pl.BlockSpec((1, N), lambda i: (0, 0)),
        ],
        out_specs=pl.BlockSpec((tm, N), lambda i: (i, 0)),
        compiler_params=pltpu.CompilerParams(
            dimension_semantics=("parallel",),
            vmem_limit_bytes=VMEM_LIMIT),
    )(x2, g.reshape(1, E), b.reshape(1, E), w, wb.reshape(1, N))
    return out.reshape(lead + (N,))


def linear_residual(x, w, b, residual):
    """residual + x @ W + b, fused."""
    lead = x.shape[:-1]
    K = x.shape[-1]
    N = w.shape[1]
    M = int(math.prod(lead)) if lead else 1
    x2 = x.reshape(M, K)
    r2 = residual.reshape(M, N)
    tm = _pick_tile(M, ROW_TM, 8)
    out = pl.pallas_call(
        _matmul_residual_kernel,
        grid=(M // tm,),
        out_shape=jax.ShapeDtypeStruct((M, N), x.dtype),
        in_specs=[
            pl.BlockSpec((tm, K), lambda i: (i, 0)),
            pl.BlockSpec((K, N), lambda i: (0, 0)),
            pl.BlockSpec((1, N), lambda i: (0, 0)),
            pl.BlockSpec((tm, N), lambda i: (i, 0)),
        ],
        out_specs=pl.BlockSpec((tm, N), lambda i: (i, 0)),
        compiler_params=pltpu.CompilerParams(
            dimension_semantics=("parallel",),
            vmem_limit_bytes=VMEM_LIMIT),
    )(x2, w, b.reshape(1, N), r2)
    return out.reshape(lead + (N,))


def mlp_block(x, p):
    """Fused ln_2 + c_fc + GELU + c_proj + residual (dropout = identity)."""
    lead = x.shape[:-1]
    E = x.shape[-1]
    H = p["fc_w"].shape[1]
    M = int(math.prod(lead)) if lead else 1
    x2 = x.reshape(M, E)
    tm = _pick_tile(M, ROW_TM, 8)
    out = pl.pallas_call(
        _mlp_block_kernel,
        grid=(M // tm,),
        out_shape=jax.ShapeDtypeStruct((M, E), x.dtype),
        in_specs=[
            pl.BlockSpec((tm, E), lambda i: (i, 0)),
            pl.BlockSpec((1, E), lambda i: (0, 0)),
            pl.BlockSpec((1, E), lambda i: (0, 0)),
            pl.BlockSpec((E, H), lambda i: (0, 0)),
            pl.BlockSpec((1, H), lambda i: (0, 0)),
            pl.BlockSpec((H, E), lambda i: (0, 0)),
            pl.BlockSpec((1, E), lambda i: (0, 0)),
        ],
        out_specs=pl.BlockSpec((tm, E), lambda i: (i, 0)),
        compiler_params=pltpu.CompilerParams(
            dimension_semantics=("parallel",),
            vmem_limit_bytes=VMEM_LIMIT),
    )(x2, p["ln2_g"].reshape(1, E), p["ln2_b"].reshape(1, E),
      p["fc_w"], p["fc_b"].reshape(1, H), p["proj_w"], p["proj_b"].reshape(1, E))
    return out.reshape(x.shape)


def attention(qkv, num_heads):
    """qkv: (B, S, 3E) packed -> (B, S, E) attention output."""
    B, S, E3 = qkv.shape
    E = E3 // 3
    Dh = E // num_heads
    scale = 1.0 / math.sqrt(Dh)
    return pl.pallas_call(
        functools.partial(_attention_kernel, num_heads=num_heads, scale=scale),
        grid=(B,),
        out_shape=jax.ShapeDtypeStruct((B, S, E), qkv.dtype),
        in_specs=[pl.BlockSpec((1, S, E3), lambda b: (b, 0, 0))],
        out_specs=pl.BlockSpec((1, S, E), lambda b: (b, 0, 0)),
        compiler_params=pltpu.CompilerParams(
            dimension_semantics=("parallel",)),
    )(qkv)


def layernorm(x, gamma, beta):
    lead = x.shape[:-1]
    E = x.shape[-1]
    M = int(math.prod(lead)) if lead else 1
    x2 = x.reshape(M, E)
    tm = _pick_tile(M, LN_TM, 8)
    out = pl.pallas_call(
        _layernorm_kernel,
        grid=(M // tm,),
        out_shape=jax.ShapeDtypeStruct((M, E), x.dtype),
        in_specs=[
            pl.BlockSpec((tm, E), lambda i: (i, 0)),
            pl.BlockSpec((1, E), lambda i: (0, 0)),
            pl.BlockSpec((1, E), lambda i: (0, 0)),
        ],
        out_specs=pl.BlockSpec((tm, E), lambda i: (i, 0)),
        compiler_params=pltpu.CompilerParams(
            dimension_semantics=("parallel",)),
    )(x2, gamma.reshape(1, E), beta.reshape(1, E))
    return out.reshape(x.shape)


def mlp_head(cls, params):
    """Fused LayerNorm -> Linear(E, mlp) -> Linear(mlp, C) -> GELU."""
    B, E = cls.shape
    MLP = params["head_w1"].shape[1]
    NC = params["head_w2"].shape[1]
    return pl.pallas_call(
        _head_kernel,
        grid=(1,),
        out_shape=jax.ShapeDtypeStruct((B, NC), cls.dtype),
        in_specs=[
            pl.BlockSpec((B, E), lambda i: (0, 0)),
            pl.BlockSpec((1, E), lambda i: (0, 0)),
            pl.BlockSpec((1, E), lambda i: (0, 0)),
            pl.BlockSpec((E, MLP), lambda i: (0, 0)),
            pl.BlockSpec((1, MLP), lambda i: (0, 0)),
            pl.BlockSpec((MLP, NC), lambda i: (0, 0)),
            pl.BlockSpec((1, NC), lambda i: (0, 0)),
        ],
        out_specs=pl.BlockSpec((B, NC), lambda i: (0, 0)),
    )(cls, params["head_ln_g"].reshape(1, E), params["head_ln_b"].reshape(1, E),
      params["head_w1"], params["head_b1"].reshape(1, MLP),
      params["head_w2"], params["head_b2"].reshape(1, NC))


# ----------------------------------------------------------------------------
# Model
# ----------------------------------------------------------------------------
def block_forward(x, p, num_heads):
    # TODO(synk): original PyTorch calls self.attn(self.ln_1(x)) with one arg
    # (which raises); implemented as the intended self-attention residual
    # attn(h, h, h)[0].  Dropouts are identity (eval).
    qkv = ln_linear(x, p["ln1_g"], p["ln1_b"],
                    p["attn"]["in_w"], p["attn"]["in_b"])        # ln_1 + QKV
    a = attention(qkv, num_heads)                                # per-batch MHA
    x = linear_residual(a, p["attn"]["out_w"], p["attn"]["out_b"], x)
    return mlp_block(x, p)                                       # ln_2 + MLP + res


def patch_embed(x, w2, b_conv, patch):
    """Conv2d(3, E, kernel=stride=patch) expressed as im2col + tiled matmul.
    x: (B, 3, H, W) NCHW -> (B, num_patches, E)."""
    B, C, H, W = x.shape
    nh, nw = H // patch, W // patch
    # TODO(synk): the im2col transpose is a plain XLA layout pass; folding it
    # into the matmul's index_map would save one extra HBM pass over the image.
    patches = (x.reshape(B, C, nh, patch, nw, patch)
                .transpose(0, 2, 4, 1, 3, 5)            # (B, nh, nw, C, p, p)
                .reshape(B, nh * nw, C * patch * patch))
    return linear(patches, w2, b_conv)


def vit_forward(params, x, cfg):
    B = x.shape[0]
    E = cfg["embed_dim"]

    tok = patch_embed(x, params["patch_w"], params["patch_b"], cfg["patch"])
    cls = jnp.broadcast_to(params["cls_token"], (B, 1, E)).astype(tok.dtype)
    t = jnp.concatenate([cls, tok], axis=1)
    t = t + params["pos_emb"]

    # TransformerEncoder.embeddings: Linear(block_size, embed_dim) (dropout=id)
    t = linear(t, params["emb_w"], params["emb_b"])

    for bp in params["blocks"]:
        t = block_forward(t, bp, cfg["num_heads"])

    t = layernorm(t, params["lnf_g"], params["lnf_b"])

    return mlp_head(t[:, 0], params)


# ----------------------------------------------------------------------------
# Deterministic synthetic parameters (matmul weights in bf16, (in, out) layout)
# ----------------------------------------------------------------------------
def init_params(key, cfg):
    E = cfg["embed_dim"]
    P = cfg["patch"]
    MLP = cfg["mlp_size"]
    NC = cfg["num_classes"]
    f32 = jnp.float32
    keys = iter(jax.random.split(key, 8 * cfg["num_layers"] + 16))

    def nrm(shape, scale=0.02, dtype=jnp.bfloat16):
        return (scale * jax.random.normal(next(keys), shape, f32)).astype(dtype)

    params = {
        # Conv2d(3, E, P, P) weight, pre-flattened/transposed to (3*P*P, E) bf16
        "patch_w": nrm((3 * P * P, E)),
        "patch_b": nrm((E,), 0.01, f32),
        "cls_token": jnp.zeros((1, 1, E), f32),                       # torch.zeros
        "pos_emb": jnp.zeros((1, cfg["max_blocks"] + 1, E), f32),     # torch.zeros
        "emb_w": nrm((P, E)),                 # Linear(block_size, E), (in, out)
        "emb_b": nrm((E,), 0.01, f32),
        "lnf_g": jnp.ones((E,), f32),
        "lnf_b": jnp.zeros((E,), f32),
        "head_ln_g": jnp.ones((E,), f32),
        "head_ln_b": jnp.zeros((E,), f32),
        "head_w1": nrm((E, MLP)),
        "head_b1": nrm((MLP,), 0.01, f32),
        "head_w2": nrm((MLP, NC)),
        "head_b2": nrm((NC,), 0.01, f32),
    }

    blocks = []
    for _ in range(cfg["num_layers"]):
        blocks.append({
            "ln1_g": jnp.ones((E,), f32),
            "ln1_b": jnp.zeros((E,), f32),
            "attn": {
                "in_w": nrm((E, 3 * E)),                 # in_proj_weight.T
                "in_b": nrm((3 * E,), 0.01, f32),
                "out_w": nrm((E, E)),                    # out_proj.weight.T
                "out_b": nrm((E,), 0.01, f32),
            },
            "ln2_g": jnp.ones((E,), f32),
            "ln2_b": jnp.zeros((E,), f32),
            "fc_w": nrm((E, 4 * E)),
            "fc_b": nrm((4 * E,), 0.01, f32),
            "proj_w": nrm((4 * E, E)),
            "proj_b": nrm((E,), 0.01, f32),
        })
    params["blocks"] = blocks
    return params


# ----------------------------------------------------------------------------
# Demo
# ----------------------------------------------------------------------------
if __name__ == "__main__":
    # Small config.  Note block_size (== patch size) must equal embed_dim for
    # the original module's TransformerEncoder.embeddings Linear to type-check.
    cfg = dict(patch=16, max_blocks=4, num_layers=2, num_heads=2,
               embed_dim=16, mlp_size=32, num_classes=10)

    key = jax.random.PRNGKey(0)
    k_params, k_x = jax.random.split(key)
    params = init_params(k_params, cfg)

    # Image: (B=2, C=3, H=32, W=32) NCHW -> (32/16)^2 = 4 patches = max_blocks.
    x = jax.random.normal(k_x, (2, 3, 32, 32), jnp.float32)

    fwd = jax.jit(lambda p, inp: vit_forward(p, inp, cfg))
    out = fwd(params, x)
    jax.block_until_ready(out)

    assert out.shape == (2, cfg["num_classes"]), out.shape
    assert jnp.all(jnp.isfinite(out))
    print("KERNEL_OK")
</pallas_src>

<mosaic_0001>
module attributes {stable_mosaic.version = 11 : i64} {
  func.func @_matmul_kernel(%arg0: i32, %arg1: i32, %arg2: i32, %arg3: memref<8x384xf32, #tpu.memory_space<vmem>>, %arg4: memref<384x16xbf16, #tpu.memory_space<vmem>>, %arg5: memref<1x16xf32, #tpu.memory_space<vmem>>, %arg6: memref<8x16xf32, #tpu.memory_space<vmem>>, %arg7: memref<8x16xf32, #tpu.memory_space<vmem>>) attributes {dimension_semantics = [#tpu.dimension_semantics<parallel>, #tpu.dimension_semantics<parallel>, #tpu.dimension_semantics<arbitrary>], iteration_bounds = array<i64: 1, 1, 2>, scalar_prefetch = 0 : i64, scratch_operands = 1 : i64, tpu.core_type = #tpu.core_type<tc>, window_params = [{transform_indices = @transform_0, window_bounds = array<i64: 8, 384>}, {transform_indices = @transform_1, window_bounds = array<i64: 384, 16>}, {transform_indices = @transform_2, window_bounds = array<i64: 1, 16>}, {transform_indices = @transform_3, window_bounds = array<i64: 8, 16>}]} {
    %c0_i32 = arith.constant 0 : i32
    %0 = arith.cmpi eq, %arg2, %c0_i32 : i32
    %1 = arith.extui %0 : i1 to i32
    %c0_i32_0 = arith.constant 0 : i32
    %2 = arith.cmpi ne, %1, %c0_i32_0 : i32
    scf.if %2 {
      %cst_9 = arith.constant 0.000000e+00 : f32
      %13 = vector.broadcast %cst_9 : f32 to vector<8x16xf32>
      %c0_10 = arith.constant 0 : index
      %c0_11 = arith.constant 0 : index
      %14 = vector.load %arg7[%c0_10, %c0_11] : memref<8x16xf32, #tpu.memory_space<vmem>>, vector<8x16xf32>
      tpu.vector_store %arg7[%c0_10, %c0_11], %13 {strides = array<i32>} : memref<8x16xf32, #tpu.memory_space<vmem>>, vector<8x16xf32>,
    } else {
    }
    %c0 = arith.constant 0 : index
    %c0_1 = arith.constant 0 : index
    %3 = vector.load %arg7[%c0, %c0_1] : memref<8x16xf32, #tpu.memory_space<vmem>>, vector<8x16xf32>
    %c0_2 = arith.constant 0 : index
    %c0_3 = arith.constant 0 : index
    %4 = vector.load %arg3[%c0_2, %c0_3] : memref<8x384xf32, #tpu.memory_space<vmem>>, vector<8x384xf32>
    %5 = arith.truncf %4 : vector<8x384xf32> to vector<8x384xbf16>
    %c0_4 = arith.constant 0 : index
    %c0_5 = arith.constant 0 : index
    %6 = vector.load %arg4[%c0_4, %c0_5] : memref<384x16xbf16, #tpu.memory_space<vmem>>, vector<384x16xbf16>
    %cst = arith.constant dense<0.000000e+00> : vector<8x16xf32>
    %7 = tpu.matmul %5, %6, %cst {dimension_numbers = #tpu.dot_dimension_numbers<[1], [0], [0], [1], [0, 0, 1, 1], [], []>} : vector<8x384xbf16>, vector<384x16xbf16>, vector<8x16xf32> -> vector<8x16xf32>
    %8 = arith.addf %3, %7 : vector<8x16xf32>
    %c0_6 = arith.constant 0 : index
    %c0_7 = arith.constant 0 : index
    %9 = vector.load %arg7[%c0_6, %c0_7] : memref<8x16xf32, #tpu.memory_space<vmem>>, vector<8x16xf32>
    tpu.vector_store %arg7[%c0_6, %c0_7], %8 {strides = array<i32>} : memref<8x16xf32, #tpu.memory_space<vmem>>, vector<8x16xf32>,
    %c1_i32 = arith.constant 1 : i32
    %10 = arith.cmpi eq, %arg2, %c1_i32 : i32
    %11 = arith.extui %10 : i1 to i32
    %c0_i32_8 = arith.constant 0 : i32
    %12 = arith.cmpi ne, %11, %c0_i32_8 : i32
    scf.if %12 {
      %c0_9 = arith.constant 0 : index
      %c0_10 = arith.constant 0 : index
      %13 = vector.load %arg7[%c0_9, %c0_10] : memref<8x16xf32, #tpu.memory_space<vmem>>, vector<8x16xf32>
      %c0_11 = arith.constant 0 : index
      %c0_12 = arith.constant 0 : index
      %14 = vector.load %arg5[%c0_11, %c0_12] : memref<1x16xf32, #tpu.memory_space<vmem>>, vector<1x16xf32>
      %15 = vector.broadcast %14 : vector<1x16xf32> to vector<8x16xf32>
      %16 = arith.addf %13, %15 : vector<8x16xf32>
      %c0_13 = arith.constant 0 : index
      %c0_14 = arith.constant 0 : index
      %17 = vector.load %arg6[%c0_13, %c0_14] : memref<8x16xf32, #tpu.memory_space<vmem>>, vector<8x16xf32>
      tpu.vector_store %arg6[%c0_13, %c0_14], %16 {strides = array<i32>} : memref<8x16xf32, #tpu.memory_space<vmem>>, vector<8x16xf32>,
    } else {
    }
    return
  }
  func.func @transform_0(%arg0: i32, %arg1: i32, %arg2: i32) -> (i32, i32) {
    %c0_i32 = arith.constant 0 : i32
    return %arg0, %arg2 : i32, i32
  }
  func.func @transform_1(%arg0: i32, %arg1: i32, %arg2: i32) -> (i32, i32) {
    %c0_i32 = arith.constant 0 : i32
    return %arg2, %arg1 : i32, i32
  }
  func.func @transform_2(%arg0: i32, %arg1: i32, %arg2: i32) -> (i32, i32) {
    %c0_i32 = arith.constant 0 : i32
    %c0_i32_0 = arith.constant 0 : i32
    return %c0_i32, %arg1 : i32, i32
  }
  func.func @transform_3(%arg0: i32, %arg1: i32, %arg2: i32) -> (i32, i32) {
    %c0_i32 = arith.constant 0 : i32
    return %arg0, %arg1 : i32, i32
  }
}

module attributes {stable_mosaic.version = 11 : i64} {
  func.func @_matmul_kernel(%arg0: i32, %arg1: i32, %arg2: i32, %arg3: memref<10x16xf32, #tpu.memory_space<vmem>>, %arg4: memref<16x16xbf16, #tpu.memory_space<vmem>>, %arg5: memref<1x16xf32, #tpu.memory_space<vmem>>, %arg6: memref<10x16xf32, #tpu.memory_space<vmem>>, %arg7: memref<10x16xf32, #tpu.memory_space<vmem>>) attributes {dimension_semantics = [#tpu.dimension_semantics<parallel>, #tpu.dimension_semantics<parallel>, #tpu.dimension_semantics<arbitrary>], iteration_bounds = array<i64: 1, 1, 1>, scalar_prefetch = 0 : i64, scratch_operands = 1 : i64, tpu.core_type = #tpu.core_type<tc>, window_params = [{transform_indices = @transform_0, window_bounds = array<i64: 10, 16>}, {transform_indices = @transform_1, window_bounds = array<i64: 16, 16>}, {transform_indices = @transform_2, window_bounds = array<i64: 1, 16>}, {transform_indices = @transform_3, window_bounds = array<i64: 10, 16>}]} {
    %c0_i32 = arith.constant 0 : i32
    %0 = arith.cmpi eq, %arg2, %c0_i32 : i32
    %1 = arith.extui %0 : i1 to i32
    %c0_i32_0 = arith.constant 0 : i32
    %2 = arith.cmpi ne, %1, %c0_i32_0 : i32
    scf.if %2 {
      %cst_10 = arith.constant 0.000000e+00 : f32
      %13 = vector.broadcast %cst_10 : f32 to vector<10x16xf32>
      %c0_11 = arith.constant 0 : index
      %c0_12 = arith.constant 0 : index
      %14 = vector.load %arg7[%c0_11, %c0_12] : memref<10x16xf32, #tpu.memory_space<vmem>>, vector<10x16xf32>
      tpu.vector_store %arg7[%c0_11, %c0_12], %13 {strides = array<i32>} : memref<10x16xf32, #tpu.memory_space<vmem>>, vector<10x16xf32>,
    } else {
    }
    %c0 = arith.constant 0 : index
    %c0_1 = arith.constant 0 : index
    %3 = vector.load %arg7[%c0, %c0_1] : memref<10x16xf32, #tpu.memory_space<vmem>>, vector<10x16xf32>
    %c0_2 = arith.constant 0 : index
    %c0_3 = arith.constant 0 : index
    %4 = vector.load %arg3[%c0_2, %c0_3] : memref<10x16xf32, #tpu.memory_space<vmem>>, vector<10x16xf32>
    %5 = arith.truncf %4 : vector<10x16xf32> to vector<10x16xbf16>
    %c0_4 = arith.constant 0 : index
    %c0_5 = arith.constant 0 : index
    %6 = vector.load %arg4[%c0_4, %c0_5] : memref<16x16xbf16, #tpu.memory_space<vmem>>, vector<16x16xbf16>
    %cst = arith.constant dense<0.000000e+00> : vector<10x16xf32>
    %7 = tpu.matmul %5, %6, %cst {dimension_numbers = #tpu.dot_dimension_numbers<[1], [0], [0], [1], [0, 0, 1, 1], [], []>} : vector<10x16xbf16>, vector<16x16xbf16>, vector<10x16xf32> -> vector<10x16xf32>
    %8 = arith.addf %3, %7 : vector<10x16xf32>
    %c0_6 = arith.constant 0 : index
    %c0_7 = arith.constant 0 : index
    %9 = vector.load %arg7[%c0_6, %c0_7] : memref<10x16xf32, #tpu.memory_space<vmem>>, vector<10x16xf32>
    tpu.vector_store %arg7[%c0_6, %c0_7], %8 {strides = array<i32>} : memref<10x16xf32, #tpu.memory_space<vmem>>, vector<10x16xf32>,
    %c0_i32_8 = arith.constant 0 : i32
    %10 = arith.cmpi eq, %arg2, %c0_i32_8 : i32
    %11 = arith.extui %10 : i1 to i32
    %c0_i32_9 = arith.constant 0 : i32
    %12 = arith.cmpi ne, %11, %c0_i32_9 : i32
    scf.if %12 {
      %c0_10 = arith.constant 0 : index
      %c0_11 = arith.constant 0 : index
      %13 = vector.load %arg7[%c0_10, %c0_11] : memref<10x16xf32, #tpu.memory_space<vmem>>, vector<10x16xf32>
      %c0_12 = arith.constant 0 : index
      %c0_13 = arith.constant 0 : index
      %14 = vector.load %arg5[%c0_12, %c0_13] : memref<1x16xf32, #tpu.memory_space<vmem>>, vector<1x16xf32>
      %15 = vector.broadcast %14 : vector<1x16xf32> to vector<10x16xf32>
      %16 = arith.addf %13, %15 : vector<10x16xf32>
      %c0_14 = arith.constant 0 : index
      %c0_15 = arith.constant 0 : index
      %17 = vector.load %arg6[%c0_14, %c0_15] : memref<10x16xf32, #tpu.memory_space<vmem>>, vector<10x16xf32>
      tpu.vector_store %arg6[%c0_14, %c0_15], %16 {strides = array<i32>} : memref<10x16xf32, #tpu.memory_space<vmem>>, vector<10x16xf32>,
    } else {
    }
    return
  }
  func.func @transform_0(%arg0: i32, %arg1: i32, %arg2: i32) -> (i32, i32) {
    %c0_i32 = arith.constant 0 : i32
    return %arg0, %arg2 : i32, i32
  }
  func.func @transform_1(%arg0: i32, %arg1: i32, %arg2: i32) -> (i32, i32) {
    %c0_i32 = arith.constant 0 : i32
    return %arg2, %arg1 : i32, i32
  }
  func.func @transform_2(%arg0: i32, %arg1: i32, %arg2: i32) -> (i32, i32) {
    %c0_i32 = arith.constant 0 : i32
    %c0_i32_0 = arith.constant 0 : i32
    return %c0_i32, %arg1 : i32, i32
  }
  func.func @transform_3(%arg0: i32, %arg1: i32, %arg2: i32) -> (i32, i32) {
    %c0_i32 = arith.constant 0 : i32
    return %arg0, %arg1 : i32, i32
  }
}

module attributes {stable_mosaic.version = 11 : i64} {
  func.func @_ln_matmul_kernel(%arg0: i32, %arg1: memref<10x16xf32, #tpu.memory_space<vmem>>, %arg2: memref<1x16xf32, #tpu.memory_space<vmem>>, %arg3: memref<1x16xf32, #tpu.memory_space<vmem>>, %arg4: memref<16x48xbf16, #tpu.memory_space<vmem>>, %arg5: memref<1x48xf32, #tpu.memory_space<vmem>>, %arg6: memref<10x48xf32, #tpu.memory_space<vmem>>) attributes {dimension_semantics = [#tpu.dimension_semantics<parallel>], iteration_bounds = array<i64: 1>, scalar_prefetch = 0 : i64, scratch_operands = 0 : i64, tpu.core_type = #tpu.core_type<tc>, window_params = [{transform_indices = @transform_0, window_bounds = array<i64: 10, 16>}, {pipeline_mode = #tpu.pipeline_mode<synchronous>, transform_indices = @transform_1, window_bounds = array<i64: 1, 16>}, {pipeline_mode = #tpu.pipeline_mode<synchronous>, transform_indices = @transform_2, window_bounds = array<i64: 1, 16>}, {pipeline_mode = #tpu.pipeline_mode<synchronous>, transform_indices = @transform_3, window_bounds = array<i64: 16, 48>}, {pipeline_mode = #tpu.pipeline_mode<synchronous>, transform_indices = @transform_4, window_bounds = array<i64: 1, 48>}, {transform_indices = @transform_5, window_bounds = array<i64: 10, 48>}]} {
    %c0 = arith.constant 0 : index
    %c0_0 = arith.constant 0 : index
    %0 = vector.load %arg1[%c0, %c0_0] : memref<10x16xf32, #tpu.memory_space<vmem>>, vector<10x16xf32>
    %c0_1 = arith.constant 0 : index
    %c0_2 = arith.constant 0 : index
    %1 = vector.load %arg2[%c0_1, %c0_2] : memref<1x16xf32, #tpu.memory_space<vmem>>, vector<1x16xf32>
    %c0_3 = arith.constant 0 : index
    %c0_4 = arith.constant 0 : index
    %2 = vector.load %arg3[%c0_3, %c0_4] : memref<1x16xf32, #tpu.memory_space<vmem>>, vector<1x16xf32>
    %cst = arith.constant dense<0.000000e+00> : vector<10xf32>
    %3 = vector.multi_reduction <add>, %0, %cst [1] : vector<10x16xf32> to vector<10xf32>
    %4 = vector.shape_cast %3 : vector<10xf32> to vector<10x1xf32>
    %cst_5 = arith.constant 1.600000e+01 : f32
    %5 = vector.broadcast %cst_5 : f32 to vector<10x1xf32>
    %6 = arith.divf %4, %5 : vector<10x1xf32>
    %7 = vector.broadcast %6 : vector<10x1xf32> to vector<10x16xf32>
    %8 = arith.subf %0, %7 : vector<10x16xf32>
    %9 = arith.mulf %8, %8 : vector<10x16xf32>
    %cst_6 = arith.constant dense<0.000000e+00> : vector<10xf32>
    %10 = vector.multi_reduction <add>, %9, %cst_6 [1] : vector<10x16xf32> to vector<10xf32>
    %11 = vector.shape_cast %10 : vector<10xf32> to vector<10x1xf32>
    %cst_7 = arith.constant 1.600000e+01 : f32
    %12 = vector.broadcast %cst_7 : f32 to vector<10x1xf32>
    %13 = arith.divf %11, %12 : vector<10x1xf32>
    %cst_8 = arith.constant 9.99999974E-6 : f32
    %14 = vector.broadcast %cst_8 : f32 to vector<10x1xf32>
    %15 = arith.addf %13, %14 : vector<10x1xf32>
    %16 = math.rsqrt %15 : vector<10x1xf32>
    %17 = vector.broadcast %16 : vector<10x1xf32> to vector<10x16xf32>
    %18 = arith.mulf %8, %17 : vector<10x16xf32>
    %19 = vector.broadcast %1 : vector<1x16xf32> to vector<10x16xf32>
    %20 = arith.mulf %18, %19 : vector<10x16xf32>
    %21 = vector.broadcast %2 : vector<1x16xf32> to vector<10x16xf32>
    %22 = arith.addf %20, %21 : vector<10x16xf32>
    %23 = arith.truncf %22 : vector<10x16xf32> to vector<10x16xbf16>
    %c0_9 = arith.constant 0 : index
    %c0_10 = arith.constant 0 : index
    %24 = vector.load %arg4[%c0_9, %c0_10] : memref<16x48xbf16, #tpu.memory_space<vmem>>, vector<16x48xbf16>
    %cst_11 = arith.constant dense<0.000000e+00> : vector<10x48xf32>
    %25 = tpu.matmul %23, %24, %cst_11 {dimension_numbers = #tpu.dot_dimension_numbers<[1], [0], [0], [1], [0, 0, 1, 1], [], []>} : vector<10x16xbf16>, vector<16x48xbf16>, vector<10x48xf32> -> vector<10x48xf32>
    %c0_12 = arith.constant 0 : index
    %c0_13 = arith.constant 0 : index
    %26 = vector.load %arg5[%c0_12, %c0_13] : memref<1x48xf32, #tpu.memory_space<vmem>>, vector<1x48xf32>
    %27 = vector.broadcast %26 : vector<1x48xf32> to vector<10x48xf32>
    %28 = arith.addf %25, %27 : vector<10x48xf32>
    %c0_14 = arith.constant 0 : index
    %c0_15 = arith.constant 0 : index
    %29 = vector.load %arg6[%c0_14, %c0_15] : memref<10x48xf32, #tpu.memory_space<vmem>>, vector<10x48xf32>
    tpu.vector_store %arg6[%c0_14, %c0_15], %28 {strides = array<i32>} : memref<10x48xf32, #tpu.memory_space<vmem>>, vector<10x48xf32>,
    return
  }
  func.func @transform_0(%arg0: i32) -> (i32, i32) {
    %c0_i32 = arith.constant 0 : i32
    %c0_i32_0 = arith.constant 0 : i32
    return %arg0, %c0_i32 : i32, i32
  }
  func.func @transform_1(%arg0: i32) -> (i32, i32) {
    %c0_i32 = arith.constant 0 : i32
    %c0_i32_0 = arith.constant 0 : i32
    %c0_i32_1 = arith.constant 0 : i32
    return %c0_i32, %c0_i32_0 : i32, i32
  }
  func.func @transform_2(%arg0: i32) -> (i32, i32) {
    %c0_i32 = arith.constant 0 : i32
    %c0_i32_0 = arith.constant 0 : i32
    %c0_i32_1 = arith.constant 0 : i32
    return %c0_i32, %c0_i32_0 : i32, i32
  }
  func.func @transform_3(%arg0: i32) -> (i32, i32) {
    %c0_i32 = arith.constant 0 : i32
    %c0_i32_0 = arith.constant 0 : i32
    %c0_i32_1 = arith.constant 0 : i32
    return %c0_i32, %c0_i32_0 : i32, i32
  }
  func.func @transform_4(%arg0: i32) -> (i32, i32) {
    %c0_i32 = arith.constant 0 : i32
    %c0_i32_0 = arith.constant 0 : i32
    %c0_i32_1 = arith.constant 0 : i32
    return %c0_i32, %c0_i32_0 : i32, i32
  }
  func.func @transform_5(%arg0: i32) -> (i32, i32) {
    %c0_i32 = arith.constant 0 : i32
    %c0_i32_0 = arith.constant 0 : i32
    return %arg0, %c0_i32 : i32, i32
  }
}

module attributes {stable_mosaic.version = 11 : i64} {
  func.func @_attention_kernel(%arg0: i32, %arg1: memref<1x5x48xf32, #tpu.memory_space<vmem>>, %arg2: memref<1x5x16xf32, #tpu.memory_space<vmem>>) attributes {dimension_semantics = [#tpu.dimension_semantics<parallel>], iteration_bounds = array<i64: 2>, scalar_prefetch = 0 : i64, scratch_operands = 0 : i64, tpu.core_type = #tpu.core_type<tc>, window_params = [{transform_indices = @transform_0, window_bounds = array<i64: 1, 5, 48>}, {transform_indices = @transform_1, window_bounds = array<i64: 1, 5, 16>}]} {
    %c0 = arith.constant 0 : index
    %c0_0 = arith.constant 0 : index
    %c0_1 = arith.constant 0 : index
    %0 = vector.load %arg1[%c0, %c0_0, %c0_1] : memref<1x5x48xf32, #tpu.memory_space<vmem>>, vector<1x5x48xf32>
    %1 = vector.shape_cast %0 : vector<1x5x48xf32> to vector<5x48xf32>
    %2 = vector.extract_strided_slice %1 {offsets = [0, 0], sizes = [5, 8], strides = [1, 1]} : vector<5x48xf32> to vector<5x8xf32>
    %3 = arith.truncf %2 : vector<5x8xf32> to vector<5x8xbf16>
    %4 = vector.extract_strided_slice %1 {offsets = [0, 16], sizes = [5, 8], strides = [1, 1]} : vector<5x48xf32> to vector<5x8xf32>
    %5 = arith.truncf %4 : vector<5x8xf32> to vector<5x8xbf16>
    %6 = vector.extract_strided_slice %1 {offsets = [0, 32], sizes = [5, 8], strides = [1, 1]} : vector<5x48xf32> to vector<5x8xf32>
    %7 = arith.truncf %6 : vector<5x8xf32> to vector<5x8xbf16>
    %cst = arith.constant dense<0.000000e+00> : vector<5x5xf32>
    %8 = tpu.matmul %3, %5, %cst {dimension_numbers = #tpu.dot_dimension_numbers<[1], [1], [0], [0], [0, 0, 1, 0], [], []>} : vector<5x8xbf16>, vector<5x8xbf16>, vector<5x5xf32> -> vector<5x5xf32>
    %cst_2 = arith.constant 0.353553385 : f32
    %9 = vector.broadcast %cst_2 : f32 to vector<5x5xf32>
    %10 = arith.mulf %8, %9 : vector<5x5xf32>
    %cst_3 = arith.constant dense<0xFF800000> : vector<5xf32>
    %11 = vector.multi_reduction <maximumf>, %10, %cst_3 [1] : vector<5x5xf32> to vector<5xf32>
    %12 = vector.shape_cast %11 : vector<5xf32> to vector<5x1xf32>
    %13 = vector.broadcast %12 : vector<5x1xf32> to vector<5x5xf32>
    %14 = arith.subf %10, %13 : vector<5x5xf32>
    %15 = math.exp %14 : vector<5x5xf32>
    %cst_4 = arith.constant dense<0.000000e+00> : vector<5xf32>
    %16 = vector.multi_reduction <add>, %15, %cst_4 [1] : vector<5x5xf32> to vector<5xf32>
    %17 = vector.shape_cast %16 : vector<5xf32> to vector<5x1xf32>
    %18 = tpu.reciprocal %17 {approx = true} : vector<5x1xf32> -> vector<5x1xf32>
    %19 = vector.broadcast %18 : vector<5x1xf32> to vector<5x5xf32>
    %20 = arith.mulf %15, %19 : vector<5x5xf32>
    %21 = arith.truncf %20 : vector<5x5xf32> to vector<5x5xbf16>
    %cst_5 = arith.constant dense<0.000000e+00> : vector<5x8xf32>
    %22 = tpu.matmul %21, %7, %cst_5 {dimension_numbers = #tpu.dot_dimension_numbers<[1], [0], [0], [1], [0, 0, 1, 1], [], []>} : vector<5x5xbf16>, vector<5x8xbf16>, vector<5x8xf32> -> vector<5x8xf32>
    %23 = vector.extract_strided_slice %1 {offsets = [0, 8], sizes = [5, 8], strides = [1, 1]} : vector<5x48xf32> to vector<5x8xf32>
    %24 = arith.truncf %23 : vector<5x8xf32> to vector<5x8xbf16>
    %25 = vector.extract_strided_slice %1 {offsets = [0, 24], sizes = [5, 8], strides = [1, 1]} : vector<5x48xf32> to vector<5x8xf32>
    %26 = arith.truncf %25 : vector<5x8xf32> to vector<5x8xbf16>
    %27 = vector.extract_strided_slice %1 {offsets = [0, 40], sizes = [5, 8], strides = [1, 1]} : vector<5x48xf32> to vector<5x8xf32>
    %28 = arith.truncf %27 : vector<5x8xf32> to vector<5x8xbf16>
    %cst_6 = arith.constant dense<0.000000e+00> : vector<5x5xf32>
    %29 = tpu.matmul %24, %26, %cst_6 {dimension_numbers = #tpu.dot_dimension_numbers<[1], [1], [0], [0], [0, 0, 1, 0], [], []>} : vector<5x8xbf16>, vector<5x8xbf16>, vector<5x5xf32> -> vector<5x5xf32>
    %cst_7 = arith.constant 0.353553385 : f32
    %30 = vector.broadcast %cst_7 : f32 to vector<5x5xf32>
    %31 = arith.mulf %29, %30 : vector<5x5xf32>
    %cst_8 = arith.constant dense<0xFF800000> : vector<5xf32>
    %32 = vector.multi_reduction <maximumf>, %31, %cst_8 [1] : vector<5x5xf32> to vector<5xf32>
    %33 = vector.shape_cast %32 : vector<5xf32> to vector<5x1xf32>
    %34 = vector.broadcast %33 : vector<5x1xf32> to vector<5x5xf32>
    %35 = arith.subf %31, %34 : vector<5x5xf32>
    %36 = math.exp %35 : vector<5x5xf32>
    %cst_9 = arith.constant dense<0.000000e+00> : vector<5xf32>
    %37 = vector.multi_reduction <add>, %36, %cst_9 [1] : vector<5x5xf32> to vector<5xf32>
    %38 = vector.shape_cast %37 : vector<5xf32> to vector<5x1xf32>
    %39 = tpu.reciprocal %38 {approx = true} : vector<5x1xf32> -> vector<5x1xf32>
    %40 = vector.broadcast %39 : vector<5x1xf32> to vector<5x5xf32>
    %41 = arith.mulf %36, %40 : vector<5x5xf32>
    %42 = arith.truncf %41 : vector<5x5xf32> to vector<5x5xbf16>
    %cst_10 = arith.constant dense<0.000000e+00> : vector<5x8xf32>
    %43 = tpu.matmul %42, %28, %cst_10 {dimension_numbers = #tpu.dot_dimension_numbers<[1], [0], [0], [1], [0, 0, 1, 1], [], []>} : vector<5x5xbf16>, vector<5x8xbf16>, vector<5x8xf32> -> vector<5x8xf32>
    %44 = tpu.concatenate %22, %43 in 1 : vector<5x8xf32>, vector<5x8xf32> -> vector<5x16xf32>
    %c0_11 = arith.constant 0 : index
    %c0_12 = arith.constant 0 : index
    %c0_13 = arith.constant 0 : index
    %45 = vector.load %arg2[%c0_11, %c0_12, %c0_13] : memref<1x5x16xf32, #tpu.memory_space<vmem>>, vector<1x5x16xf32>
    %46 = vector.shape_cast %45 : vector<1x5x16xf32> to vector<5x16xf32>
    %47 = vector.shape_cast %44 : vector<5x16xf32> to vector<1x5x16xf32>
    tpu.vector_store %arg2[%c0_11, %c0_12, %c0_13], %47 {strides = array<i32>} : memref<1x5x16xf32, #tpu.memory_space<vmem>>, vector<1x5x16xf32>,
    return
  }
  func.func @transform_0(%arg0: i32) -> (i32, i32, i32) {
    %c0_i32 = arith.constant 0 : i32
    %c0_i32_0 = arith.constant 0 : i32
    %c0_i32_1 = arith.constant 0 : i32
    return %arg0, %c0_i32, %c0_i32_0 : i32, i32, i32
  }
  func.func @transform_1(%arg0: i32) -> (i32, i32, i32) {
    %c0_i32 = arith.constant 0 : i32
    %c0_i32_0 = arith.constant 0 : i32
    %c0_i32_1 = arith.constant 0 : i32
    return %arg0, %c0_i32, %c0_i32_0 : i32, i32, i32
  }
}

module attributes {stable_mosaic.version = 11 : i64} {
  func.func @_matmul_residual_kernel(%arg0: i32, %arg1: memref<10x16xf32, #tpu.memory_space<vmem>>, %arg2: memref<16x16xbf16, #tpu.memory_space<vmem>>, %arg3: memref<1x16xf32, #tpu.memory_space<vmem>>, %arg4: memref<10x16xf32, #tpu.memory_space<vmem>>, %arg5: memref<10x16xf32, #tpu.memory_space<vmem>>) attributes {dimension_semantics = [#tpu.dimension_semantics<parallel>], iteration_bounds = array<i64: 1>, scalar_prefetch = 0 : i64, scratch_operands = 0 : i64, tpu.core_type = #tpu.core_type<tc>, window_params = [{transform_indices = @transform_0, window_bounds = array<i64: 10, 16>}, {pipeline_mode = #tpu.pipeline_mode<synchronous>, transform_indices = @transform_1, window_bounds = array<i64: 16, 16>}, {pipeline_mode = #tpu.pipeline_mode<synchronous>, transform_indices = @transform_2, window_bounds = array<i64: 1, 16>}, {transform_indices = @transform_3, window_bounds = array<i64: 10, 16>}, {transform_indices = @transform_4, window_bounds = array<i64: 10, 16>}]} {
    %c0 = arith.constant 0 : index
    %c0_0 = arith.constant 0 : index
    %0 = vector.load %arg1[%c0, %c0_0] : memref<10x16xf32, #tpu.memory_space<vmem>>, vector<10x16xf32>
    %1 = arith.truncf %0 : vector<10x16xf32> to vector<10x16xbf16>
    %c0_1 = arith.constant 0 : index
    %c0_2 = arith.constant 0 : index
    %2 = vector.load %arg2[%c0_1, %c0_2] : memref<16x16xbf16, #tpu.memory_space<vmem>>, vector<16x16xbf16>
    %cst = arith.constant dense<0.000000e+00> : vector<10x16xf32>
    %3 = tpu.matmul %1, %2, %cst {dimension_numbers = #tpu.dot_dimension_numbers<[1], [0], [0], [1], [0, 0, 1, 1], [], []>} : vector<10x16xbf16>, vector<16x16xbf16>, vector<10x16xf32> -> vector<10x16xf32>
    %c0_3 = arith.constant 0 : index
    %c0_4 = arith.constant 0 : index
    %4 = vector.load %arg3[%c0_3, %c0_4] : memref<1x16xf32, #tpu.memory_space<vmem>>, vector<1x16xf32>
    %5 = vector.broadcast %4 : vector<1x16xf32> to vector<10x16xf32>
    %6 = arith.addf %3, %5 : vector<10x16xf32>
    %c0_5 = arith.constant 0 : index
    %c0_6 = arith.constant 0 : index
    %7 = vector.load %arg4[%c0_5, %c0_6] : memref<10x16xf32, #tpu.memory_space<vmem>>, vector<10x16xf32>
    %8 = arith.addf %6, %7 : vector<10x16xf32>
    %c0_7 = arith.constant 0 : index
    %c0_8 = arith.constant 0 : index
    %9 = vector.load %arg5[%c0_7, %c0_8] : memref<10x16xf32, #tpu.memory_space<vmem>>, vector<10x16xf32>
    tpu.vector_store %arg5[%c0_7, %c0_8], %8 {strides = array<i32>} : memref<10x16xf32, #tpu.memory_space<vmem>>, vector<10x16xf32>,
    return
  }
  func.func @transform_0(%arg0: i32) -> (i32, i32) {
    %c0_i32 = arith.constant 0 : i32
    %c0_i32_0 = arith.constant 0 : i32
    return %arg0, %c0_i32 : i32, i32
  }
  func.func @transform_1(%arg0: i32) -> (i32, i32) {
    %c0_i32 = arith.constant 0 : i32
    %c0_i32_0 = arith.constant 0 : i32
    %c0_i32_1 = arith.constant 0 : i32
    return %c0_i32, %c0_i32_0 : i32, i32
  }
  func.func @transform_2(%arg0: i32) -> (i32, i32) {
    %c0_i32 = arith.constant 0 : i32
    %c0_i32_0 = arith.constant 0 : i32
    %c0_i32_1 = arith.constant 0 : i32
    return %c0_i32, %c0_i32_0 : i32, i32
  }
  func.func @transform_3(%arg0: i32) -> (i32, i32) {
    %c0_i32 = arith.constant 0 : i32
    %c0_i32_0 = arith.constant 0 : i32
    return %arg0, %c0_i32 : i32, i32
  }
  func.func @transform_4(%arg0: i32) -> (i32, i32) {
    %c0_i32 = arith.constant 0 : i32
    %c0_i32_0 = arith.constant 0 : i32
    return %arg0, %c0_i32 : i32, i32
  }
}

module attributes {stable_mosaic.version = 11 : i64} {
  func.func @_layernorm_kernel(%arg0: i32, %arg1: memref<10x16xf32, #tpu.memory_space<vmem>>, %arg2: memref<1x16xf32, #tpu.memory_space<vmem>>, %arg3: memref<1x16xf32, #tpu.memory_space<vmem>>, %arg4: memref<10x16xf32, #tpu.memory_space<vmem>>) attributes {dimension_semantics = [#tpu.dimension_semantics<parallel>], iteration_bounds = array<i64: 1>, scalar_prefetch = 0 : i64, scratch_operands = 0 : i64, tpu.core_type = #tpu.core_type<tc>, window_params = [{transform_indices = @transform_0, window_bounds = array<i64: 10, 16>}, {pipeline_mode = #tpu.pipeline_mode<synchronous>, transform_indices = @transform_1, window_bounds = array<i64: 1, 16>}, {pipeline_mode = #tpu.pipeline_mode<synchronous>, transform_indices = @transform_2, window_bounds = array<i64: 1, 16>}, {transform_indices = @transform_3, window_bounds = array<i64: 10, 16>}]} {
    %c0 = arith.constant 0 : index
    %c0_0 = arith.constant 0 : index
    %0 = vector.load %arg1[%c0, %c0_0] : memref<10x16xf32, #tpu.memory_space<vmem>>, vector<10x16xf32>
    %c0_1 = arith.constant 0 : index
    %c0_2 = arith.constant 0 : index
    %1 = vector.load %arg2[%c0_1, %c0_2] : memref<1x16xf32, #tpu.memory_space<vmem>>, vector<1x16xf32>
    %c0_3 = arith.constant 0 : index
    %c0_4 = arith.constant 0 : index
    %2 = vector.load %arg3[%c0_3, %c0_4] : memref<1x16xf32, #tpu.memory_space<vmem>>, vector<1x16xf32>
    %cst = arith.constant dense<0.000000e+00> : vector<10xf32>
    %3 = vector.multi_reduction <add>, %0, %cst [1] : vector<10x16xf32> to vector<10xf32>
    %4 = vector.shape_cast %3 : vector<10xf32> to vector<10x1xf32>
    %cst_5 = arith.constant 1.600000e+01 : f32
    %5 = vector.broadcast %cst_5 : f32 to vector<10x1xf32>
    %6 = arith.divf %4, %5 : vector<10x1xf32>
    %7 = vector.broadcast %6 : vector<10x1xf32> to vector<10x16xf32>
    %8 = arith.subf %0, %7 : vector<10x16xf32>
    %9 = arith.mulf %8, %8 : vector<10x16xf32>
    %cst_6 = arith.constant dense<0.000000e+00> : vector<10xf32>
    %10 = vector.multi_reduction <add>, %9, %cst_6 [1] : vector<10x16xf32> to vector<10xf32>
    %11 = vector.shape_cast %10 : vector<10xf32> to vector<10x1xf32>
    %cst_7 = arith.constant 1.600000e+01 : f32
    %12 = vector.broadcast %cst_7 : f32 to vector<10x1xf32>
    %13 = arith.divf %11, %12 : vector<10x1xf32>
    %cst_8 = arith.constant 9.99999974E-6 : f32
    %14 = vector.broadcast %cst_8 : f32 to vector<10x1xf32>
    %15 = arith.addf %13, %14 : vector<10x1xf32>
    %16 = math.rsqrt %15 : vector<10x1xf32>
    %17 = vector.broadcast %16 : vector<10x1xf32> to vector<10x16xf32>
    %18 = arith.mulf %8, %17 : vector<10x16xf32>
    %19 = vector.broadcast %1 : vector<1x16xf32> to vector<10x16xf32>
    %20 = arith.mulf %18, %19 : vector<10x16xf32>
    %21 = vector.broadcast %2 : vector<1x16xf32> to vector<10x16xf32>
    %22 = arith.addf %20, %21 : vector<10x16xf32>
    %c0_9 = arith.constant 0 : index
    %c0_10 = arith.constant 0 : index
    %23 = vector.load %arg4[%c0_9, %c0_10] : memref<10x16xf32, #tpu.memory_space<vmem>>, vector<10x16xf32>
    tpu.vector_store %arg4[%c0_9, %c0_10], %22 {strides = array<i32>} : memref<10x16xf32, #tpu.memory_space<vmem>>, vector<10x16xf32>,
    return
  }
  func.func @transform_0(%arg0: i32) -> (i32, i32) {
    %c0_i32 = arith.constant 0 : i32
    %c0_i32_0 = arith.constant 0 : i32
    return %arg0, %c0_i32 : i32, i32
  }
  func.func @transform_1(%arg0: i32) -> (i32, i32) {
    %c0_i32 = arith.constant 0 : i32
    %c0_i32_0 = arith.constant 0 : i32
    %c0_i32_1 = arith.constant 0 : i32
    return %c0_i32, %c0_i32_0 : i32, i32
  }
  func.func @transform_2(%arg0: i32) -> (i32, i32) {
    %c0_i32 = arith.constant 0 : i32
    %c0_i32_0 = arith.constant 0 : i32
    %c0_i32_1 = arith.constant 0 : i32
    return %c0_i32, %c0_i32_0 : i32, i32
  }
  func.func @transform_3(%arg0: i32) -> (i32, i32) {
    %c0_i32 = arith.constant 0 : i32
    %c0_i32_0 = arith.constant 0 : i32
    return %arg0, %c0_i32 : i32, i32
  }
}

module attributes {stable_mosaic.version = 11 : i64} {
  func.func @_mlp_block_kernel(%arg0: i32, %arg1: memref<10x16xf32, #tpu.memory_space<vmem>>, %arg2: memref<1x16xf32, #tpu.memory_space<vmem>>, %arg3: memref<1x16xf32, #tpu.memory_space<vmem>>, %arg4: memref<16x64xbf16, #tpu.memory_space<vmem>>, %arg5: memref<1x64xf32, #tpu.memory_space<vmem>>, %arg6: memref<64x16xbf16, #tpu.memory_space<vmem>>, %arg7: memref<1x16xf32, #tpu.memory_space<vmem>>, %arg8: memref<10x16xf32, #tpu.memory_space<vmem>>) attributes {dimension_semantics = [#tpu.dimension_semantics<parallel>], iteration_bounds = array<i64: 1>, scalar_prefetch = 0 : i64, scratch_operands = 0 : i64, tpu.core_type = #tpu.core_type<tc>, window_params = [{transform_indices = @transform_0, window_bounds = array<i64: 10, 16>}, {pipeline_mode = #tpu.pipeline_mode<synchronous>, transform_indices = @transform_1, window_bounds = array<i64: 1, 16>}, {pipeline_mode = #tpu.pipeline_mode<synchronous>, transform_indices = @transform_2, window_bounds = array<i64: 1, 16>}, {pipeline_mode = #tpu.pipeline_mode<synchronous>, transform_indices = @transform_3, window_bounds = array<i64: 16, 64>}, {pipeline_mode = #tpu.pipeline_mode<synchronous>, transform_indices = @transform_4, window_bounds = array<i64: 1, 64>}, {pipeline_mode = #tpu.pipeline_mode<synchronous>, transform_indices = @transform_5, window_bounds = array<i64: 64, 16>}, {pipeline_mode = #tpu.pipeline_mode<synchronous>, transform_indices = @transform_6, window_bounds = array<i64: 1, 16>}, {transform_indices = @transform_7, window_bounds = array<i64: 10, 16>}]} {
    %c0 = arith.constant 0 : index
    %c0_0 = arith.constant 0 : index
    %0 = vector.load %arg1[%c0, %c0_0] : memref<10x16xf32, #tpu.memory_space<vmem>>, vector<10x16xf32>
    %c0_1 = arith.constant 0 : index
    %c0_2 = arith.constant 0 : index
    %1 = vector.load %arg2[%c0_1, %c0_2] : memref<1x16xf32, #tpu.memory_space<vmem>>, vector<1x16xf32>
    %c0_3 = arith.constant 0 : index
    %c0_4 = arith.constant 0 : index
    %2 = vector.load %arg3[%c0_3, %c0_4] : memref<1x16xf32, #tpu.memory_space<vmem>>, vector<1x16xf32>
    %cst = arith.constant dense<0.000000e+00> : vector<10xf32>
    %3 = vector.multi_reduction <add>, %0, %cst [1] : vector<10x16xf32> to vector<10xf32>
    %4 = vector.shape_cast %3 : vector<10xf32> to vector<10x1xf32>
    %cst_5 = arith.constant 1.600000e+01 : f32
    %5 = vector.broadcast %cst_5 : f32 to vector<10x1xf32>
    %6 = arith.divf %4, %5 : vector<10x1xf32>
    %7 = vector.broadcast %6 : vector<10x1xf32> to vector<10x16xf32>
    %8 = arith.subf %0, %7 : vector<10x16xf32>
    %9 = arith.mulf %8, %8 : vector<10x16xf32>
    %cst_6 = arith.constant dense<0.000000e+00> : vector<10xf32>
    %10 = vector.multi_reduction <add>, %9, %cst_6 [1] : vector<10x16xf32> to vector<10xf32>
    %11 = vector.shape_cast %10 : vector<10xf32> to vector<10x1xf32>
    %cst_7 = arith.constant 1.600000e+01 : f32
    %12 = vector.broadcast %cst_7 : f32 to vector<10x1xf32>
    %13 = arith.divf %11, %12 : vector<10x1xf32>
    %cst_8 = arith.constant 9.99999974E-6 : f32
    %14 = vector.broadcast %cst_8 : f32 to vector<10x1xf32>
    %15 = arith.addf %13, %14 : vector<10x1xf32>
    %16 = math.rsqrt %15 : vector<10x1xf32>
    %17 = vector.broadcast %16 : vector<10x1xf32> to vector<10x16xf32>
    %18 = arith.mulf %8, %17 : vector<10x16xf32>
    %19 = vector.broadcast %1 : vector<1x16xf32> to vector<10x16xf32>
    %20 = arith.mulf %18, %19 : vector<10x16xf32>
    %21 = vector.broadcast %2 : vector<1x16xf32> to vector<10x16xf32>
    %22 = arith.addf %20, %21 : vector<10x16xf32>
    %23 = arith.truncf %22 : vector<10x16xf32> to vector<10x16xbf16>
    %c0_9 = arith.constant 0 : index
    %c0_10 = arith.constant 0 : index
    %24 = vector.load %arg4[%c0_9, %c0_10] : memref<16x64xbf16, #tpu.memory_space<vmem>>, vector<16x64xbf16>
    %cst_11 = arith.constant dense<0.000000e+00> : vector<10x64xf32>
    %25 = tpu.matmul %23, %24, %cst_11 {dimension_numbers = #tpu.dot_dimension_numbers<[1], [0], [0], [1], [0, 0, 1, 1], [], []>} : vector<10x16xbf16>, vector<16x64xbf16>, vector<10x64xf32> -> vector<10x64xf32>
    %c0_12 = arith.constant 0 : index
    %c0_13 = arith.constant 0 : index
    %26 = vector.load %arg5[%c0_12, %c0_13] : memref<1x64xf32, #tpu.memory_space<vmem>>, vector<1x64xf32>
    %27 = vector.broadcast %26 : vector<1x64xf32> to vector<10x64xf32>
    %28 = arith.addf %25, %27 : vector<10x64xf32>
    %cst_14 = arith.constant 5.000000e-01 : f32
    %29 = vector.broadcast %cst_14 : f32 to vector<10x64xf32>
    %30 = arith.mulf %29, %28 : vector<10x64xf32>
    %cst_15 = arith.constant 0.707106769 : f32
    %31 = vector.broadcast %cst_15 : f32 to vector<10x64xf32>
    %32 = arith.mulf %28, %31 : vector<10x64xf32>
    %cst_16 = arith.constant 0.000000e+00 : f32
    %33 = vector.broadcast %cst_16 : f32 to vector<10x64xf32>
    %34 = arith.cmpf oge, %32, %33 : vector<10x64xf32>
    %cst_17 = arith.constant 1.000000e+00 : f32
    %cst_18 = arith.constant -1.000000e+00 : f32
    %35 = vector.broadcast %cst_17 : f32 to vector<10x64xf32>
    %36 = vector.broadcast %cst_18 : f32 to vector<10x64xf32>
    %37 = arith.select %34, %35, %36 : vector<10x64xi1>, vector<10x64xf32>
    %38 = math.absf %32 : vector<10x64xf32>
    %cst_19 = arith.constant 0.327591091 : f32
    %39 = vector.broadcast %cst_19 : f32 to vector<10x64xf32>
    %40 = arith.mulf %39, %38 : vector<10x64xf32>
    %cst_20 = arith.constant 1.000000e+00 : f32
    %41 = vector.broadcast %cst_20 : f32 to vector<10x64xf32>
    %42 = arith.addf %41, %40 : vector<10x64xf32>
    %cst_21 = arith.constant 1.000000e+00 : f32
    %43 = vector.broadcast %cst_21 : f32 to vector<10x64xf32>
    %44 = arith.divf %43, %42 : vector<10x64xf32>
    %cst_22 = arith.constant 1.06140542 : f32
    %45 = vector.broadcast %cst_22 : f32 to vector<10x64xf32>
    %46 = arith.mulf %45, %44 : vector<10x64xf32>
    %cst_23 = arith.constant -1.45315206 : f32
    %47 = vector.broadcast %cst_23 : f32 to vector<10x64xf32>
    %48 = arith.addf %46, %47 : vector<10x64xf32>
    %49 = arith.mulf %48, %44 : vector<10x64xf32>
    %cst_24 = arith.constant 1.42141378 : f32
    %50 = vector.broadcast %cst_24 : f32 to vector<10x64xf32>
    %51 = arith.addf %49, %50 : vector<10x64xf32>
    %52 = arith.mulf %51, %44 : vector<10x64xf32>
    %cst_25 = arith.constant -0.284496725 : f32
    %53 = vector.broadcast %cst_25 : f32 to vector<10x64xf32>
    %54 = arith.addf %52, %53 : vector<10x64xf32>
    %55 = arith.mulf %54, %44 : vector<10x64xf32>
    %cst_26 = arith.constant 0.254829586 : f32
    %56 = vector.broadcast %cst_26 : f32 to vector<10x64xf32>
    %57 = arith.addf %55, %56 : vector<10x64xf32>
    %58 = arith.mulf %57, %44 : vector<10x64xf32>
    %cst_27 = arith.constant 0.000000e+00 : f32
    %59 = vector.broadcast %cst_27 : f32 to vector<10x64xf32>
    %60 = arith.subf %59, %38 : vector<10x64xf32>
    %61 = arith.mulf %60, %38 : vector<10x64xf32>
    %62 = math.exp %61 : vector<10x64xf32>
    %63 = arith.mulf %58, %62 : vector<10x64xf32>
    %cst_28 = arith.constant 1.000000e+00 : f32
    %64 = vector.broadcast %cst_28 : f32 to vector<10x64xf32>
    %65 = arith.subf %64, %63 : vector<10x64xf32>
    %66 = arith.mulf %37, %65 : vector<10x64xf32>
    %cst_29 = arith.constant 1.000000e+00 : f32
    %67 = vector.broadcast %cst_29 : f32 to vector<10x64xf32>
    %68 = arith.addf %67, %66 : vector<10x64xf32>
    %69 = arith.mulf %30, %68 : vector<10x64xf32>
    %70 = arith.truncf %69 : vector<10x64xf32> to vector<10x64xbf16>
    %c0_30 = arith.constant 0 : index
    %c0_31 = arith.constant 0 : index
    %71 = vector.load %arg6[%c0_30, %c0_31] : memref<64x16xbf16, #tpu.memory_space<vmem>>, vector<64x16xbf16>
    %cst_32 = arith.constant dense<0.000000e+00> : vector<10x16xf32>
    %72 = tpu.matmul %70, %71, %cst_32 {dimension_numbers = #tpu.dot_dimension_numbers<[1], [0], [0], [1], [0, 0, 1, 1], [], []>} : vector<10x64xbf16>, vector<64x16xbf16>, vector<10x16xf32> -> vector<10x16xf32>
    %73 = arith.addf %0, %72 : vector<10x16xf32>
    %c0_33 = arith.constant 0 : index
    %c0_34 = arith.constant 0 : index
    %74 = vector.load %arg7[%c0_33, %c0_34] : memref<1x16xf32, #tpu.memory_space<vmem>>, vector<1x16xf32>
    %75 = vector.broadcast %74 : vector<1x16xf32> to vector<10x16xf32>
    %76 = arith.addf %73, %75 : vector<10x16xf32>
    %c0_35 = arith.constant 0 : index
    %c0_36 = arith.constant 0 : index
    %77 = vector.load %arg8[%c0_35, %c0_36] : memref<10x16xf32, #tpu.memory_space<vmem>>, vector<10x16xf32>
    tpu.vector_store %arg8[%c0_35, %c0_36], %76 {strides = array<i32>} : memref<10x16xf32, #tpu.memory_space<vmem>>, vector<10x16xf32>,
    return
  }
  func.func @transform_0(%arg0: i32) -> (i32, i32) {
    %c0_i32 = arith.constant 0 : i32
    %c0_i32_0 = arith.constant 0 : i32
    return %arg0, %c0_i32 : i32, i32
  }
  func.func @transform_1(%arg0: i32) -> (i32, i32) {
    %c0_i32 = arith.constant 0 : i32
    %c0_i32_0 = arith.constant 0 : i32
    %c0_i32_1 = arith.constant 0 : i32
    return %c0_i32, %c0_i32_0 : i32, i32
  }
  func.func @transform_2(%arg0: i32) -> (i32, i32) {
    %c0_i32 = arith.constant 0 : i32
    %c0_i32_0 = arith.constant 0 : i32
    %c0_i32_1 = arith.constant 0 : i32
    return %c0_i32, %c0_i32_0 : i32, i32
  }
  func.func @transform_3(%arg0: i32) -> (i32, i32) {
    %c0_i32 = arith.constant 0 : i32
    %c0_i32_0 = arith.constant 0 : i32
    %c0_i32_1 = arith.constant 0 : i32
    return %c0_i32, %c0_i32_0 : i32, i32
  }
  func.func @transform_4(%arg0: i32) -> (i32, i32) {
    %c0_i32 = arith.constant 0 : i32
    %c0_i32_0 = arith.constant 0 : i32
    %c0_i32_1 = arith.constant 0 : i32
    return %c0_i32, %c0_i32_0 : i32, i32
  }
  func.func @transform_5(%arg0: i32) -> (i32, i32) {
    %c0_i32 = arith.constant 0 : i32
    %c0_i32_0 = arith.constant 0 : i32
    %c0_i32_1 = arith.constant 0 : i32
    return %c0_i32, %c0_i32_0 : i32, i32
  }
  func.func @transform_6(%arg0: i32) -> (i32, i32) {
    %c0_i32 = arith.constant 0 : i32
    %c0_i32_0 = arith.constant 0 : i32
    %c0_i32_1 = arith.constant 0 : i32
    return %c0_i32, %c0_i32_0 : i32, i32
  }
  func.func @transform_7(%arg0: i32) -> (i32, i32) {
    %c0_i32 = arith.constant 0 : i32
    %c0_i32_0 = arith.constant 0 : i32
    return %arg0, %c0_i32 : i32, i32
  }
}

module attributes {stable_mosaic.version = 11 : i64} {
  func.func @_head_kernel(%arg0: i32, %arg1: memref<2x16xf32, #tpu.memory_space<vmem>>, %arg2: memref<1x16xf32, #tpu.memory_space<vmem>>, %arg3: memref<1x16xf32, #tpu.memory_space<vmem>>, %arg4: memref<16x32xbf16, #tpu.memory_space<vmem>>, %arg5: memref<1x32xf32, #tpu.memory_space<vmem>>, %arg6: memref<32x10xbf16, #tpu.memory_space<vmem>>, %arg7: memref<1x10xf32, #tpu.memory_space<vmem>>, %arg8: memref<2x10xf32, #tpu.memory_space<vmem>>) attributes {dimension_semantics = [#tpu.dimension_semantics<arbitrary>], iteration_bounds = array<i64: 1>, scalar_prefetch = 0 : i64, scratch_operands = 0 : i64, tpu.core_type = #tpu.core_type<tc>, window_params = [{pipeline_mode = #tpu.pipeline_mode<synchronous>, transform_indices = @transform_0, window_bounds = array<i64: 2, 16>}, {pipeline_mode = #tpu.pipeline_mode<synchronous>, transform_indices = @transform_1, window_bounds = array<i64: 1, 16>}, {pipeline_mode = #tpu.pipeline_mode<synchronous>, transform_indices = @transform_2, window_bounds = array<i64: 1, 16>}, {pipeline_mode = #tpu.pipeline_mode<synchronous>, transform_indices = @transform_3, window_bounds = array<i64: 16, 32>}, {pipeline_mode = #tpu.pipeline_mode<synchronous>, transform_indices = @transform_4, window_bounds = array<i64: 1, 32>}, {pipeline_mode = #tpu.pipeline_mode<synchronous>, transform_indices = @transform_5, window_bounds = array<i64: 32, 10>}, {pipeline_mode = #tpu.pipeline_mode<synchronous>, transform_indices = @transform_6, window_bounds = array<i64: 1, 10>}, {pipeline_mode = #tpu.pipeline_mode<synchronous>, transform_indices = @transform_7, window_bounds = array<i64: 2, 10>}]} {
    %c0 = arith.constant 0 : index
    %c0_0 = arith.constant 0 : index
    %0 = vector.load %arg1[%c0, %c0_0] : memref<2x16xf32, #tpu.memory_space<vmem>>, vector<2x16xf32>
    %c0_1 = arith.constant 0 : index
    %c0_2 = arith.constant 0 : index
    %1 = vector.load %arg2[%c0_1, %c0_2] : memref<1x16xf32, #tpu.memory_space<vmem>>, vector<1x16xf32>
    %c0_3 = arith.constant 0 : index
    %c0_4 = arith.constant 0 : index
    %2 = vector.load %arg3[%c0_3, %c0_4] : memref<1x16xf32, #tpu.memory_space<vmem>>, vector<1x16xf32>
    %cst = arith.constant dense<0.000000e+00> : vector<2xf32>
    %3 = vector.multi_reduction <add>, %0, %cst [1] : vector<2x16xf32> to vector<2xf32>
    %4 = vector.shape_cast %3 : vector<2xf32> to vector<2x1xf32>
    %cst_5 = arith.constant 1.600000e+01 : f32
    %5 = vector.broadcast %cst_5 : f32 to vector<2x1xf32>
    %6 = arith.divf %4, %5 : vector<2x1xf32>
    %7 = vector.broadcast %6 : vector<2x1xf32> to vector<2x16xf32>
    %8 = arith.subf %0, %7 : vector<2x16xf32>
    %9 = arith.mulf %8, %8 : vector<2x16xf32>
    %cst_6 = arith.constant dense<0.000000e+00> : vector<2xf32>
    %10 = vector.multi_reduction <add>, %9, %cst_6 [1] : vector<2x16xf32> to vector<2xf32>
    %11 = vector.shape_cast %10 : vector<2xf32> to vector<2x1xf32>
    %cst_7 = arith.constant 1.600000e+01 : f32
    %12 = vector.broadcast %cst_7 : f32 to vector<2x1xf32>
    %13 = arith.divf %11, %12 : vector<2x1xf32>
    %cst_8 = arith.constant 9.99999974E-6 : f32
    %14 = vector.broadcast %cst_8 : f32 to vector<2x1xf32>
    %15 = arith.addf %13, %14 : vector<2x1xf32>
    %16 = math.rsqrt %15 : vector<2x1xf32>
    %17 = vector.broadcast %16 : vector<2x1xf32> to vector<2x16xf32>
    %18 = arith.mulf %8, %17 : vector<2x16xf32>
    %19 = vector.broadcast %1 : vector<1x16xf32> to vector<2x16xf32>
    %20 = arith.mulf %18, %19 : vector<2x16xf32>
    %21 = vector.broadcast %2 : vector<1x16xf32> to vector<2x16xf32>
    %22 = arith.addf %20, %21 : vector<2x16xf32>
    %23 = arith.truncf %22 : vector<2x16xf32> to vector<2x16xbf16>
    %c0_9 = arith.constant 0 : index
    %c0_10 = arith.constant 0 : index
    %24 = vector.load %arg4[%c0_9, %c0_10] : memref<16x32xbf16, #tpu.memory_space<vmem>>, vector<16x32xbf16>
    %cst_11 = arith.constant dense<0.000000e+00> : vector<2x32xf32>
    %25 = tpu.matmul %23, %24, %cst_11 {dimension_numbers = #tpu.dot_dimension_numbers<[1], [0], [0], [1], [0, 0, 1, 1], [], []>} : vector<2x16xbf16>, vector<16x32xbf16>, vector<2x32xf32> -> vector<2x32xf32>
    %c0_12 = arith.constant 0 : index
    %c0_13 = arith.constant 0 : index
    %26 = vector.load %arg5[%c0_12, %c0_13] : memref<1x32xf32, #tpu.memory_space<vmem>>, vector<1x32xf32>
    %27 = vector.broadcast %26 : vector<1x32xf32> to vector<2x32xf32>
    %28 = arith.addf %25, %27 : vector<2x32xf32>
    %29 = arith.truncf %28 : vector<2x32xf32> to vector<2x32xbf16>
    %c0_14 = arith.constant 0 : index
    %c0_15 = arith.constant 0 : index
    %30 = vector.load %arg6[%c0_14, %c0_15] : memref<32x10xbf16, #tpu.memory_space<vmem>>, vector<32x10xbf16>
    %cst_16 = arith.constant dense<0.000000e+00> : vector<2x10xf32>
    %31 = tpu.matmul %29, %30, %cst_16 {dimension_numbers = #tpu.dot_dimension_numbers<[1], [0], [0], [1], [0, 0, 1, 1], [], []>} : vector<2x32xbf16>, vector<32x10xbf16>, vector<2x10xf32> -> vector<2x10xf32>
    %c0_17 = arith.constant 0 : index
    %c0_18 = arith.constant 0 : index
    %32 = vector.load %arg7[%c0_17, %c0_18] : memref<1x10xf32, #tpu.memory_space<vmem>>, vector<1x10xf32>
    %33 = vector.broadcast %32 : vector<1x10xf32> to vector<2x10xf32>
    %34 = arith.addf %31, %33 : vector<2x10xf32>
    %cst_19 = arith.constant 5.000000e-01 : f32
    %35 = vector.broadcast %cst_19 : f32 to vector<2x10xf32>
    %36 = arith.mulf %35, %34 : vector<2x10xf32>
    %cst_20 = arith.constant 0.707106769 : f32
    %37 = vector.broadcast %cst_20 : f32 to vector<2x10xf32>
    %38 = arith.mulf %34, %37 : vector<2x10xf32>
    %cst_21 = arith.constant 0.000000e+00 : f32
    %39 = vector.broadcast %cst_21 : f32 to vector<2x10xf32>
    %40 = arith.cmpf oge, %38, %39 : vector<2x10xf32>
    %cst_22 = arith.constant 1.000000e+00 : f32
    %cst_23 = arith.constant -1.000000e+00 : f32
    %41 = vector.broadcast %cst_22 : f32 to vector<2x10xf32>
    %42 = vector.broadcast %cst_23 : f32 to vector<2x10xf32>
    %43 = arith.select %40, %41, %42 : vector<2x10xi1>, vector<2x10xf32>
    %44 = math.absf %38 : vector<2x10xf32>
    %cst_24 = arith.constant 0.327591091 : f32
    %45 = vector.broadcast %cst_24 : f32 to vector<2x10xf32>
    %46 = arith.mulf %45, %44 : vector<2x10xf32>
    %cst_25 = arith.constant 1.000000e+00 : f32
    %47 = vector.broadcast %cst_25 : f32 to vector<2x10xf32>
    %48 = arith.addf %47, %46 : vector<2x10xf32>
    %cst_26 = arith.constant 1.000000e+00 : f32
    %49 = vector.broadcast %cst_26 : f32 to vector<2x10xf32>
    %50 = arith.divf %49, %48 : vector<2x10xf32>
    %cst_27 = arith.constant 1.06140542 : f32
    %51 = vector.broadcast %cst_27 : f32 to vector<2x10xf32>
    %52 = arith.mulf %51, %50 : vector<2x10xf32>
    %cst_28 = arith.constant -1.45315206 : f32
    %53 = vector.broadcast %cst_28 : f32 to vector<2x10xf32>
    %54 = arith.addf %52, %53 : vector<2x10xf32>
    %55 = arith.mulf %54, %50 : vector<2x10xf32>
    %cst_29 = arith.constant 1.42141378 : f32
    %56 = vector.broadcast %cst_29 : f32 to vector<2x10xf32>
    %57 = arith.addf %55, %56 : vector<2x10xf32>
    %58 = arith.mulf %57, %50 : vector<2x10xf32>
    %cst_30 = arith.constant -0.284496725 : f32
    %59 = vector.broadcast %cst_30 : f32 to vector<2x10xf32>
    %60 = arith.addf %58, %59 : vector<2x10xf32>
    %61 = arith.mulf %60, %50 : vector<2x10xf32>
    %cst_31 = arith.constant 0.254829586 : f32
    %62 = vector.broadcast %cst_31 : f32 to vector<2x10xf32>
    %63 = arith.addf %61, %62 : vector<2x10xf32>
    %64 = arith.mulf %63, %50 : vector<2x10xf32>
    %cst_32 = arith.constant 0.000000e+00 : f32
    %65 = vector.broadcast %cst_32 : f32 to vector<2x10xf32>
    %66 = arith.subf %65, %44 : vector<2x10xf32>
    %67 = arith.mulf %66, %44 : vector<2x10xf32>
    %68 = math.exp %67 : vector<2x10xf32>
    %69 = arith.mulf %64, %68 : vector<2x10xf32>
    %cst_33 = arith.constant 1.000000e+00 : f32
    %70 = vector.broadcast %cst_33 : f32 to vector<2x10xf32>
    %71 = arith.subf %70, %69 : vector<2x10xf32>
    %72 = arith.mulf %43, %71 : vector<2x10xf32>
    %cst_34 = arith.constant 1.000000e+00 : f32
    %73 = vector.broadcast %cst_34 : f32 to vector<2x10xf32>
    %74 = arith.addf %73, %72 : vector<2x10xf32>
    %75 = arith.mulf %36, %74 : vector<2x10xf32>
    %c0_35 = arith.constant 0 : index
    %c0_36 = arith.constant 0 : index
    %76 = vector.load %arg8[%c0_35, %c0_36] : memref<2x10xf32, #tpu.memory_space<vmem>>, vector<2x10xf32>
    tpu.vector_store %arg8[%c0_35, %c0_36], %75 {strides = array<i32>} : memref<2x10xf32, #tpu.memory_space<vmem>>, vector<2x10xf32>,
    return
  }
  func.func @transform_0(%arg0: i32) -> (i32, i32) {
    %c0_i32 = arith.constant 0 : i32
    %c0_i32_0 = arith.constant 0 : i32
    %c0_i32_1 = arith.constant 0 : i32
    return %c0_i32, %c0_i32_0 : i32, i32
  }
  func.func @transform_1(%arg0: i32) -> (i32, i32) {
    %c0_i32 = arith.constant 0 : i32
    %c0_i32_0 = arith.constant 0 : i32
    %c0_i32_1 = arith.constant 0 : i32
    return %c0_i32, %c0_i32_0 : i32, i32
  }
  func.func @transform_2(%arg0: i32) -> (i32, i32) {
    %c0_i32 = arith.constant 0 : i32
    %c0_i32_0 = arith.constant 0 : i32
    %c0_i32_1 = arith.constant 0 : i32
    return %c0_i32, %c0_i32_0 : i32, i32
  }
  func.func @transform_3(%arg0: i32) -> (i32, i32) {
    %c0_i32 = arith.constant 0 : i32
    %c0_i32_0 = arith.constant 0 : i32
    %c0_i32_1 = arith.constant 0 : i32
    return %c0_i32, %c0_i32_0 : i32, i32
  }
  func.func @transform_4(%arg0: i32) -> (i32, i32) {
    %c0_i32 = arith.constant 0 : i32
    %c0_i32_0 = arith.constant 0 : i32
    %c0_i32_1 = arith.constant 0 : i32
    return %c0_i32, %c0_i32_0 : i32, i32
  }
  func.func @transform_5(%arg0: i32) -> (i32, i32) {
    %c0_i32 = arith.constant 0 : i32
    %c0_i32_0 = arith.constant 0 : i32
    %c0_i32_1 = arith.constant 0 : i32
    return %c0_i32, %c0_i32_0 : i32, i32
  }
  func.func @transform_6(%arg0: i32) -> (i32, i32) {
    %c0_i32 = arith.constant 0 : i32
    %c0_i32_0 = arith.constant 0 : i32
    %c0_i32_1 = arith.constant 0 : i32
    return %c0_i32, %c0_i32_0 : i32, i32
  }
  func.func @transform_7(%arg0: i32) -> (i32, i32) {
    %c0_i32 = arith.constant 0 : i32
    %c0_i32_0 = arith.constant 0 : i32
    %c0_i32_1 = arith.constant 0 : i32
    return %c0_i32, %c0_i32_0 : i32, i32
  }
}

</mosaic_0001>

<llo_original>
// kernel: _lambda_.13
$region0: #{_lambda_.13}
  #allocation0 [shape = 'u32[]', space=smem, size = 0x4, offset = 0x4, fixed_abs, tag = 'smem constant byte address 0x4 - core index']
  #allocation1 [shape = 'u32[144,128]{1,0:T(1,128)}', space=vmem, size = 0x12000, scoped, tag = 'internal scratch']
  #allocation2 [shape = 'f32[10,16]{1,0:T(8,128)}', space=vmem, size = 0x2000, scoped, tag = 'scratch operand']
  %s0 = inlined_call_operand.hbm [shape: f32[10,16], index: 0, kind: input, shape index: {}]
  %s1 = inlined_call_operand.hbm [shape: bf16[16,16], index: 1, kind: input, shape index: {}]
  %s2 = inlined_call_operand.hbm [shape: f32[1,16], index: 2, kind: input, shape index: {}]
  %s3 = inlined_call_operand.hbm [shape: f32[10,16], index: 3, kind: output, shape index: {}]
  %s4 = sld [smem:[#allocation0]]
  $region42: #{_lambda_.13} parent=0
    _
  %s6 = ssub.s32 1, %s4
  %s7 = scalar_select 0, %s6, %s4
  $region1: #{_lambda_.13} parent=0
    #allocation3 [shape = 'u8[8192]{0}', space=vmem, size = 0x2000, scoped, tag = 'input window, operand 0, single buffered']
    #allocation4 [shape = 's32[1]{0}', space=sflag, size = 0x4, scoped, tag = 'scoped memory for _lambda_.13']
    #allocation5 [shape = 's32[1]{0}', space=sflag, size = 0x4, scoped, tag = 'scoped memory for _lambda_.13']
    #allocation6 [shape = 'u8[4096]{0}', space=vmem, size = 0x1000, scoped, tag = 'input window, operand 1, single buffered']
    #allocation7 [shape = 's32[1]{0}', space=sflag, size = 0x4, scoped, tag = 'scoped memory for _lambda_.13']
    #allocation8 [shape = 'u8[512]{0}', space=vmem, size = 0x400, scoped, tag = 'input window, operand 2, single buffered']
    #allocation9 [shape = 'u8[8192]{0}', space=vmem, size = 0x2000, scoped, tag = 'output window, operand 0, single buffered']
    %8 = vsyncpa [#allocation4], 0
    %9 = vsyncpa [#allocation7], 0
    %10 = vsyncpa [#allocation5], 0
    // Predicated region
    $region2: #{_lambda_.13} parent=1 // pred_check
      _
    $region3: #{_lambda_.13} parent=1 // pred_check_branch
      %12 = sbr.rel (0) target = $region5
    $region4: #{_lambda_.13} parent=1 // pred_region
      %s14 = ssub.s32 256, 256
      %15 = vsyncadd [#allocation4], %s14
      %s16 = sshll.u32 [#allocation3], 4
      %s17 = int_to_ptr.vmem [resolvable:$true] %s16
      %22 = dma.hbm_to_vmem [thread:$0]  %s0, 256, %s17, [#allocation4], 128, 128, 8
    $region5: #{_lambda_.13} parent=1 // pred_fallthru
      _
    // Predicated region
    $region6: #{_lambda_.13} parent=1 // pred_check
      _
    $region7: #{_lambda_.13} parent=1 // pred_check_branch
      %24 = sbr.rel (0) target = $region9
    $region8: #{_lambda_.13} parent=1 // pred_region
      %s26 = ssub.s32 128, 128
      %27 = vsyncadd [#allocation7], %s26
      %s28 = sshll.u32 [#allocation6], 4
      %s29 = int_to_ptr.vmem [resolvable:$true] %s28
      %34 = dma.hbm_to_vmem [thread:$0]  %s1, 128, %s29, [#allocation7], 64, 64, 4
    $region9: #{_lambda_.13} parent=1 // pred_fallthru
      _
    // Predicated region
    $region10: #{_lambda_.13} parent=1 // pred_check
      _
    $region11: #{_lambda_.13} parent=1 // pred_check_branch
      %36 = sbr.rel (0) target = $region13
    $region12: #{_lambda_.13} parent=1 // pred_region
      %s38 = ssub.s32 16, 16
      %39 = vsyncadd [#allocation7], %s38
      %s41 = sshll.u32 [#allocation8], 4
      %s42 = int_to_ptr.vmem [resolvable:$true] %s41
      %44 = dma.hbm_to_vmem [thread:$0]  %s2, 16, %s42, [#allocation7]
    $region13: #{_lambda_.13} parent=1 // pred_fallthru
      _
    // Predicated region
    $region14: #{_lambda_.13} parent=1 // pred_check
      _
    $region15: #{_lambda_.13} parent=1 // pred_check_branch
      %46 = sbr.rel (0) target = $region17
    $region16: #{_lambda_.13} parent=1 // pred_region
      %47 = dma.done [#allocation4], 256
    $region17: #{_lambda_.13} parent=1 // pred_fallthru
      _
    // Predicated region
    $region18: #{_lambda_.13} parent=1 // pred_check
      _
    $region19: #{_lambda_.13} parent=1 // pred_check_branch
      %49 = sbr.rel (0) target = $region21
    $region20: #{_lambda_.13} parent=1 // pred_region
      %50 = dma.done [#allocation7], 128
    $region21: #{_lambda_.13} parent=1 // pred_fallthru
      _
    // Predicated region
    $region22: #{_lambda_.13} parent=1 // pred_check
      _
    $region23: #{_lambda_.13} parent=1 // pred_check_branch
      %52 = sbr.rel (0) target = $region25
    $region24: #{_lambda_.13} parent=1 // pred_region
      %53 = dma.done [#allocation7], 16
    $region25: #{_lambda_.13} parent=1 // pred_fallthru
      _
    %p55 = scmp.eq.s32.totalorder 0, 0
    // Predicated region
    $region26: #{_lambda_.13} parent=1 // pred_check
      %p56 = pneg %p55
    $region27: #{_lambda_.13} parent=1 // pred_check_branch
      %58 = sbr.rel (%p56) target = $region29
    $region28: #{_lambda_.13} parent=1 // pred_region
      %vm59 = vcmask 130048
      %60 = vst.msk [vmem:[#allocation2] sm:$0xff] %vm59, 0.0
      %vm61 = vcmask 123904
      %62 = vst.msk [vmem:[#allocation2 + $0x8] sm:$0x3] %vm61, 0.0
    $region29: #{_lambda_.13} parent=1 // pred_fallthru
      _
    %v63 = vld [vmem:[#allocation2] sm:$0xff]
    %v64 = vld [vmem:[#allocation2 + $0x8] sm:$0x3]
    %v65 = vld [vmem:[#allocation3] sm:$0xff]
    %v66 = vld [vmem:[#allocation3 + $0x8] sm:$0x3]
    %v67 = vpack.c.bf16 %v66, %v65
    %v68 = vld [vmem:[#allocation6] sm:$0xf]
    %v69 = vld [vmem:[#allocation6 + $0x4] sm:$0xf]
    %v72 = vunpack.c.l.b16 %v68
    %v73 = vunpack.c.l.b16 %v69
    %v74 = vpack.c.b16 %v73, %v72
    %vm76 = vcmask 130048
    %v78 = vsel %vm76, %v67, 0
    %80 = vmatprep.subr.bf16.mxu0 0
    %81 = vmatpush1.bf16.msra.mxu0 %v74
    %82 = vmatprep.subr.bf16.mxu0 0
    %83 = vmatpush1.bf16.msra.mxu0 0
    %84 = vmatprep.subr.bf16.mxu0 0
    %85 = vmatpush1.bf16.msra.mxu0 0
    %86 = vmatprep.subr.bf16.mxu0 0
    %87 = vmatpush1.bf16.msra.mxu0 0
    %88 = vmatprep.subr.bf16.mxu0 0
    %89 = vmatpush1.bf16.msra.mxu0 0
    %90 = vmatprep.subr.bf16.mxu0 0
    %91 = vmatpush1.bf16.msra.mxu0 0
    %92 = vmatprep.subr.bf16.mxu0 0
    %93 = vmatpush1.bf16.msra.mxu0 0
    %94 = vmatprep.subr.bf16.mxu0 0
    %95 = vmatpush1.bf16.msra.mxu0 0
    %96 = vmatprep.subr.bf16.mxu0 0
    %97 = vmatpush1.bf16.msra.mxu0 0
    %98 = vmatprep.subr.bf16.mxu0 0
    %99 = vmatpush1.bf16.msra.mxu0 0
    %100 = vmatprep.subr.bf16.mxu0 0
    %101 = vmatpush1.bf16.msra.mxu0 0
    %102 = vmatprep.subr.bf16.mxu0 0
    %103 = vmatpush1.bf16.msra.mxu0 0
    %104 = vmatprep.subr.bf16.mxu0 0
    %105 = vmatpush1.bf16.msra.mxu0 0
    %106 = vmatprep.subr.bf16.mxu0 0
    %107 = vmatpush1.bf16.msra.mxu0 0
    %108 = vmatprep.subr.bf16.mxu0 0
    %109 = vmatpush1.bf16.msra.mxu0 0
    %110 = vmatprep.subr.bf16.mxu0 0
    %111 = vmatpush1.bf16.msra.mxu0 0
    %112 = vmatprep.mubr.bf16.mxu0 0
    %113 = vmatmul.mubr.bf16.gmra.mrb[0].mxu0 %v78
    %v114 = vpop.f32.mrb[0].mxu0
    %v115 = vadd.f32 0.0, %v114
    %v116 = vpop.f32.mrb[0].mxu0
    %v117 = vpop.f32.mrb[0].mxu0
    %v118 = vadd.f32 0.0, %v117
    %v119 = vpop.f32.mrb[0].mxu0
    %120 = vdwg.mxu0
    %v121 = vadd.f32 %v63, %v115
    %v122 = vadd.f32 %v64, %v118
    %123 = vst.msk [vmem:[#allocation2] sm:$0xff] %vm76, %v121
    %vm124 = vcmask 123904
    %125 = vst.msk [vmem:[#allocation2 + $0x8] sm:$0x3] %vm124, %v122
    // Predicated region
    $region30: #{_lambda_.13} parent=1 // pred_check
      %p126 = pneg %p55
    $region31: #{_lambda_.13} parent=1 // pred_check_branch
      %128 = sbr.rel (%p126) target = $region33
    $region32: #{_lambda_.13} parent=1 // pred_region
      %v129 = vld [vmem:[#allocation2] sm:$0xff]
      %v130 = vld [vmem:[#allocation2 + $0x8] sm:$0x3]
      %v131 = vld [vmem:[#allocation8] sm:$0x1]
      %v133 = vlaneseq
      %v134 = vshrl.u32 %v133, 7
      %v135 = vsub.s32 0, %v134
      %v136 = vrot.slane %v131, %v135
      %v138 = vadd.f32 %v129, %v136
      %v139 = vadd.f32 %v130, %v136
      %140 = vst.msk [vmem:[#allocation9] sm:$0xff] %vm76, %v138
      %141 = vst.msk [vmem:[#allocation9 + $0x8] sm:$0x3] %vm124, %v139
    $region33: #{_lambda_.13} parent=1 // pred_fallthru
      _
    // Predicated region
    $region34: #{_lambda_.13} parent=1 // pred_check
      _
    $region35: #{_lambda_.13} parent=1 // pred_check_branch
      %143 = sbr.rel (0) target = $region37
    $region36: #{_lambda_.13} parent=1 // pred_region
      %s145 = ssub.s32 256, 256
      %146 = vsyncadd [#allocation5], %s145
      %s147 = sshll.u32 [#allocation9], 4
      %s148 = int_to_ptr.vmem [resolvable:$true] %s147
      %153 = dma.vmem_to_hbm [thread:$0]  %s148, 256, %s3, [#allocation5], 128, 128, 8
    $region37: #{_lambda_.13} parent=1 // pred_fallthru
      _
    // Predicated region
    $region38: #{_lambda_.13} parent=1 // pred_check
      _
    $region39: #{_lambda_.13} parent=1 // pred_check_branch
      %155 = sbr.rel (0) target = $region41
    $region40: #{_lambda_.13} parent=1 // pred_region
      %156 = dma.done [#allocation5], 256
    $region41: #{_lambda_.13} parent=1 // pred_fallthru
      _
    %157 = vsyncpa [#allocation4], 1
    %158 = vsyncpa [#allocation7], 1
    %159 = vsyncpa [#allocation5], 1

// kernel: _lambda_.14
$region0: #{_lambda_.14}
  #allocation0 [shape = 'u32[]', space=smem, size = 0x4, offset = 0x4, fixed_abs, tag = 'smem constant byte address 0x4 - core index']
  #allocation1 [shape = 'u32[144,128]{1,0:T(1,128)}', space=vmem, size = 0x12000, scoped, tag = 'internal scratch']
  %s0 = inlined_call_operand.hbm [shape: f32[10,16], index: 0, kind: input, shape index: {}]
  %s1 = inlined_call_operand.hbm [shape: f32[1,16], index: 1, kind: input, shape index: {}]
  %s2 = inlined_call_operand.hbm [shape: f32[1,16], index: 2, kind: input, shape index: {}]
  %s3 = inlined_call_operand.hbm [shape: bf16[16,48], index: 3, kind: input, shape index: {}]
  %s4 = inlined_call_operand.hbm [shape: f32[1,48], index: 4, kind: input, shape index: {}]
  %s5 = inlined_call_operand.hbm [shape: f32[10,48], index: 5, kind: output, shape index: {}]
  %s6 = sld [smem:[#allocation0]]
  $region50: #{_lambda_.14} parent=0
    _
  %s8 = ssub.s32 1, %s6
  %s9 = scalar_select 0, %s8, %s6
  $region1: #{_lambda_.14} parent=0
    #allocation2 [shape = 'u8[8192]{0}', space=vmem, size = 0x2000, scoped, tag = 'input window, operand 0, single buffered']
    #allocation3 [shape = 's32[1]{0}', space=sflag, size = 0x4, scoped, tag = 'scoped memory for _lambda_.14']
    #allocation4 [shape = 's32[1]{0}', space=sflag, size = 0x4, scoped, tag = 'scoped memory for _lambda_.14']
    #allocation5 [shape = 'u8[512]{0}', space=vmem, size = 0x400, scoped, tag = 'input window, operand 1, single buffered']
    #allocation6 [shape = 's32[1]{0}', space=sflag, size = 0x4, scoped, tag = 'scoped memory for _lambda_.14']
    #allocation7 [shape = 'u8[512]{0}', space=vmem, size = 0x400, scoped, tag = 'input window, operand 2, single buffered']
    #allocation8 [shape = 'u8[4096]{0}', space=vmem, size = 0x1000, scoped, tag = 'input window, operand 3, single buffered']
    #allocation9 [shape = 's32[1]{0}', space=sflag, size = 0x4, scoped, tag = 'scoped memory for _lambda_.14']
    #allocation10 [shape = 'u8[512]{0}', space=vmem, size = 0x400, scoped, tag = 'input window, operand 4, single buffered']
    #allocation11 [shape = 'u8[8192]{0}', space=vmem, size = 0x2000, scoped, tag = 'output window, operand 0, single buffered']
    %10 = vsyncpa [#allocation3], 0
    %11 = vsyncpa [#allocation6], 0
    %12 = vsyncpa [#allocation9], 0
    %13 = vsyncpa [#allocation4], 0
    // Predicated region
    $region2: #{_lambda_.14} parent=1 // pred_check
      _
    $region3: #{_lambda_.14} parent=1 // pred_check_branch
      %15 = sbr.rel (0) target = $region5
    $region4: #{_lambda_.14} parent=1 // pred_region
      %s17 = ssub.s32 256, 256
      %18 = vsyncadd [#allocation3], %s17
      %s19 = sshll.u32 [#allocation2], 4
      %s20 = int_to_ptr.vmem [resolvable:$true] %s19
      %25 = dma.hbm_to_vmem [thread:$0]  %s0, 256, %s20, [#allocation3], 128, 128, 8
    $region5: #{_lambda_.14} parent=1 // pred_fallthru
      _
    // Predicated region
    $region6: #{_lambda_.14} parent=1 // pred_check
      _
    $region7: #{_lambda_.14} parent=1 // pred_check_branch
      %27 = sbr.rel (0) target = $region9
    $region8: #{_lambda_.14} parent=1 // pred_region
      %s29 = ssub.s32 16, 16
      %30 = vsyncadd [#allocation6], %s29
      %s32 = sshll.u32 [#allocation5], 4
      %s33 = int_to_ptr.vmem [resolvable:$true] %s32
      %35 = dma.hbm_to_vmem [thread:$0]  %s1, 16, %s33, [#allocation6]
    $region9: #{_lambda_.14} parent=1 // pred_fallthru
      _
    // Predicated region
    $region10: #{_lambda_.14} parent=1 // pred_check
      _
    $region11: #{_lambda_.14} parent=1 // pred_check_branch
      %37 = sbr.rel (0) target = $region13
    $region12: #{_lambda_.14} parent=1 // pred_region
      %s39 = ssub.s32 16, 16
      %40 = vsyncadd [#allocation6], %s39
      %s42 = sshll.u32 [#allocation7], 4
      %s43 = int_to_ptr.vmem [resolvable:$true] %s42
      %45 = dma.hbm_to_vmem [thread:$0]  %s2, 16, %s43, [#allocation6]
    $region13: #{_lambda_.14} parent=1 // pred_fallthru
      _
    // Predicated region
    $region14: #{_lambda_.14} parent=1 // pred_check
      _
    $region15: #{_lambda_.14} parent=1 // pred_check_branch
      %47 = sbr.rel (0) target = $region17
    $region16: #{_lambda_.14} parent=1 // pred_region
      %s49 = ssub.s32 128, 128
      %50 = vsyncadd [#allocation9], %s49
      %s51 = sshll.u32 [#allocation8], 4
      %s52 = int_to_ptr.vmem [resolvable:$true] %s51
      %57 = dma.hbm_to_vmem [thread:$0]  %s3, 128, %s52, [#allocation9], 64, 64, 4
    $region17: #{_lambda_.14} parent=1 // pred_fallthru
      _
    // Predicated region
    $region18: #{_lambda_.14} parent=1 // pred_check
      _
    $region19: #{_lambda_.14} parent=1 // pred_check_branch
      %59 = sbr.rel (0) target = $region21
    $region20: #{_lambda_.14} parent=1 // pred_region
      %s61 = ssub.s32 16, 16
      %62 = vsyncadd [#allocation9], %s61
      %s64 = sshll.u32 [#allocation10], 4
      %s65 = int_to_ptr.vmem [resolvable:$true] %s64
      %67 = dma.hbm_to_vmem [thread:$0]  %s4, 16, %s65, [#allocation9]
    $region21: #{_lambda_.14} parent=1 // pred_fallthru
      _
    // Predicated region
    $region22: #{_lambda_.14} parent=1 // pred_check
      _
    $region23: #{_lambda_.14} parent=1 // pred_check_branch
      %69 = sbr.rel (0) target = $region25
    $region24: #{_lambda_.14} parent=1 // pred_region
      %70 = dma.done [#allocation3], 256
    $region25: #{_lambda_.14} parent=1 // pred_fallthru
      _
    // Predicated region
    $region26: #{_lambda_.14} parent=1 // pred_check
      _
    $region27: #{_lambda_.14} parent=1 // pred_check_branch
      %72 = sbr.rel (0) target = $region29
    $region28: #{_lambda_.14} parent=1 // pred_region
      %73 = dma.done [#allocation6], 16
    $region29: #{_lambda_.14} parent=1 // pred_fallthru
      _
    // Predicated region
    $region30: #{_lambda_.14} parent=1 // pred_check
      _
    $region31: #{_lambda_.14} parent=1 // pred_check_branch
      %75 = sbr.rel (0) target = $region33
    $region32: #{_lambda_.14} parent=1 // pred_region
      %76 = dma.done [#allocation6], 16
    $region33: #{_lambda_.14} parent=1 // pred_fallthru
      _
    // Predicated region
    $region34: #{_lambda_.14} parent=1 // pred_check
      _
    $region35: #{_lambda_.14} parent=1 // pred_check_branch
      %78 = sbr.rel (0) target = $region37
    $region36: #{_lambda_.14} parent=1 // pred_region
      %79 = dma.done [#allocation9], 128
    $region37: #{_lambda_.14} parent=1 // pred_fallthru
      _
    // Predicated region
    $region38: #{_lambda_.14} parent=1 // pred_check
      _
    $region39: #{_lambda_.14} parent=1 // pred_check_branch
      %81 = sbr.rel (0) target = $region41
    $region40: #{_lambda_.14} parent=1 // pred_region
      %82 = dma.done [#allocation9], 16
    $region41: #{_lambda_.14} parent=1 // pred_fallthru
      _
    %v84 = vld [vmem:[#allocation2] sm:$0xff]
    %v85 = vld [vmem:[#allocation2 + $0x8] sm:$0x3]
    %v86 = vld [vmem:[#allocation5] sm:$0x1]
    %v87 = vld [vmem:[#allocation7] sm:$0x1]
    %vm88 = vcmask 130048
    %v89 = vsel %vm88, %v84, 0.0
    %90 = vadd.xlane.f32.xlu0 %v89
    %v91 = vpop.xlane.xlu0 %90
    %vm92 = vcmask 123904
    %v93 = vsel %vm92, %v85, 0.0
    %94 = vadd.xlane.f32.xlu0 %v93
    %v95 = vpop.xlane.xlu0 %94
    %v96 = vrcp.pop 16.0
    %v97 = vmul.f32 %v91, %v96
    %v98 = vmul.f32 %v95, %v96
    %v99 = vsub.f32 %v84, %v97
    %v100 = vsub.f32 %v85, %v98
    %v101 = vmul.f32 %v99, %v99
    %v102 = vmul.f32 %v100, %v100
    %v103 = vsel %vm88, %v101, 0.0
    %104 = vadd.xlane.f32.xlu0 %v103
    %v105 = vpop.xlane.xlu0 %104
    %v106 = vsel %vm92, %v102, 0.0
    %107 = vadd.xlane.f32.xlu0 %v106
    %v108 = vpop.xlane.xlu0 %107
    %v109 = vmul.f32 %v105, %v96
    %v110 = vmul.f32 %v108, %v96
    %v111 = vadd.f32 %v109, 1e-05
    %v112 = vadd.f32 %v110, 1e-05
    %v113 = vrsqrt.pop %v111
    %v114 = vrsqrt.pop %v112
    %v115 = vmul.f32 %v99, %v113
    %v116 = vmul.f32 %v100, %v114
    %v118 = vlaneseq
    %v119 = vshrl.u32 %v118, 7
    %v120 = vsub.s32 0, %v119
    %v121 = vrot.slane %v86, %v120
    %v123 = vmul.f32 %v115, %v121
    %v124 = vmul.f32 %v116, %v121
    %v126 = vlaneseq
    %v127 = vshrl.u32 %v126, 7
    %v128 = vsub.s32 0, %v127
    %v129 = vrot.slane %v87, %v128
    %v131 = vadd.f32 %v123, %v129
    %v132 = vadd.f32 %v124, %v129
    %v133 = vpack.c.bf16 %v132, %v131
    %v134 = vld [vmem:[#allocation8] sm:$0xf]
    %v135 = vld [vmem:[#allocation8 + $0x4] sm:$0xf]
    %v136 = vld [vmem:[#allocation10] sm:$0x1]
    %v138 = vlaneseq
    %v139 = vshrl.u32 %v138, 7
    %v140 = vsub.s32 0, %v139
    %v141 = vrot.slane %v136, %v140
    %v145 = vunpack.c.l.b16 %v134
    %v146 = vunpack.c.l.b16 %v135
    %v147 = vpack.c.b16 %v146, %v145
    %v150 = vsel %vm88, %v133, 0
    %152 = vmatprep.subr.bf16.mxu0 0
    %153 = vmatpush1.bf16.msra.mxu0 %v147
    %154 = vmatprep.subr.bf16.mxu0 0
    %155 = vmatpush1.bf16.msra.mxu0 0
    %156 = vmatprep.subr.bf16.mxu0 0
    %157 = vmatpush1.bf16.msra.mxu0 0
    %158 = vmatprep.subr.bf16.mxu0 0
    %159 = vmatpush1.bf16.msra.mxu0 0
    %160 = vmatprep.subr.bf16.mxu0 0
    %161 = vmatpush1.bf16.msra.mxu0 0
    %162 = vmatprep.subr.bf16.mxu0 0
    %163 = vmatpush1.bf16.msra.mxu0 0
    %164 = vmatprep.subr.bf16.mxu0 0
    %165 = vmatpush1.bf16.msra.mxu0 0
    %166 = vmatprep.subr.bf16.mxu0 0
    %167 = vmatpush1.bf16.msra.mxu0 0
    %168 = vmatprep.subr.bf16.mxu0 0
    %169 = vmatpush1.bf16.msra.mxu0 0
    %170 = vmatprep.subr.bf16.mxu0 0
    %171 = vmatpush1.bf16.msra.mxu0 0
    %172 = vmatprep.subr.bf16.mxu0 0
    %173 = vmatpush1.bf16.msra.mxu0 0
    %174 = vmatprep.subr.bf16.mxu0 0
    %175 = vmatpush1.bf16.msra.mxu0 0
    %176 = vmatprep.subr.bf16.mxu0 0
    %177 = vmatpush1.bf16.msra.mxu0 0
    %178 = vmatprep.subr.bf16.mxu0 0
    %179 = vmatpush1.bf16.msra.mxu0 0
    %180 = vmatprep.subr.bf16.mxu0 0
    %181 = vmatpush1.bf16.msra.mxu0 0
    %182 = vmatprep.subr.bf16.mxu0 0
    %183 = vmatpush1.bf16.msra.mxu0 0
    %184 = vmatprep.mubr.bf16.mxu0 0
    %185 = vmatmul.mubr.bf16.gmra.mrb[0].mxu0 %v150
    %v186 = vpop.f32.mrb[0].mxu0
    %v187 = vadd.f32 %v141, %v186
    %v188 = vpop.f32.mrb[0].mxu0
    %v189 = vpop.f32.mrb[0].mxu0
    %v190 = vadd.f32 %v141, %v189
    %v191 = vpop.f32.mrb[0].mxu0
    %192 = vdwg.mxu0
    %vm193 = vcmask 392192
    %194 = vst.msk [vmem:[#allocation11] sm:$0xff] %vm193, %v187
    %vm195 = vcmask 386048
    %196 = vst.msk [vmem:[#allocation11 + $0x8] sm:$0x3] %vm195, %v190
    // Predicated region
    $region42: #{_lambda_.14} parent=1 // pred_check
      _
    $region43: #{_lambda_.14} parent=1 // pred_check_branch
      %198 = sbr.rel (0) target = $region45
    $region44: #{_lambda_.14} parent=1 // pred_region
      %s200 = ssub.s32 256, 256
      %201 = vsyncadd [#allocation4], %s200
      %s202 = sshll.u32 [#allocation11], 4
      %s203 = int_to_ptr.vmem [resolvable:$true] %s202
      %208 = dma.vmem_to_hbm [thread:$0]  %s203, 256, %s5, [#allocation4], 128, 128, 8
    $region45: #{_lambda_.14} parent=1 // pred_fallthru
      _
    // Predicated region
    $region46: #{_lambda_.14} parent=1 // pred_check
      _
    $region47: #{_lambda_.14} parent=1 // pred_check_branch
      %210 = sbr.rel (0) target = $region49
    $region48: #{_lambda_.14} parent=1 // pred_region
      %211 = dma.done [#allocation4], 256
    $region49: #{_lambda_.14} parent=1 // pred_fallthru
      _
    %212 = vsyncpa [#allocation3], 1
    %213 = vsyncpa [#allocation6], 1
    %214 = vsyncpa [#allocation9], 1
    %215 = vsyncpa [#allocation4], 1

// kernel: _lambda_.15
$region0: #{_lambda_.15}
  #allocation0 [shape = 'u32[]', space=smem, size = 0x4, offset = 0x4, fixed_abs, tag = 'smem constant byte address 0x4 - core index']
  #allocation1 [shape = 'u32[144,128]{1,0:T(1,128)}', space=vmem, size = 0x12000, scoped, tag = 'internal scratch']
  %s0 = inlined_call_operand.vmem [shape: f32[2,5,48], index: 0, kind: input, shape index: {}]
  %s1 = inlined_call_operand.vmem [shape: f32[2,5,16], index: 1, kind: output, shape index: {}]
  %s2 = sld [smem:[#allocation0]]
  $region37: #{_lambda_.15} parent=0
    _
  %s4 = ssub.s32 1, %s2
  %s5 = scalar_select 0, %s4, %s2
  loop: start=0, step=1, limit=4
  $region2: #{_lambda_.15} parent=0 // loop_pre_header
    _
  $region3: #{_lambda_.15} parent=0 // loop_header
    %s7 = sphi 0, %s11
    %p8 = scmp.ge.s32.totalorder %s7, 4
    %s17 = sphi 0, %s19
    %s20 = sphi 0, %s17
    %s21 = sphi 0, %s20
    %s37 = sphi 0, %s21
    %s43 = sphi 0, %s45
    %s46 = sphi 0, %s43
    %s47 = sphi 0, %s46
    %s63 = sphi 0, %s47
  $region4: #{_lambda_.15} parent=0 // loop_header_branch
    %10 = sbr.rel (%p8) target = $region8
  $region5: #{_lambda_.15} parent=0 // loop_body
    %s12 = ssub.s32 %s7, 1
    %s13 = ssub.s32 %s7, 2
    %s14 = sadd.s32 %s7, 1
    %s15 = ssub.s32 %s7, %s14
    %p16 = scmp.eq.s32.totalorder %s15, 0
    %s18 = sadd.s32 %s17, 1
    %s19 = scalar_select %p16, %s17, %s18
    %p22 = pneg %p16
    %p23 = scmp.eq.s32.totalorder %s7, 1
    %p24 = por %p22, %p23
    %p25 = scmp.ne.s32.totalorder %s17, %s20
    %p26 = scmp.eq.s32.totalorder %s7, 0
    %p27 = por %p25, %p26
    %p28 = scmp.ne.s32.totalorder %s17, %s20
    %p29 = scmp.eq.s32.totalorder %s12, 1
    %p30 = por %p28, %p29
    %p31 = scmp.ne.s32.totalorder %s20, %s21
    %p32 = scmp.eq.s32.totalorder %s12, 0
    %p33 = por %p31, %p32
    %p34 = scmp.ne.s32.totalorder %s20, %s21
    %p35 = scmp.eq.s32.totalorder %s13, 1
    %p36 = por %p34, %p35
    %p38 = scmp.ne.s32.totalorder %s21, %s37
    %p39 = scmp.eq.s32.totalorder %s13, 0
    %p40 = por %p38, %p39
    %s41 = ssub.s32 %s7, %s14
    %p42 = scmp.eq.s32.totalorder %s41, 0
    %s44 = sadd.s32 %s43, 1
    %s45 = scalar_select %p42, %s43, %s44
    %p48 = pneg %p42
    %p49 = scmp.eq.s32.totalorder %s7, 1
    %p50 = por %p48, %p49
    %p51 = scmp.ne.s32.totalorder %s43, %s46
    %p52 = scmp.eq.s32.totalorder %s7, 0
    %p53 = por %p51, %p52
    %p54 = scmp.ne.s32.totalorder %s43, %s46
    %p55 = scmp.eq.s32.totalorder %s12, 1
    %p56 = por %p54, %p55
    %p57 = scmp.ne.s32.totalorder %s46, %s47
    %p58 = scmp.eq.s32.totalorder %s12, 0
    %p59 = por %p57, %p58
    %p60 = scmp.ne.s32.totalorder %s46, %s47
    %p61 = scmp.eq.s32.totalorder %s13, 1
    %p62 = por %p60, %p61
    %p64 = scmp.ne.s32.totalorder %s47, %s63
    %p65 = scmp.eq.s32.totalorder %s13, 0
    %p66 = por %p64, %p65
    %p67 = scmp.le.s32.totalorder 1, %s7
    %p68 = scmp.lt.s32.totalorder %s7, 3
    %p69 = pnand %p67, %p68
    %p70 = pneg %p69
    // Predicated region
    $region9: #{_lambda_.15} parent=5 // pred_check
      _
    $region10: #{_lambda_.15} parent=5 // pred_check_branch
      %72 = sbr.rel (%p69) target = $region12
    $region11: #{_lambda_.15} parent=5 // pred_region
      %s73 = ssub.s32 %s7, 1
    $region12: #{_lambda_.15} parent=5 // pred_fallthru
      _
    %p74 = scmp.lt.s32.totalorder %s7, 2
    // Predicated region
    $region13: #{_lambda_.15} parent=5 // pred_check
      %p75 = pneg %p74
    $region14: #{_lambda_.15} parent=5 // pred_check_branch
      %77 = sbr.rel (%p75) target = $region16
    $region15: #{_lambda_.15} parent=5 // pred_region
      // Predicated region
      $region17: #{_lambda_.15} parent=15 // pred_check
        %p78 = pneg %p27
      $region18: #{_lambda_.15} parent=15 // pred_check_branch
        %80 = sbr.rel (%p78) target = $region20
      $region19: #{_lambda_.15} parent=15 // pred_region
        %p81 = scmp.lt.s32.totalorder %s7, 1
        %s82 = scalar_select %p81, %s7, 1
        %s83 = smul.addr %s82, 8
        %s84 = scalar_lea.vmem %s0, %s83
      $region20: #{_lambda_.15} parent=15 // pred_fallthru
        _
    $region16: #{_lambda_.15} parent=5 // pred_fallthru
      _
    %p85 = scmp.le.s32.totalorder 1, %s7
    %p86 = scmp.lt.s32.totalorder %s7, 3
    %p87 = pnand %p85, %p86
    %p88 = pneg %p87
    // Predicated region
    $region21: #{_lambda_.15} parent=5 // pred_check
      _
    $region22: #{_lambda_.15} parent=5 // pred_check_branch
      %90 = sbr.rel (%p87) target = $region24
    $region23: #{_lambda_.15} parent=5 // pred_region
      %s91 = ssub.s32 %s7, 1
      %p92 = scmp.lt.s32.totalorder %s12, 1
      %s93 = scalar_select %p92, %s12, 1
      %s94 = smul.addr %s93, 8
      %s95 = scalar_lea.vmem %s0, %s94
      %p96 = pneg %p33
      %p97 = pneg %p30
      %p98 = pneg %p59
      %p99 = pneg %p56
      %p100 = scmp.lt.s32.totalorder %s12, 1
      %s101 = scalar_select %p100, %s12, 1
      %s102 = smul.addr %s101, 8
      %s103 = scalar_lea.vmem %s1, %s102
      %p104 = scmp.lt.s32.totalorder %s12, 1
      %s105 = scalar_select %p104, %s12, 1
      %s106 = smul.addr %s105, 8
      %s107 = scalar_lea.vmem %s0, %s106
      %p108 = scmp.lt.s32.totalorder %s12, 1
      %s109 = scalar_select %p108, %s12, 1
      %s110 = smul.addr %s109, 8
      %s111 = scalar_lea.vmem %s1, %s110
      %v113 = vld [vmem:[%s107] sm:$0x1f]
      %v114 = vpack.c.bf16 %v113, %v113
      %116 = vrot.lane.b32.xlu0 %v114, 112
      %v117 = vpop.permute.xlu0 %116
      %vm118 = vcmask 64512
      %v120 = vsel %vm118, %v114, 0
      %v123 = vsel %vm118, %v117, 0
      %125 = vmatprep.subr.bf16.mxu0 0
      %126 = vmatpush1.bf16.xpose.msra.mxu0 %v123
      %127 = vmatprep.subr.bf16.mxu0 0
      %128 = vmatpush1.bf16.xpose.msra.mxu0 0
      %129 = vmatprep.subr.bf16.mxu0 0
      %130 = vmatpush1.bf16.xpose.msra.mxu0 0
      %131 = vmatprep.subr.bf16.mxu0 0
      %132 = vmatpush1.bf16.xpose.msra.mxu0 0
      %133 = vmatprep.subr.bf16.mxu0 0
      %134 = vmatpush1.bf16.xpose.msra.mxu0 0
      %135 = vmatprep.subr.bf16.mxu0 0
      %136 = vmatpush1.bf16.xpose.msra.mxu0 0
      %137 = vmatprep.subr.bf16.mxu0 0
      %138 = vmatpush1.bf16.xpose.msra.mxu0 0
      %139 = vmatprep.subr.bf16.mxu0 0
      %140 = vmatpush1.bf16.xpose.msra.mxu0 0
      %141 = vmatprep.subr.bf16.mxu0 0
      %142 = vmatpush1.bf16.xpose.msra.mxu0 0
      %143 = vmatprep.subr.bf16.mxu0 0
      %144 = vmatpush1.bf16.xpose.msra.mxu0 0
      %145 = vmatprep.subr.bf16.mxu0 0
      %146 = vmatpush1.bf16.xpose.msra.mxu0 0
      %147 = vmatprep.subr.bf16.mxu0 0
      %148 = vmatpush1.bf16.xpose.msra.mxu0 0
      %149 = vmatprep.subr.bf16.mxu0 0
      %150 = vmatpush1.bf16.xpose.msra.mxu0 0
      %151 = vmatprep.subr.bf16.mxu0 0
      %152 = vmatpush1.bf16.xpose.msra.mxu0 0
      %153 = vmatprep.subr.bf16.mxu0 0
      %154 = vmatpush1.bf16.xpose.msra.mxu0 0
      %155 = vmatprep.subr.bf16.mxu0 0
      %156 = vmatpush1.bf16.xpose.msra.mxu0 0
      %157 = vmatprep.mubr.bf16.mxu0 0
      %158 = vmatmul.mubr.bf16.gmra.mrb[0].mxu0 %v120
      %v159 = vpop.f32.mrb[0].mxu0
      %v160 = vadd.f32 0.0, %v159
      %v161 = vpop.f32.mrb[0].mxu0
      %v162 = vpop.f32.mrb[0].mxu0
      %v163 = vpop.f32.mrb[0].mxu0
      %164 = vdwg.mxu0
      %v165 = vmul.f32 %v160, 0.35355338
      %vm166 = vcmask 36864
      %v167 = vsel %vm166, %v165, -inf
      %168 = vmax.xlane.f32.xlu0 %v167
      %v169 = vpop.xlane.xlu0 %168
      %v170 = vsub.f32 %v165, %v169
      %v171 = vmul.f32 %v170, 1.442695
      %v172 = vpow.pop %v171
      %v173 = vsel %vm166, %v172, 0.0
      %174 = vadd.xlane.f32.xlu0 %v173
      %v175 = vpop.xlane.xlu0 %174
      %v176 = vrcp.pop %v175
      %v177 = vmul.f32 %v172, %v176
      %v178 = vpack.c.bf16 %v177, %v177
      %179 = vrot.lane.b32.xlu0 %v114, 96
      %v180 = vpop.permute.xlu0 %179
      %vm181 = vcmask 39936
      %v183 = vsel %vm181, %v178, 0
      %vm185 = vcmask 1041408
      %vm186 = vcmask 1042432
      %v187 = vsel %vm185, 4294967295, 65535
      %v188 = vsel %vm186, %v187, 0
      %v190 = vand.u32 %v180, %v188
      %192 = vmatprep.subr.bf16.mxu0 0
      %193 = vmatpush1.bf16.msra.mxu0 %v190
      %194 = vmatprep.subr.bf16.mxu0 0
      %195 = vmatpush1.bf16.msra.mxu0 0
      %196 = vmatprep.subr.bf16.mxu0 0
      %197 = vmatpush1.bf16.msra.mxu0 0
      %198 = vmatprep.subr.bf16.mxu0 0
      %199 = vmatpush1.bf16.msra.mxu0 0
      %200 = vmatprep.subr.bf16.mxu0 0
      %201 = vmatpush1.bf16.msra.mxu0 0
      %202 = vmatprep.subr.bf16.mxu0 0
      %203 = vmatpush1.bf16.msra.mxu0 0
      %204 = vmatprep.subr.bf16.mxu0 0
      %205 = vmatpush1.bf16.msra.mxu0 0
      %206 = vmatprep.subr.bf16.mxu0 0
      %207 = vmatpush1.bf16.msra.mxu0 0
      %208 = vmatprep.subr.bf16.mxu0 0
      %209 = vmatpush1.bf16.msra.mxu0 0
      %210 = vmatprep.subr.bf16.mxu0 0
      %211 = vmatpush1.bf16.msra.mxu0 0
      %212 = vmatprep.subr.bf16.mxu0 0
      %213 = vmatpush1.bf16.msra.mxu0 0
      %214 = vmatprep.subr.bf16.mxu0 0
      %215 = vmatpush1.bf16.msra.mxu0 0
      %216 = vmatprep.subr.bf16.mxu0 0
      %217 = vmatpush1.bf16.msra.mxu0 0
      %218 = vmatprep.subr.bf16.mxu0 0
      %219 = vmatpush1.bf16.msra.mxu0 0
      %220 = vmatprep.subr.bf16.mxu0 0
      %221 = vmatpush1.bf16.msra.mxu0 0
      %222 = vmatprep.subr.bf16.mxu0 0
      %223 = vmatpush1.bf16.msra.mxu0 0
      %224 = vmatprep.mubr.bf16.mxu0 0
      %225 = vmatmul.mubr.bf16.gmra.mrb[0].mxu0 %v183
      %v226 = vpop.f32.mrb[0].mxu0
      %v227 = vadd.f32 0.0, %v226
      %v228 = vpop.f32.mrb[0].mxu0
      %v229 = vpop.f32.mrb[0].mxu0
      %v230 = vpop.f32.mrb[0].mxu0
      %231 = vdwg.mxu0
      %232 = vrot.lane.b32.xlu0 %v114, 120
      %v233 = vpop.permute.xlu0 %232
      %234 = vrot.lane.b32.xlu0 %v114, 104
      %v235 = vpop.permute.xlu0 %234
      %v237 = vsel %vm118, %v233, 0
      %v240 = vsel %vm118, %v235, 0
      %242 = vmatprep.subr.bf16.mxu0 0
      %243 = vmatpush1.bf16.xpose.msra.mxu0 %v240
      %244 = vmatprep.subr.bf16.mxu0 0
      %245 = vmatpush1.bf16.xpose.msra.mxu0 0
      %246 = vmatprep.subr.bf16.mxu0 0
      %247 = vmatpush1.bf16.xpose.msra.mxu0 0
      %248 = vmatprep.subr.bf16.mxu0 0
      %249 = vmatpush1.bf16.xpose.msra.mxu0 0
      %250 = vmatprep.subr.bf16.mxu0 0
      %251 = vmatpush1.bf16.xpose.msra.mxu0 0
      %252 = vmatprep.subr.bf16.mxu0 0
      %253 = vmatpush1.bf16.xpose.msra.mxu0 0
      %254 = vmatprep.subr.bf16.mxu0 0
      %255 = vmatpush1.bf16.xpose.msra.mxu0 0
      %256 = vmatprep.subr.bf16.mxu0 0
      %257 = vmatpush1.bf16.xpose.msra.mxu0 0
      %258 = vmatprep.subr.bf16.mxu0 0
      %259 = vmatpush1.bf16.xpose.msra.mxu0 0
      %260 = vmatprep.subr.bf16.mxu0 0
      %261 = vmatpush1.bf16.xpose.msra.mxu0 0
      %262 = vmatprep.subr.bf16.mxu0 0
      %263 = vmatpush1.bf16.xpose.msra.mxu0 0
      %264 = vmatprep.subr.bf16.mxu0 0
      %265 = vmatpush1.bf16.xpose.msra.mxu0 0
      %266 = vmatprep.subr.bf16.mxu0 0
      %267 = vmatpush1.bf16.xpose.msra.mxu0 0
      %268 = vmatprep.subr.bf16.mxu0 0
      %269 = vmatpush1.bf16.xpose.msra.mxu0 0
      %270 = vmatprep.subr.bf16.mxu0 0
      %271 = vmatpush1.bf16.xpose.msra.mxu0 0
      %272 = vmatprep.subr.bf16.mxu0 0
      %273 = vmatpush1.bf16.xpose.msra.mxu0 0
      %274 = vmatprep.mubr.bf16.mxu0 0
      %275 = vmatmul.mubr.bf16.gmra.mrb[0].mxu0 %v237
      %v276 = vpop.f32.mrb[0].mxu0
      %v277 = vadd.f32 0.0, %v276
      %v278 = vpop.f32.mrb[0].mxu0
      %v279 = vpop.f32.mrb[0].mxu0
      %v280 = vpop.f32.mrb[0].mxu0
      %281 = vdwg.mxu0
      %v282 = vmul.f32 %v277, 0.35355338
      %v283 = vsel %vm166, %v282, -inf
      %284 = vmax.xlane.f32.xlu0 %v283
      %v285 = vpop.xlane.xlu0 %284
      %v286 = vsub.f32 %v282, %v285
      %v287 = vmul.f32 %v286, 1.442695
      %v288 = vpow.pop %v287
      %v289 = vsel %vm166, %v288, 0.0
      %290 = vadd.xlane.f32.xlu0 %v289
      %v291 = vpop.xlane.xlu0 %290
      %v292 = vrcp.pop %v291
      %v293 = vmul.f32 %v288, %v292
      %v294 = vpack.c.bf16 %v293, %v293
      %295 = vrot.lane.b32.xlu0 %v114, 88
      %v296 = vpop.permute.xlu0 %295
      %v298 = vsel %vm181, %v294, 0
      %v301 = vand.u32 %v296, %v188
      %303 = vmatprep.subr.bf16.mxu0 0
      %304 = vmatpush1.bf16.msra.mxu0 %v301
      %305 = vmatprep.subr.bf16.mxu0 0
      %306 = vmatpush1.bf16.msra.mxu0 0
      %307 = vmatprep.subr.bf16.mxu0 0
      %308 = vmatpush1.bf16.msra.mxu0 0
      %309 = vmatprep.subr.bf16.mxu0 0
      %310 = vmatpush1.bf16.msra.mxu0 0
      %311 = vmatprep.subr.bf16.mxu0 0
      %312 = vmatpush1.bf16.msra.mxu0 0
      %313 = vmatprep.subr.bf16.mxu0 0
      %314 = vmatpush1.bf16.msra.mxu0 0
      %315 = vmatprep.subr.bf16.mxu0 0
      %316 = vmatpush1.bf16.msra.mxu0 0
      %317 = vmatprep.subr.bf16.mxu0 0
      %318 = vmatpush1.bf16.msra.mxu0 0
      %319 = vmatprep.subr.bf16.mxu0 0
      %320 = vmatpush1.bf16.msra.mxu0 0
      %321 = vmatprep.subr.bf16.mxu0 0
      %322 = vmatpush1.bf16.msra.mxu0 0
      %323 = vmatprep.subr.bf16.mxu0 0
      %324 = vmatpush1.bf16.msra.mxu0 0
      %325 = vmatprep.subr.bf16.mxu0 0
      %326 = vmatpush1.bf16.msra.mxu0 0
      %327 = vmatprep.subr.bf16.mxu0 0
      %328 = vmatpush1.bf16.msra.mxu0 0
      %329 = vmatprep.subr.bf16.mxu0 0
      %330 = vmatpush1.bf16.msra.mxu0 0
      %331 = vmatprep.subr.bf16.mxu0 0
      %332 = vmatpush1.bf16.msra.mxu0 0
      %333 = vmatprep.subr.bf16.mxu0 0
      %334 = vmatpush1.bf16.msra.mxu0 0
      %335 = vmatprep.mubr.bf16.mxu0 0
      %336 = vmatmul.mubr.bf16.gmra.mrb[0].mxu0 %v298
      %v337 = vpop.f32.mrb[0].mxu0
      %v338 = vadd.f32 0.0, %v337
      %v339 = vpop.f32.mrb[0].mxu0
      %v340 = vpop.f32.mrb[0].mxu0
      %v341 = vpop.f32.mrb[0].mxu0
      %342 = vdwg.mxu0
      %344 = vrot.lane.b32.xlu0 %v338, 8
      %v345 = vpop.permute.xlu0 %344
      %v347 = vsel %vm118, %v227, %v345
      %vm348 = vcmask 126976
      %349 = vst.msk [vmem:[%s111] sm:$0x1f] %vm348, %v347
      %p350 = scmp.lt.s32.totalorder %s12, 1
      %s351 = scalar_select %p350, %s12, 1
      %s352 = smul.addr %s351, 8
      %s353 = scalar_lea.vmem %s1, %s352
      // Predicated region
      $region25: #{_lambda_.15} parent=23 // pred_check
        %p354 = pneg %p56
      $region26: #{_lambda_.15} parent=23 // pred_check_branch
        %356 = sbr.rel (%p354) target = $region28
      $region27: #{_lambda_.15} parent=23 // pred_region
        _
      $region28: #{_lambda_.15} parent=23 // pred_fallthru
        _
    $region24: #{_lambda_.15} parent=5 // pred_fallthru
      _
    %p357 = scmp.le.s32.totalorder 2, %s7
    // Predicated region
    $region29: #{_lambda_.15} parent=5 // pred_check
      %p358 = pneg %p357
    $region30: #{_lambda_.15} parent=5 // pred_check_branch
      %360 = sbr.rel (%p358) target = $region32
    $region31: #{_lambda_.15} parent=5 // pred_region
      %s361 = ssub.s32 %s7, 2
      // Predicated region
      $region33: #{_lambda_.15} parent=31 // pred_check
        %p362 = pneg %p62
      $region34: #{_lambda_.15} parent=31 // pred_check_branch
        %364 = sbr.rel (%p362) target = $region36
      $region35: #{_lambda_.15} parent=31 // pred_region
        %p365 = scmp.lt.s32.totalorder %s13, 1
        %s366 = scalar_select %p365, %s13, 1
        %s367 = smul.addr %s366, 8
        %s368 = scalar_lea.vmem %s1, %s367
      $region36: #{_lambda_.15} parent=31 // pred_fallthru
        _
    $region32: #{_lambda_.15} parent=5 // pred_fallthru
      _
  $region6: #{_lambda_.15} parent=0 // loop_footer
    %s11 = sadd.s32 1, %s7
  $region7: #{_lambda_.15} parent=0 // loop_footer_branch
    %6 = sbr.rel target = $region3
  $region8: #{_lambda_.15} parent=0 // loop_exit
    _

// kernel: _lambda_.12
$region0: #{_lambda_.12}
  #allocation0 [shape = 'u32[]', space=smem, size = 0x4, offset = 0x4, fixed_abs, tag = 'smem constant byte address 0x4 - core index']
  #allocation1 [shape = 'u32[144,128]{1,0:T(1,128)}', space=vmem, size = 0x12000, scoped, tag = 'internal scratch']
  #allocation2 [shape = 'f32[8,16]{1,0:T(8,128)}', space=vmem, size = 0x1000, scoped, tag = 'scratch operand']
  %s0 = inlined_call_operand.hbm [shape: f32[8,768], index: 0, kind: input, shape index: {}]
  %s1 = inlined_call_operand.hbm [shape: bf16[768,16], index: 1, kind: input, shape index: {}]
  %s2 = inlined_call_operand.hbm [shape: f32[1,16], index: 2, kind: input, shape index: {}]
  %s3 = inlined_call_operand.hbm [shape: f32[8,16], index: 3, kind: output, shape index: {}]
  %s4 = sld [smem:[#allocation0]]
  $region65: #{_lambda_.12} parent=0
    _
  %s6 = ssub.s32 1, %s4
  %s7 = scalar_select 0, %s6, %s4
  $region1: #{_lambda_.12} parent=0
    #allocation3 [shape = 'u8[24576]{0}', space=vmem, size = 0x6000, scoped, tag = 'input window, operand 0']
    #allocation4 [shape = 's32[2]{0}', space=sflag, size = 0x8, scoped, tag = 'scoped memory for _lambda_.12']
    #allocation5 [shape = 's32[2]{0}', space=sflag, size = 0x8, scoped, tag = 'scoped memory for _lambda_.12']
    #allocation6 [shape = 'u8[196608]{0}', space=vmem, size = 0x30000, scoped, tag = 'input window, operand 1']
    #allocation7 [shape = 's32[2]{0}', space=sflag, size = 0x8, scoped, tag = 'scoped memory for _lambda_.12']
    #allocation8 [shape = 'u8[512]{0}', space=vmem, size = 0x400, scoped, tag = 'input window, operand 2, single buffered']
    #allocation9 [shape = 'u8[4096]{0}', space=vmem, size = 0x1000, scoped, tag = 'output window, operand 0, single buffered']
    %8 = vsyncpa [#allocation4], 0
    %s9 = scalar_lea.sflag [#allocation4], 1
    %10 = vsyncpa %s9, 0
    %11 = vsyncpa [#allocation7], 0
    %s12 = scalar_lea.sflag [#allocation7], 1
    %13 = vsyncpa %s12, 0
    %14 = vsyncpa [#allocation5], 0
    loop: start=0, step=1, limit=4
    $region2: #{_lambda_.12} parent=1 // loop_pre_header
      _
    $region3: #{_lambda_.12} parent=1 // loop_header
      %s16 = sphi 0, %s20
      %p17 = scmp.ge.s32.totalorder %s16, 4
      %s23 = sphi 0, %s42
      %s24 = sphi 0, %s38
      %s25 = sphi 0, %s34
      %s26 = sphi 0, %s23
      %s27 = sphi 0, %s24
      %s28 = sphi 0, %s25
      %s29 = sphi 0, %s26
      %s30 = sphi 0, %s27
      %s31 = sphi 0, %s28
      %s47 = sphi 0, %s49
      %s50 = sphi 0, %s47
      %s51 = sphi 0, %s50
      %s67 = sphi 0, %s51
      %s75 = sphi 0, %s77
      %s78 = sphi 0, %s75
      %s79 = sphi 0, %s78
      %s95 = sphi 0, %s79
      %s101 = sphi 0, %s103
      %s104 = sphi 0, %s101
      %s105 = sphi 0, %s104
      %s121 = sphi 0, %s105
      %s129 = sphi 0, %s131
      %s132 = sphi 0, %s129
      %s133 = sphi 0, %s132
      %s149 = sphi 0, %s133
    $region4: #{_lambda_.12} parent=1 // loop_header_branch
      %19 = sbr.rel (%p17) target = $region8
    $region5: #{_lambda_.12} parent=1 // loop_body
      %s21 = ssub.s32 %s16, 1
      %s22 = ssub.s32 %s16, 2
      %s32 = sadd.s32 1, %s25
      %p33 = scmp.ge.s32.totalorder %s32, 2
      %s34 = scalar_select %p33, 0, %s32
      %s35 = sadd.s32 1, %s24
      %s36 = scalar_select %p33, %s35, %s24
      %p37 = scmp.ge.s32.totalorder %s36, 1
      %s38 = scalar_select %p37, 0, %s36
      %s39 = sadd.s32 1, %s23
      %s40 = scalar_select %p37, %s39, %s23
      %p41 = scmp.ge.s32.totalorder %s40, 1
      %s42 = scalar_select %p41, 0, %s40
      %s43 = ssub.s32 %s23, %s42
      %s44 = ssub.s32 %s25, %s34
      %s45 = sor.u32 %s43, %s44
      %p46 = scmp.eq.s32.totalorder %s45, 0
      %s48 = sadd.s32 %s47, 1
      %s49 = scalar_select %p46, %s47, %s48
      %p52 = pneg %p46
      %p53 = scmp.eq.s32.totalorder %s16, 1
      %p54 = por %p52, %p53
      %p55 = scmp.ne.s32.totalorder %s47, %s50
      %p56 = scmp.eq.s32.totalorder %s16, 0
      %p57 = por %p55, %p56
      %p58 = scmp.ne.s32.totalorder %s47, %s50
      %p59 = scmp.eq.s32.totalorder %s21, 1
      %p60 = por %p58, %p59
      %p61 = scmp.ne.s32.totalorder %s50, %s51
      %p62 = scmp.eq.s32.totalorder %s21, 0
      %p63 = por %p61, %p62
      %p64 = scmp.ne.s32.totalorder %s50, %s51
      %p65 = scmp.eq.s32.totalorder %s22, 1
      %p66 = por %p64, %p65
      %p68 = scmp.ne.s32.totalorder %s51, %s67
      %p69 = scmp.eq.s32.totalorder %s22, 0
      %p70 = por %p68, %p69
      %s71 = ssub.s32 %s25, %s34
      %s72 = ssub.s32 %s24, %s38
      %s73 = sor.u32 %s71, %s72
      %p74 = scmp.eq.s32.totalorder %s73, 0
      %s76 = sadd.s32 %s75, 1
      %s77 = scalar_select %p74, %s75, %s76
      %p80 = pneg %p74
      %p81 = scmp.eq.s32.totalorder %s16, 1
      %p82 = por %p80, %p81
      %p83 = scmp.ne.s32.totalorder %s75, %s78
      %p84 = scmp.eq.s32.totalorder %s16, 0
      %p85 = por %p83, %p84
      %p86 = scmp.ne.s32.totalorder %s75, %s78
      %p87 = scmp.eq.s32.totalorder %s21, 1
      %p88 = por %p86, %p87
      %p89 = scmp.ne.s32.totalorder %s78, %s79
      %p90 = scmp.eq.s32.totalorder %s21, 0
      %p91 = por %p89, %p90
      %p92 = scmp.ne.s32.totalorder %s78, %s79
      %p93 = scmp.eq.s32.totalorder %s22, 1
      %p94 = por %p92, %p93
      %p96 = scmp.ne.s32.totalorder %s79, %s95
      %p97 = scmp.eq.s32.totalorder %s22, 0
      %p98 = por %p96, %p97
      %s99 = ssub.s32 %s24, %s38
      %p100 = scmp.eq.s32.totalorder %s99, 0
      %s102 = sadd.s32 %s101, 1
      %s103 = scalar_select %p100, %s101, %s102
      %p106 = pneg %p100
      %p107 = scmp.eq.s32.totalorder %s16, 1
      %p108 = por %p106, %p107
      %p109 = scmp.ne.s32.totalorder %s101, %s104
      %p110 = scmp.eq.s32.totalorder %s16, 0
      %p111 = por %p109, %p110
      %p112 = scmp.ne.s32.totalorder %s101, %s104
      %p113 = scmp.eq.s32.totalorder %s21, 1
      %p114 = por %p112, %p113
      %p115 = scmp.ne.s32.totalorder %s104, %s105
      %p116 = scmp.eq.s32.totalorder %s21, 0
      %p117 = por %p115, %p116
      %p118 = scmp.ne.s32.totalorder %s104, %s105
      %p119 = scmp.eq.s32.totalorder %s22, 1
      %p120 = por %p118, %p119
      %p122 = scmp.ne.s32.totalorder %s105, %s121
      %p123 = scmp.eq.s32.totalorder %s22, 0
      %p124 = por %p122, %p123
      %s125 = ssub.s32 %s23, %s42
      %s126 = ssub.s32 %s24, %s38
      %s127 = sor.u32 %s125, %s126
      %p128 = scmp.eq.s32.totalorder %s127, 0
      %s130 = sadd.s32 %s129, 1
      %s131 = scalar_select %p128, %s129, %s130
      %p134 = pneg %p128
      %p135 = scmp.eq.s32.totalorder %s16, 1
      %p136 = por %p134, %p135
      %p137 = scmp.ne.s32.totalorder %s129, %s132
      %p138 = scmp.eq.s32.totalorder %s16, 0
      %p139 = por %p137, %p138
      %p140 = scmp.ne.s32.totalorder %s129, %s132
      %p141 = scmp.eq.s32.totalorder %s21, 1
      %p142 = por %p140, %p141
      %p143 = scmp.ne.s32.totalorder %s132, %s133
      %p144 = scmp.eq.s32.totalorder %s21, 0
      %p145 = por %p143, %p144
      %p146 = scmp.ne.s32.totalorder %s132, %s133
      %p147 = scmp.eq.s32.totalorder %s22, 1
      %p148 = por %p146, %p147
      %p150 = scmp.ne.s32.totalorder %s133, %s149
      %p151 = scmp.eq.s32.totalorder %s22, 0
      %p152 = por %p150, %p151
      %p153 = scmp.le.s32.totalorder 1, %s16
      %p154 = scmp.lt.s32.totalorder %s16, 3
      %p155 = pnand %p153, %p154
      %p156 = pneg %p155
      // Predicated region
      $region9: #{_lambda_.12} parent=5 // pred_check
        _
      $region10: #{_lambda_.12} parent=5 // pred_check_branch
        %158 = sbr.rel (%p155) target = $region12
      $region11: #{_lambda_.12} parent=5 // pred_region
        %s159 = ssub.s32 %s16, 1
        // Predicated region
        $region13: #{_lambda_.12} parent=11 // pred_check
          %p160 = pneg %p117
        $region14: #{_lambda_.12} parent=11 // pred_check_branch
          %162 = sbr.rel (%p160) target = $region16
        $region15: #{_lambda_.12} parent=11 // pred_region
          %s164 = ssub.s32 16, 16
          %165 = vsyncadd [#allocation7], %s164
          %s166 = smul.addr %s27, 16
          %s167 = scalar_lea.hbm %s2, %s166
          %s169 = sshll.u32 [#allocation8], 4
          %s170 = int_to_ptr.vmem [resolvable:$true] %s169
          %172 = dma.hbm_to_vmem [thread:$0]  %s167, 16, %s170, [#allocation7]
        $region16: #{_lambda_.12} parent=11 // pred_fallthru
          _
      $region12: #{_lambda_.12} parent=5 // pred_fallthru
        _
      %p173 = scmp.lt.s32.totalorder %s16, 2
      // Predicated region
      $region17: #{_lambda_.12} parent=5 // pred_check
        %p174 = pneg %p173
      $region18: #{_lambda_.12} parent=5 // pred_check_branch
        %176 = sbr.rel (%p174) target = $region20
      $region19: #{_lambda_.12} parent=5 // pred_region
        // Predicated region
        $region21: #{_lambda_.12} parent=19 // pred_check
          %p177 = pneg %p57
        $region22: #{_lambda_.12} parent=19 // pred_check_branch
          %179 = sbr.rel (%p177) target = $region24
        $region23: #{_lambda_.12} parent=19 // pred_region
          %s180 = sand.u32 %s47, 1
          %s181 = scalar_lea.sflag [#allocation4], %s180
          %s182 = sand.u32 %s47, 1
          %s183 = smul.addr %s182, 24
          %s184 = scalar_lea.vmem [#allocation3], %s183
          %s185 = smul.u32 3, %s25
          %s187 = ssub.s32 384, 384
          %188 = vsyncadd %s181, %s187
          %s189 = smul.addr %s23, 6
          %s190 = sadd.s32 %s185, %s189
          %s191 = smul.addr %s190, 128
          %s192 = scalar_lea.hbm %s0, %s191
          %s194 = sshll.u32 %s184, 4
          %s195 = int_to_ptr.vmem [resolvable:$true] %s194
          %197 = dma.hbm_to_vmem [thread:$0]  %s192, 384, %s195, %s181
        $region24: #{_lambda_.12} parent=19 // pred_fallthru
          _
        // Predicated region
        $region25: #{_lambda_.12} parent=19 // pred_check
          %p198 = pneg %p85
        $region26: #{_lambda_.12} parent=19 // pred_check_branch
          %200 = sbr.rel (%p198) target = $region28
        $region27: #{_lambda_.12} parent=19 // pred_region
          %s201 = sand.u32 %s16, 1
          %s202 = scalar_lea.sflag [#allocation7], %s201
          %s203 = sand.u32 %s75, 1
          %s204 = smul.addr %s203, 192
          %s205 = scalar_lea.vmem [#allocation6], %s204
          %s206 = smul.u32 48, %s25
          %s208 = ssub.s32 3072, 3072
          %209 = vsyncadd %s202, %s208
          %s210 = sadd.s32 %s24, %s206
          %s211 = smul.addr %s210, 64
          %s212 = scalar_lea.hbm %s1, %s211
          %s213 = sshll.u32 %s205, 4
          %s214 = int_to_ptr.vmem [resolvable:$true] %s213
          %219 = dma.hbm_to_vmem [thread:$0]  %s212, 3072, %s214, %s202, 64, 64, 4
        $region28: #{_lambda_.12} parent=19 // pred_fallthru
          _
      $region20: #{_lambda_.12} parent=5 // pred_fallthru
        _
      %p220 = scmp.le.s32.totalorder 1, %s16
      %p221 = scmp.lt.s32.totalorder %s16, 3
      %p222 = pnand %p220, %p221
      %p223 = pneg %p222
      // Predicated region
      $region29: #{_lambda_.12} parent=5 // pred_check
        _
      $region30: #{_lambda_.12} parent=5 // pred_check_branch
        %225 = sbr.rel (%p222) target = $region32
      $region31: #{_lambda_.12} parent=5 // pred_region
        %s226 = ssub.s32 %s16, 1
        %s227 = sand.u32 %s50, 1
        %s228 = scalar_lea.sflag [#allocation4], %s227
        %s229 = sand.u32 %s50, 1
        %s230 = smul.addr %s229, 24
        %s231 = scalar_lea.vmem [#allocation3], %s230
        // Predicated region
        $region33: #{_lambda_.12} parent=31 // pred_check
          %p232 = pneg %p63
        $region34: #{_lambda_.12} parent=31 // pred_check_branch
          %234 = sbr.rel (%p232) target = $region36
        $region35: #{_lambda_.12} parent=31 // pred_region
          %235 = dma.done %s228, 384
        $region36: #{_lambda_.12} parent=31 // pred_fallthru
          _
        %s236 = sand.u32 %s21, 1
        %s237 = scalar_lea.sflag [#allocation7], %s236
        %s238 = sand.u32 %s78, 1
        %s239 = smul.addr %s238, 192
        %s240 = scalar_lea.vmem [#allocation6], %s239
        // Predicated region
        $region37: #{_lambda_.12} parent=31 // pred_check
          %p241 = pneg %p91
        $region38: #{_lambda_.12} parent=31 // pred_check_branch
          %243 = sbr.rel (%p241) target = $region40
        $region39: #{_lambda_.12} parent=31 // pred_region
          %244 = dma.done %s237, 3072
        $region40: #{_lambda_.12} parent=31 // pred_fallthru
          _
        // Predicated region
        $region41: #{_lambda_.12} parent=31 // pred_check
          %p245 = pneg %p117
        $region42: #{_lambda_.12} parent=31 // pred_check_branch
          %247 = sbr.rel (%p245) target = $region44
        $region43: #{_lambda_.12} parent=31 // pred_region
          %248 = dma.done [#allocation7], 16
        $region44: #{_lambda_.12} parent=31 // pred_fallthru
          _
        %s249 = sand.u32 %s50, 1
        %s250 = scalar_lea.sflag [#allocation4], %s249
        %s251 = sand.u32 %s50, 1
        %s252 = smul.addr %s251, 24
        %s253 = scalar_lea.vmem [#allocation3], %s252
        %p254 = pneg %p63
        %p255 = pneg %p60
        %s256 = sand.u32 %s21, 1
        %s257 = scalar_lea.sflag [#allocation7], %s256
        %s258 = sand.u32 %s78, 1
        %s259 = smul.addr %s258, 192
        %s260 = scalar_lea.vmem [#allocation6], %s259
        %p261 = pneg %p91
        %p262 = pneg %p88
        %p263 = pneg %p117
        %p264 = pneg %p114
        %p265 = pneg %p145
        %p266 = pneg %p142
        %s267 = smul.u32 3, %s28
        %s268 = smul.u32 48, %s28
        %p270 = scmp.eq.s32.totalorder %s28, 0
        // Predicated region
        $region45: #{_lambda_.12} parent=31 // pred_check
          %p271 = pneg %p270
        $region46: #{_lambda_.12} parent=31 // pred_check_branch
          %273 = sbr.rel (%p271) target = $region48
        $region47: #{_lambda_.12} parent=31 // pred_region
          %vm274 = vcmask 130048
          %275 = vst.msk [vmem:[#allocation2] sm:$0xff] %vm274, 0.0
        $region48: #{_lambda_.12} parent=31 // pred_fallthru
          _
        %v276 = vld [vmem:[#allocation2] sm:$0xff]
        %v277 = vld [vmem:[%s231] sm:$0xff]
        %v278 = vld [vmem:[%s231 + $0x8] sm:$0xff]
        %v279 = vld [vmem:[%s231 + $0x10] sm:$0xff]
        %v280 = vpack.c.bf16 %v277, %v277
        %v281 = vpack.c.bf16 %v278, %v278
        %v282 = vpack.c.bf16 %v279, %v279
        %v283 = vld [vmem:[%s240] sm:$0xf]
        %v284 = vld [vmem:[%s240 + $0x4] sm:$0xf]
        %v285 = vld [vmem:[%s240 + $0x8] sm:$0xf]
        %v286 = vld [vmem:[%s240 + $0xc] sm:$0xf]
        %v287 = vld [vmem:[%s240 + $0x10] sm:$0xf]
        %v288 = vld [vmem:[%s240 + $0x14] sm:$0xf]
        %v289 = vld [vmem:[%s240 + $0x18] sm:$0xf]
        %v290 = vld [vmem:[%s240 + $0x1c] sm:$0xf]
        %v291 = vld [vmem:[%s240 + $0x20] sm:$0xf]
        %v292 = vld [vmem:[%s240 + $0x24] sm:$0xf]
        %v293 = vld [vmem:[%s240 + $0x28] sm:$0xf]
        %v294 = vld [vmem:[%s240 + $0x2c] sm:$0xf]
        %v295 = vld [vmem:[%s240 + $0x30] sm:$0xf]
        %v296 = vld [vmem:[%s240 + $0x34] sm:$0xf]
        %v297 = vld [vmem:[%s240 + $0x38] sm:$0xf]
        %v298 = vld [vmem:[%s240 + $0x3c] sm:$0xf]
        %v299 = vld [vmem:[%s240 + $0x40] sm:$0xf]
        %v300 = vld [vmem:[%s240 + $0x44] sm:$0xf]
        %v301 = vld [vmem:[%s240 + $0x48] sm:$0xf]
        %v302 = vld [vmem:[%s240 + $0x4c] sm:$0xf]
        %v303 = vld [vmem:[%s240 + $0x50] sm:$0xf]
        %v304 = vld [vmem:[%s240 + $0x54] sm:$0xf]
        %v305 = vld [vmem:[%s240 + $0x58] sm:$0xf]
        %v306 = vld [vmem:[%s240 + $0x5c] sm:$0xf]
        %v307 = vld [vmem:[%s240 + $0x60] sm:$0xf]
        %v308 = vld [vmem:[%s240 + $0x64] sm:$0xf]
        %v309 = vld [vmem:[%s240 + $0x68] sm:$0xf]
        %v310 = vld [vmem:[%s240 + $0x6c] sm:$0xf]
        %v311 = vld [vmem:[%s240 + $0x70] sm:$0xf]
        %v312 = vld [vmem:[%s240 + $0x74] sm:$0xf]
        %v313 = vld [vmem:[%s240 + $0x78] sm:$0xf]
        %v314 = vld [vmem:[%s240 + $0x7c] sm:$0xf]
        %v315 = vld [vmem:[%s240 + $0x80] sm:$0xf]
        %v316 = vld [vmem:[%s240 + $0x84] sm:$0xf]
        %v317 = vld [vmem:[%s240 + $0x88] sm:$0xf]
        %v318 = vld [vmem:[%s240 + $0x8c] sm:$0xf]
        %v319 = vld [vmem:[%s240 + $0x90] sm:$0xf]
        %v320 = vld [vmem:[%s240 + $0x94] sm:$0xf]
        %v321 = vld [vmem:[%s240 + $0x98] sm:$0xf]
        %v322 = vld [vmem:[%s240 + $0x9c] sm:$0xf]
        %v323 = vld [vmem:[%s240 + $0xa0] sm:$0xf]
        %v324 = vld [vmem:[%s240 + $0xa4] sm:$0xf]
        %v325 = vld [vmem:[%s240 + $0xa8] sm:$0xf]
        %v326 = vld [vmem:[%s240 + $0xac] sm:$0xf]
        %v327 = vld [vmem:[%s240 + $0xb0] sm:$0xf]
        %v328 = vld [vmem:[%s240 + $0xb4] sm:$0xf]
        %v329 = vld [vmem:[%s240 + $0xb8] sm:$0xf]
        %v330 = vld [vmem:[%s240 + $0xbc] sm:$0xf]
        %v379 = vunpack.c.l.b16 %v283
        %v380 = vunpack.c.l.b16 %v284
        %v381 = vunpack.c.l.b16 %v285
        %v382 = vunpack.c.l.b16 %v286
        %v383 = vunpack.c.l.b16 %v287
        %v384 = vunpack.c.l.b16 %v288
        %v385 = vunpack.c.l.b16 %v289
        %v386 = vunpack.c.l.b16 %v290
        %v387 = vunpack.c.l.b16 %v291
        %v388 = vunpack.c.l.b16 %v292
        %v389 = vunpack.c.l.b16 %v293
        %v390 = vunpack.c.l.b16 %v294
        %v391 = vunpack.c.l.b16 %v295
        %v392 = vunpack.c.l.b16 %v296
        %v393 = vunpack.c.l.b16 %v297
        %v394 = vunpack.c.l.b16 %v298
        %v395 = vunpack.c.l.b16 %v299
        %v396 = vunpack.c.l.b16 %v300
        %v397 = vunpack.c.l.b16 %v301
        %v398 = vunpack.c.l.b16 %v302
        %v399 = vunpack.c.l.b16 %v303
        %v400 = vunpack.c.l.b16 %v304
        %v401 = vunpack.c.l.b16 %v305
        %v402 = vunpack.c.l.b16 %v306
        %v403 = vunpack.c.l.b16 %v307
        %v404 = vunpack.c.l.b16 %v308
        %v405 = vunpack.c.l.b16 %v309
        %v406 = vunpack.c.l.b16 %v310
        %v407 = vunpack.c.l.b16 %v311
        %v408 = vunpack.c.l.b16 %v312
        %v409 = vunpack.c.l.b16 %v313
        %v410 = vunpack.c.l.b16 %v314
        %v411 = vunpack.c.l.b16 %v315
        %v412 = vunpack.c.l.b16 %v316
        %v413 = vunpack.c.l.b16 %v317
        %v414 = vunpack.c.l.b16 %v318
        %v415 = vunpack.c.l.b16 %v319
        %v416 = vunpack.c.l.b16 %v320
        %v417 = vunpack.c.l.b16 %v321
        %v418 = vunpack.c.l.b16 %v322
        %v419 = vunpack.c.l.b16 %v323
        %v420 = vunpack.c.l.b16 %v324
        %v421 = vunpack.c.l.b16 %v325
        %v422 = vunpack.c.l.b16 %v326
        %v423 = vunpack.c.l.b16 %v327
        %v424 = vunpack.c.l.b16 %v328
        %v425 = vunpack.c.l.b16 %v329
        %v426 = vunpack.c.l.b16 %v330
        %v427 = vpack.c.b16 %v380, %v379
        %v428 = vpack.c.b16 %v382, %v381
        %v429 = vpack.c.b16 %v384, %v383
        %v430 = vpack.c.b16 %v386, %v385
        %v431 = vpack.c.b16 %v388, %v387
        %v432 = vpack.c.b16 %v390, %v389
        %v433 = vpack.c.b16 %v392, %v391
        %v434 = vpack.c.b16 %v394, %v393
        %v435 = vpack.c.b16 %v396, %v395
        %v436 = vpack.c.b16 %v398, %v397
        %v437 = vpack.c.b16 %v400, %v399
        %v438 = vpack.c.b16 %v402, %v401
        %v439 = vpack.c.b16 %v404, %v403
        %v440 = vpack.c.b16 %v406, %v405
        %v441 = vpack.c.b16 %v408, %v407
        %v442 = vpack.c.b16 %v410, %v409
        %v443 = vpack.c.b16 %v412, %v411
        %v444 = vpack.c.b16 %v414, %v413
        %v445 = vpack.c.b16 %v416, %v415
        %v446 = vpack.c.b16 %v418, %v417
        %v447 = vpack.c.b16 %v420, %v419
        %v448 = vpack.c.b16 %v422, %v421
        %v449 = vpack.c.b16 %v424, %v423
        %v450 = vpack.c.b16 %v426, %v425
        %475 = vmatprep.subr.bf16.mxu0 0
        %476 = vmatpush1.bf16.msra.mxu0 %v427
        %477 = vmatprep.subr.bf16.mxu0 0
        %478 = vmatpush1.bf16.msra.mxu0 %v428
        %479 = vmatprep.subr.bf16.mxu0 0
        %480 = vmatpush1.bf16.msra.mxu0 %v429
        %481 = vmatprep.subr.bf16.mxu0 0
        %482 = vmatpush1.bf16.msra.mxu0 %v430
        %483 = vmatprep.subr.bf16.mxu0 0
        %484 = vmatpush1.bf16.msra.mxu0 %v431
        %485 = vmatprep.subr.bf16.mxu0 0
        %486 = vmatpush1.bf16.msra.mxu0 %v432
        %487 = vmatprep.subr.bf16.mxu0 0
        %488 = vmatpush1.bf16.msra.mxu0 %v433
        %489 = vmatprep.subr.bf16.mxu0 0
        %490 = vmatpush1.bf16.msra.mxu0 %v434
        %491 = vmatprep.subr.bf16.mxu0 0
        %492 = vmatpush1.bf16.msra.mxu0 %v435
        %493 = vmatprep.subr.bf16.mxu0 0
        %494 = vmatpush1.bf16.msra.mxu0 %v436
        %495 = vmatprep.subr.bf16.mxu0 0
        %496 = vmatpush1.bf16.msra.mxu0 %v437
        %497 = vmatprep.subr.bf16.mxu0 0
        %498 = vmatpush1.bf16.msra.mxu0 %v438
        %499 = vmatprep.subr.bf16.mxu0 0
        %500 = vmatpush1.bf16.msra.mxu0 %v439
        %501 = vmatprep.subr.bf16.mxu0 0
        %502 = vmatpush1.bf16.msra.mxu0 %v440
        %503 = vmatprep.subr.bf16.mxu0 0
        %504 = vmatpush1.bf16.msra.mxu0 %v441
        %505 = vmatprep.subr.bf16.mxu0 0
        %506 = vmatpush1.bf16.msra.mxu0 %v442
        %507 = vmatprep.mubr.bf16.mxu0 %v281
        %508 = vmatmul.mubr.bf16.gmra.mrb[0].mxu0 %v280
        %v509 = vpop.f32.mrb[0].mxu0
        %v510 = vadd.f32 0.0, %v509
        %v511 = vpop.f32.mrb[0].mxu0
        %v512 = vpop.f32.mrb[0].mxu0
        %v513 = vpop.f32.mrb[0].mxu0
        %514 = vdwg.mxu0
        %515 = vmatprep.subr.bf16.mxu0 0
        %516 = vmatpush1.bf16.msra.mxu0 %v443
        %517 = vmatprep.subr.bf16.mxu0 0
        %518 = vmatpush1.bf16.msra.mxu0 %v444
        %519 = vmatprep.subr.bf16.mxu0 0
        %520 = vmatpush1.bf16.msra.mxu0 %v445
        %521 = vmatprep.subr.bf16.mxu0 0
        %522 = vmatpush1.bf16.msra.mxu0 %v446
        %523 = vmatprep.subr.bf16.mxu0 0
        %524 = vmatpush1.bf16.msra.mxu0 %v447
        %525 = vmatprep.subr.bf16.mxu0 0
        %526 = vmatpush1.bf16.msra.mxu0 %v448
        %527 = vmatprep.subr.bf16.mxu0 0
        %528 = vmatpush1.bf16.msra.mxu0 %v449
        %529 = vmatprep.subr.bf16.mxu0 0
        %530 = vmatpush1.bf16.msra.mxu0 %v450
        %531 = vmatprep.subr.bf16.mxu0 0
        %532 = vmatpush1.bf16.msra.mxu0 0
        %533 = vmatprep.subr.bf16.mxu0 0
        %534 = vmatpush1.bf16.msra.mxu0 0
        %535 = vmatprep.subr.bf16.mxu0 0
        %536 = vmatpush1.bf16.msra.mxu0 0
        %537 = vmatprep.subr.bf16.mxu0 0
        %538 = vmatpush1.bf16.msra.mxu0 0
        %539 = vmatprep.subr.bf16.mxu0 0
        %540 = vmatpush1.bf16.msra.mxu0 0
        %541 = vmatprep.subr.bf16.mxu0 0
        %542 = vmatpush1.bf16.msra.mxu0 0
        %543 = vmatprep.subr.bf16.mxu0 0
        %544 = vmatpush1.bf16.msra.mxu0 0
        %545 = vmatprep.subr.bf16.mxu0 0
        %546 = vmatpush1.bf16.msra.mxu0 0
        %547 = vmatprep.mubr.bf16.mxu0 0
        %548 = vmatmul.mubr.bf16.gmra.mrb[0].mxu0 %v282
        %v549 = vpop.f32.mrb[0].mxu0
        %v550 = vadd.f32 %v510, %v549
        %v551 = vpop.f32.mrb[0].mxu0
        %v552 = vpop.f32.mrb[0].mxu0
        %v553 = vpop.f32.mrb[0].mxu0
        %554 = vdwg.mxu0
        %v555 = vadd.f32 %v276, %v550
        %vm556 = vcmask 130048
        %557 = vst.msk [vmem:[#allocation2] sm:$0xff] %vm556, %v555
        %p558 = scmp.eq.s32.totalorder %s28, 1
        // Predicated region
        $region49: #{_lambda_.12} parent=31 // pred_check
          %p559 = pneg %p558
        $region50: #{_lambda_.12} parent=31 // pred_check_branch
          %561 = sbr.rel (%p559) target = $region52
        $region51: #{_lambda_.12} parent=31 // pred_region
          %v562 = vld [vmem:[#allocation2] sm:$0xff]
          %v563 = vld [vmem:[#allocation8] sm:$0x1]
          %v565 = vlaneseq
          %v566 = vshrl.u32 %v565, 7
          %v567 = vsub.s32 0, %v566
          %v568 = vrot.slane %v563, %v567
          %v570 = vadd.f32 %v562, %v568
          %571 = vst.msk [vmem:[#allocation9] sm:$0xff] %vm556, %v570
        $region52: #{_lambda_.12} parent=31 // pred_fallthru
          _
        // Predicated region
        $region53: #{_lambda_.12} parent=31 // pred_check
          %p572 = pneg %p142
        $region54: #{_lambda_.12} parent=31 // pred_check_branch
          %574 = sbr.rel (%p572) target = $region56
        $region55: #{_lambda_.12} parent=31 // pred_region
          %s576 = ssub.s32 128, 128
          %577 = vsyncadd [#allocation5], %s576
          %s578 = sadd.s32 %s27, %s26
          %s579 = smul.addr %s578, 128
          %s580 = scalar_lea.hbm %s3, %s579
          %s582 = sshll.u32 [#allocation9], 4
          %s583 = int_to_ptr.vmem [resolvable:$true] %s582
          %585 = dma.vmem_to_hbm [thread:$0]  %s583, 128, %s580, [#allocation5]
        $region56: #{_lambda_.12} parent=31 // pred_fallthru
          _
        // Predicated region
        $region57: #{_lambda_.12} parent=31 // pred_check
          %p586 = pneg %p142
        $region58: #{_lambda_.12} parent=31 // pred_check_branch
          %588 = sbr.rel (%p586) target = $region60
        $region59: #{_lambda_.12} parent=31 // pred_region
          %589 = dma.done [#allocation5], 128
        $region60: #{_lambda_.12} parent=31 // pred_fallthru
          _
      $region32: #{_lambda_.12} parent=5 // pred_fallthru
        _
      %p590 = scmp.le.s32.totalorder 2, %s16
      // Predicated region
      $region61: #{_lambda_.12} parent=5 // pred_check
        %p591 = pneg %p590
      $region62: #{_lambda_.12} parent=5 // pred_check_branch
        %593 = sbr.rel (%p591) target = $region64
      $region63: #{_lambda_.12} parent=5 // pred_region
        %s594 = ssub.s32 %s16, 2
      $region64: #{_lambda_.12} parent=5 // pred_fallthru
        _
    $region6: #{_lambda_.12} parent=1 // loop_footer
      %s20 = sadd.s32 1, %s16
    $region7: #{_lambda_.12} parent=1 // loop_footer_branch
      %15 = sbr.rel target = $region3
    $region8: #{_lambda_.12} parent=1 // loop_exit
      _
    %595 = vsyncpa [#allocation4], 1
    %s596 = scalar_lea.sflag [#allocation4], 1
    %597 = vsyncpa %s596, 1
    %598 = vsyncpa [#allocation7], 1
    %s599 = scalar_lea.sflag [#allocation7], 1
    %600 = vsyncpa %s599, 1
    %601 = vsyncpa [#allocation5], 1
    %s602 = scalar_lea.sflag [#allocation5], 1
    %603 = vsyncpa %s602, 1

// kernel: _lambda_.16
$region0: #{_lambda_.16}
  #allocation0 [shape = 'u32[]', space=smem, size = 0x4, offset = 0x4, fixed_abs, tag = 'smem constant byte address 0x4 - core index']
  #allocation1 [shape = 'u32[144,128]{1,0:T(1,128)}', space=vmem, size = 0x12000, scoped, tag = 'internal scratch']
  %s0 = inlined_call_operand.hbm [shape: f32[10,16], index: 0, kind: input, shape index: {}]
  %s1 = inlined_call_operand.hbm [shape: bf16[16,16], index: 1, kind: input, shape index: {}]
  %s2 = inlined_call_operand.hbm [shape: f32[1,16], index: 2, kind: input, shape index: {}]
  %s3 = inlined_call_operand.hbm [shape: f32[10,16], index: 3, kind: input, shape index: {}]
  %s4 = inlined_call_operand.hbm [shape: f32[10,16], index: 4, kind: output, shape index: {}]
  %s5 = sld [smem:[#allocation0]]
  $region42: #{_lambda_.16} parent=0
    _
  %s7 = ssub.s32 1, %s5
  %s8 = scalar_select 0, %s7, %s5
  $region1: #{_lambda_.16} parent=0
    #allocation2 [shape = 'u8[8192]{0}', space=vmem, size = 0x2000, scoped, tag = 'input window, operand 0, single buffered']
    #allocation3 [shape = 's32[1]{0}', space=sflag, size = 0x4, scoped, tag = 'scoped memory for _lambda_.16']
    #allocation4 [shape = 's32[1]{0}', space=sflag, size = 0x4, scoped, tag = 'scoped memory for _lambda_.16']
    #allocation5 [shape = 'u8[4096]{0}', space=vmem, size = 0x1000, scoped, tag = 'input window, operand 1, single buffered']
    #allocation6 [shape = 's32[1]{0}', space=sflag, size = 0x4, scoped, tag = 'scoped memory for _lambda_.16']
    #allocation7 [shape = 'u8[512]{0}', space=vmem, size = 0x400, scoped, tag = 'input window, operand 2, single buffered']
    #allocation8 [shape = 'u8[8192]{0}', space=vmem, size = 0x2000, scoped, tag = 'input window, operand 3, single buffered']
    #allocation9 [shape = 's32[1]{0}', space=sflag, size = 0x4, scoped, tag = 'scoped memory for _lambda_.16']
    #allocation10 [shape = 'u8[8192]{0}', space=vmem, size = 0x2000, scoped, tag = 'output window, operand 0, single buffered']
    %9 = vsyncpa [#allocation3], 0
    %10 = vsyncpa [#allocation6], 0
    %11 = vsyncpa [#allocation9], 0
    %12 = vsyncpa [#allocation4], 0
    // Predicated region
    $region2: #{_lambda_.16} parent=1 // pred_check
      _
    $region3: #{_lambda_.16} parent=1 // pred_check_branch
      %14 = sbr.rel (0) target = $region5
    $region4: #{_lambda_.16} parent=1 // pred_region
      %s16 = ssub.s32 256, 256
      %17 = vsyncadd [#allocation3], %s16
      %s18 = sshll.u32 [#allocation2], 4
      %s19 = int_to_ptr.vmem [resolvable:$true] %s18
      %24 = dma.hbm_to_vmem [thread:$0]  %s0, 256, %s19, [#allocation3], 128, 128, 8
    $region5: #{_lambda_.16} parent=1 // pred_fallthru
      _
    // Predicated region
    $region6: #{_lambda_.16} parent=1 // pred_check
      _
    $region7: #{_lambda_.16} parent=1 // pred_check_branch
      %26 = sbr.rel (0) target = $region9
    $region8: #{_lambda_.16} parent=1 // pred_region
      %s28 = ssub.s32 128, 128
      %29 = vsyncadd [#allocation6], %s28
      %s30 = sshll.u32 [#allocation5], 4
      %s31 = int_to_ptr.vmem [resolvable:$true] %s30
      %36 = dma.hbm_to_vmem [thread:$0]  %s1, 128, %s31, [#allocation6], 64, 64, 4
    $region9: #{_lambda_.16} parent=1 // pred_fallthru
      _
    // Predicated region
    $region10: #{_lambda_.16} parent=1 // pred_check
      _
    $region11: #{_lambda_.16} parent=1 // pred_check_branch
      %38 = sbr.rel (0) target = $region13
    $region12: #{_lambda_.16} parent=1 // pred_region
      %s40 = ssub.s32 16, 16
      %41 = vsyncadd [#allocation6], %s40
      %s43 = sshll.u32 [#allocation7], 4
      %s44 = int_to_ptr.vmem [resolvable:$true] %s43
      %46 = dma.hbm_to_vmem [thread:$0]  %s2, 16, %s44, [#allocation6]
    $region13: #{_lambda_.16} parent=1 // pred_fallthru
      _
    // Predicated region
    $region14: #{_lambda_.16} parent=1 // pred_check
      _
    $region15: #{_lambda_.16} parent=1 // pred_check_branch
      %48 = sbr.rel (0) target = $region17
    $region16: #{_lambda_.16} parent=1 // pred_region
      %s50 = ssub.s32 256, 256
      %51 = vsyncadd [#allocation9], %s50
      %s52 = sshll.u32 [#allocation8], 4
      %s53 = int_to_ptr.vmem [resolvable:$true] %s52
      %58 = dma.hbm_to_vmem [thread:$0]  %s3, 256, %s53, [#allocation9], 128, 128, 8
    $region17: #{_lambda_.16} parent=1 // pred_fallthru
      _
    // Predicated region
    $region18: #{_lambda_.16} parent=1 // pred_check
      _
    $region19: #{_lambda_.16} parent=1 // pred_check_branch
      %60 = sbr.rel (0) target = $region21
    $region20: #{_lambda_.16} parent=1 // pred_region
      %61 = dma.done [#allocation3], 256
    $region21: #{_lambda_.16} parent=1 // pred_fallthru
      _
    // Predicated region
    $region22: #{_lambda_.16} parent=1 // pred_check
      _
    $region23: #{_lambda_.16} parent=1 // pred_check_branch
      %63 = sbr.rel (0) target = $region25
    $region24: #{_lambda_.16} parent=1 // pred_region
      %64 = dma.done [#allocation6], 128
    $region25: #{_lambda_.16} parent=1 // pred_fallthru
      _
    // Predicated region
    $region26: #{_lambda_.16} parent=1 // pred_check
      _
    $region27: #{_lambda_.16} parent=1 // pred_check_branch
      %66 = sbr.rel (0) target = $region29
    $region28: #{_lambda_.16} parent=1 // pred_region
      %67 = dma.done [#allocation6], 16
    $region29: #{_lambda_.16} parent=1 // pred_fallthru
      _
    // Predicated region
    $region30: #{_lambda_.16} parent=1 // pred_check
      _
    $region31: #{_lambda_.16} parent=1 // pred_check_branch
      %69 = sbr.rel (0) target = $region33
    $region32: #{_lambda_.16} parent=1 // pred_region
      %70 = dma.done [#allocation9], 256
    $region33: #{_lambda_.16} parent=1 // pred_fallthru
      _
    %v72 = vld [vmem:[#allocation2] sm:$0xff]
    %v73 = vld [vmem:[#allocation2 + $0x8] sm:$0x3]
    %v74 = vpack.c.bf16 %v73, %v72
    %v75 = vld [vmem:[#allocation5] sm:$0xf]
    %v76 = vld [vmem:[#allocation5 + $0x4] sm:$0xf]
    %v77 = vld [vmem:[#allocation7] sm:$0x1]
    %v79 = vlaneseq
    %v80 = vshrl.u32 %v79, 7
    %v81 = vsub.s32 0, %v80
    %v82 = vrot.slane %v77, %v81
    %v86 = vunpack.c.l.b16 %v75
    %v87 = vunpack.c.l.b16 %v76
    %v88 = vpack.c.b16 %v87, %v86
    %vm90 = vcmask 130048
    %v92 = vsel %vm90, %v74, 0
    %94 = vmatprep.subr.bf16.mxu0 0
    %95 = vmatpush1.bf16.msra.mxu0 %v88
    %96 = vmatprep.subr.bf16.mxu0 0
    %97 = vmatpush1.bf16.msra.mxu0 0
    %98 = vmatprep.subr.bf16.mxu0 0
    %99 = vmatpush1.bf16.msra.mxu0 0
    %100 = vmatprep.subr.bf16.mxu0 0
    %101 = vmatpush1.bf16.msra.mxu0 0
    %102 = vmatprep.subr.bf16.mxu0 0
    %103 = vmatpush1.bf16.msra.mxu0 0
    %104 = vmatprep.subr.bf16.mxu0 0
    %105 = vmatpush1.bf16.msra.mxu0 0
    %106 = vmatprep.subr.bf16.mxu0 0
    %107 = vmatpush1.bf16.msra.mxu0 0
    %108 = vmatprep.subr.bf16.mxu0 0
    %109 = vmatpush1.bf16.msra.mxu0 0
    %110 = vmatprep.subr.bf16.mxu0 0
    %111 = vmatpush1.bf16.msra.mxu0 0
    %112 = vmatprep.subr.bf16.mxu0 0
    %113 = vmatpush1.bf16.msra.mxu0 0
    %114 = vmatprep.subr.bf16.mxu0 0
    %115 = vmatpush1.bf16.msra.mxu0 0
    %116 = vmatprep.subr.bf16.mxu0 0
    %117 = vmatpush1.bf16.msra.mxu0 0
    %118 = vmatprep.subr.bf16.mxu0 0
    %119 = vmatpush1.bf16.msra.mxu0 0
    %120 = vmatprep.subr.bf16.mxu0 0
    %121 = vmatpush1.bf16.msra.mxu0 0
    %122 = vmatprep.subr.bf16.mxu0 0
    %123 = vmatpush1.bf16.msra.mxu0 0
    %124 = vmatprep.subr.bf16.mxu0 0
    %125 = vmatpush1.bf16.msra.mxu0 0
    %126 = vmatprep.mubr.bf16.mxu0 0
    %127 = vmatmul.mubr.bf16.gmra.mrb[0].mxu0 %v92
    %v128 = vpop.f32.mrb[0].mxu0
    %v129 = vadd.f32 %v82, %v128
    %v130 = vpop.f32.mrb[0].mxu0
    %v131 = vpop.f32.mrb[0].mxu0
    %v132 = vadd.f32 %v82, %v131
    %v133 = vpop.f32.mrb[0].mxu0
    %134 = vdwg.mxu0
    %v135 = vld [vmem:[#allocation8] sm:$0xff]
    %v136 = vld [vmem:[#allocation8 + $0x8] sm:$0x3]
    %v137 = vadd.f32 %v129, %v135
    %v138 = vadd.f32 %v132, %v136
    %139 = vst.msk [vmem:[#allocation10] sm:$0xff] %vm90, %v137
    %vm140 = vcmask 123904
    %141 = vst.msk [vmem:[#allocation10 + $0x8] sm:$0x3] %vm140, %v138
    // Predicated region
    $region34: #{_lambda_.16} parent=1 // pred_check
      _
    $region35: #{_lambda_.16} parent=1 // pred_check_branch
      %143 = sbr.rel (0) target = $region37
    $region36: #{_lambda_.16} parent=1 // pred_region
      %s145 = ssub.s32 256, 256
      %146 = vsyncadd [#allocation4], %s145
      %s147 = sshll.u32 [#allocation10], 4
      %s148 = int_to_ptr.vmem [resolvable:$true] %s147
      %153 = dma.vmem_to_hbm [thread:$0]  %s148, 256, %s4, [#allocation4], 128, 128, 8
    $region37: #{_lambda_.16} parent=1 // pred_fallthru
      _
    // Predicated region
    $region38: #{_lambda_.16} parent=1 // pred_check
      _
    $region39: #{_lambda_.16} parent=1 // pred_check_branch
      %155 = sbr.rel (0) target = $region41
    $region40: #{_lambda_.16} parent=1 // pred_region
      %156 = dma.done [#allocation4], 256
    $region41: #{_lambda_.16} parent=1 // pred_fallthru
      _
    %157 = vsyncpa [#allocation3], 1
    %158 = vsyncpa [#allocation6], 1
    %159 = vsyncpa [#allocation9], 1
    %160 = vsyncpa [#allocation4], 1

// kernel: _lambda_.22
$region0: #{_lambda_.22}
  #allocation0 [shape = 'u32[]', space=smem, size = 0x4, offset = 0x4, fixed_abs, tag = 'smem constant byte address 0x4 - core index']
  #allocation1 [shape = 'u32[144,128]{1,0:T(1,128)}', space=vmem, size = 0x12000, scoped, tag = 'internal scratch']
  %s0 = inlined_call_operand.hbm [shape: f32[10,16], index: 0, kind: input, shape index: {}]
  %s1 = inlined_call_operand.vmem [shape: f32[1,16], index: 1, kind: input, shape index: {}]
  %s2 = inlined_call_operand.vmem [shape: f32[1,16], index: 2, kind: input, shape index: {}]
  %s3 = inlined_call_operand.vmem [shape: f32[10,16], index: 3, kind: output, shape index: {}]
  %s4 = sld [smem:[#allocation0]]
  $region26: #{_lambda_.22} parent=0
    _
  %s6 = ssub.s32 1, %s4
  %s7 = scalar_select 0, %s6, %s4
  $region1: #{_lambda_.22} parent=0
    #allocation2 [shape = 'u8[8192]{0}', space=vmem, size = 0x2000, scoped, tag = 'input window, operand 0, single buffered']
    #allocation3 [shape = 's32[1]{0}', space=sflag, size = 0x4, scoped, tag = 'scoped memory for _lambda_.22']
    %8 = vsyncpa [#allocation3], 0
    // Predicated region
    $region2: #{_lambda_.22} parent=1 // pred_check
      _
    $region3: #{_lambda_.22} parent=1 // pred_check_branch
      %10 = sbr.rel (0) target = $region5
    $region4: #{_lambda_.22} parent=1 // pred_region
      %s12 = ssub.s32 256, 256
      %13 = vsyncadd [#allocation3], %s12
      %s14 = sshll.u32 [#allocation2], 4
      %s15 = int_to_ptr.vmem [resolvable:$true] %s14
      %20 = dma.hbm_to_vmem [thread:$0]  %s0, 256, %s15, [#allocation3], 128, 128, 8
    $region5: #{_lambda_.22} parent=1 // pred_fallthru
      _
    // Predicated region
    $region6: #{_lambda_.22} parent=1 // pred_check
      _
    $region7: #{_lambda_.22} parent=1 // pred_check_branch
      %22 = sbr.rel (0) target = $region9
    $region8: #{_lambda_.22} parent=1 // pred_region
      _
    $region9: #{_lambda_.22} parent=1 // pred_fallthru
      _
    // Predicated region
    $region10: #{_lambda_.22} parent=1 // pred_check
      _
    $region11: #{_lambda_.22} parent=1 // pred_check_branch
      %24 = sbr.rel (0) target = $region13
    $region12: #{_lambda_.22} parent=1 // pred_region
      _
    $region13: #{_lambda_.22} parent=1 // pred_fallthru
      _
    // Predicated region
    $region14: #{_lambda_.22} parent=1 // pred_check
      _
    $region15: #{_lambda_.22} parent=1 // pred_check_branch
      %26 = sbr.rel (0) target = $region17
    $region16: #{_lambda_.22} parent=1 // pred_region
      %27 = dma.done [#allocation3], 256
    $region17: #{_lambda_.22} parent=1 // pred_fallthru
      _
    %v28 = vld [vmem:[#allocation2] sm:$0xff]
    %v29 = vld [vmem:[#allocation2 + $0x8] sm:$0x3]
    %v30 = vld [vmem:[%s1] sm:$0x1]
    %v31 = vld [vmem:[%s2] sm:$0x1]
    %vm32 = vcmask 130048
    %v33 = vsel %vm32, %v28, 0.0
    %34 = vadd.xlane.f32.xlu0 %v33
    %v35 = vpop.xlane.xlu0 %34
    %vm36 = vcmask 123904
    %v37 = vsel %vm36, %v29, 0.0
    %38 = vadd.xlane.f32.xlu0 %v37
    %v39 = vpop.xlane.xlu0 %38
    %v40 = vrcp.pop 16.0
    %v41 = vmul.f32 %v35, %v40
    %v42 = vmul.f32 %v39, %v40
    %v43 = vsub.f32 %v28, %v41
    %v44 = vsub.f32 %v29, %v42
    %v45 = vmul.f32 %v43, %v43
    %v46 = vmul.f32 %v44, %v44
    %v47 = vsel %vm32, %v45, 0.0
    %48 = vadd.xlane.f32.xlu0 %v47
    %v49 = vpop.xlane.xlu0 %48
    %v50 = vsel %vm36, %v46, 0.0
    %51 = vadd.xlane.f32.xlu0 %v50
    %v52 = vpop.xlane.xlu0 %51
    %v53 = vmul.f32 %v49, %v40
    %v54 = vmul.f32 %v52, %v40
    %v55 = vadd.f32 %v53, 1e-05
    %v56 = vadd.f32 %v54, 1e-05
    %v57 = vrsqrt.pop %v55
    %v58 = vrsqrt.pop %v56
    %v59 = vmul.f32 %v43, %v57
    %v60 = vmul.f32 %v44, %v58
    %v62 = vlaneseq
    %v63 = vshrl.u32 %v62, 7
    %v64 = vsub.s32 0, %v63
    %v65 = vrot.slane %v30, %v64
    %v67 = vmul.f32 %v59, %v65
    %v68 = vmul.f32 %v60, %v65
    %v70 = vlaneseq
    %v71 = vshrl.u32 %v70, 7
    %v72 = vsub.s32 0, %v71
    %v73 = vrot.slane %v31, %v72
    %v75 = vadd.f32 %v67, %v73
    %v76 = vadd.f32 %v68, %v73
    %77 = vst.msk [vmem:[%s3] sm:$0xff] %vm32, %v75
    %78 = vst.msk [vmem:[%s3 + $0x8] sm:$0x3] %vm36, %v76
    // Predicated region
    $region18: #{_lambda_.22} parent=1 // pred_check
      _
    $region19: #{_lambda_.22} parent=1 // pred_check_branch
      %80 = sbr.rel (0) target = $region21
    $region20: #{_lambda_.22} parent=1 // pred_region
      _
    $region21: #{_lambda_.22} parent=1 // pred_fallthru
      _
    // Predicated region
    $region22: #{_lambda_.22} parent=1 // pred_check
      _
    $region23: #{_lambda_.22} parent=1 // pred_check_branch
      %82 = sbr.rel (0) target = $region25
    $region24: #{_lambda_.22} parent=1 // pred_region
      _
    $region25: #{_lambda_.22} parent=1 // pred_fallthru
      _
    %83 = vsyncpa [#allocation3], 1

// kernel: _lambda_.17
$region0: #{_lambda_.17}
  #allocation0 [shape = 'u32[]', space=smem, size = 0x4, offset = 0x4, fixed_abs, tag = 'smem constant byte address 0x4 - core index']
  #allocation1 [shape = 'u32[144,128]{1,0:T(1,128)}', space=vmem, size = 0x12000, scoped, tag = 'internal scratch']
  %s0 = inlined_call_operand.hbm [shape: f32[10,16], index: 0, kind: input, shape index: {}]
  %s1 = inlined_call_operand.hbm [shape: f32[1,16], index: 1, kind: input, shape index: {}]
  %s2 = inlined_call_operand.hbm [shape: f32[1,16], index: 2, kind: input, shape index: {}]
  %s3 = inlined_call_operand.hbm [shape: bf16[16,64], index: 3, kind: input, shape index: {}]
  %s4 = inlined_call_operand.hbm [shape: f32[1,64], index: 4, kind: input, shape index: {}]
  %s5 = inlined_call_operand.hbm [shape: bf16[64,16], index: 5, kind: input, shape index: {}]
  %s6 = inlined_call_operand.hbm [shape: f32[1,16], index: 6, kind: input, shape index: {}]
  %s7 = inlined_call_operand.hbm [shape: f32[10,16], index: 7, kind: output, shape index: {}]
  %s8 = sld [smem:[#allocation0]]
  $region66: #{_lambda_.17} parent=0
    _
  %s10 = ssub.s32 1, %s8
  %s11 = scalar_select 0, %s10, %s8
  $region1: #{_lambda_.17} parent=0
    #allocation2 [shape = 'u8[8192]{0}', space=vmem, size = 0x2000, scoped, tag = 'input window, operand 0, single buffered']
    #allocation3 [shape = 's32[1]{0}', space=sflag, size = 0x4, scoped, tag = 'scoped memory for _lambda_.17']
    #allocation4 [shape = 's32[1]{0}', space=sflag, size = 0x4, scoped, tag = 'scoped memory for _lambda_.17']
    #allocation5 [shape = 'u8[512]{0}', space=vmem, size = 0x400, scoped, tag = 'input window, operand 1, single buffered']
    #allocation6 [shape = 's32[1]{0}', space=sflag, size = 0x4, scoped, tag = 'scoped memory for _lambda_.17']
    #allocation7 [shape = 'u8[512]{0}', space=vmem, size = 0x400, scoped, tag = 'input window, operand 2, single buffered']
    #allocation8 [shape = 'u8[4096]{0}', space=vmem, size = 0x1000, scoped, tag = 'input window, operand 3, single buffered']
    #allocation9 [shape = 's32[1]{0}', space=sflag, size = 0x4, scoped, tag = 'scoped memory for _lambda_.17']
    #allocation10 [shape = 'u8[512]{0}', space=vmem, size = 0x400, scoped, tag = 'input window, operand 4, single buffered']
    #allocation11 [shape = 'u8[16384]{0}', space=vmem, size = 0x4000, scoped, tag = 'input window, operand 5, single buffered']
    #allocation12 [shape = 's32[1]{0}', space=sflag, size = 0x4, scoped, tag = 'scoped memory for _lambda_.17']
    #allocation13 [shape = 'u8[512]{0}', space=vmem, size = 0x400, scoped, tag = 'input window, operand 6, single buffered']
    #allocation14 [shape = 'u8[8192]{0}', space=vmem, size = 0x2000, scoped, tag = 'output window, operand 0, single buffered']
    %12 = vsyncpa [#allocation3], 0
    %13 = vsyncpa [#allocation6], 0
    %14 = vsyncpa [#allocation9], 0
    %15 = vsyncpa [#allocation12], 0
    %16 = vsyncpa [#allocation4], 0
    // Predicated region
    $region2: #{_lambda_.17} parent=1 // pred_check
      _
    $region3: #{_lambda_.17} parent=1 // pred_check_branch
      %18 = sbr.rel (0) target = $region5
    $region4: #{_lambda_.17} parent=1 // pred_region
      %s20 = ssub.s32 256, 256
      %21 = vsyncadd [#allocation3], %s20
      %s22 = sshll.u32 [#allocation2], 4
      %s23 = int_to_ptr.vmem [resolvable:$true] %s22
      %28 = dma.hbm_to_vmem [thread:$0]  %s0, 256, %s23, [#allocation3], 128, 128, 8
    $region5: #{_lambda_.17} parent=1 // pred_fallthru
      _
    // Predicated region
    $region6: #{_lambda_.17} parent=1 // pred_check
      _
    $region7: #{_lambda_.17} parent=1 // pred_check_branch
      %30 = sbr.rel (0) target = $region9
    $region8: #{_lambda_.17} parent=1 // pred_region
      %s32 = ssub.s32 16, 16
      %33 = vsyncadd [#allocation6], %s32
      %s35 = sshll.u32 [#allocation5], 4
      %s36 = int_to_ptr.vmem [resolvable:$true] %s35
      %38 = dma.hbm_to_vmem [thread:$0]  %s1, 16, %s36, [#allocation6]
    $region9: #{_lambda_.17} parent=1 // pred_fallthru
      _
    // Predicated region
    $region10: #{_lambda_.17} parent=1 // pred_check
      _
    $region11: #{_lambda_.17} parent=1 // pred_check_branch
      %40 = sbr.rel (0) target = $region13
    $region12: #{_lambda_.17} parent=1 // pred_region
      %s42 = ssub.s32 16, 16
      %43 = vsyncadd [#allocation6], %s42
      %s45 = sshll.u32 [#allocation7], 4
      %s46 = int_to_ptr.vmem [resolvable:$true] %s45
      %48 = dma.hbm_to_vmem [thread:$0]  %s2, 16, %s46, [#allocation6]
    $region13: #{_lambda_.17} parent=1 // pred_fallthru
      _
    // Predicated region
    $region14: #{_lambda_.17} parent=1 // pred_check
      _
    $region15: #{_lambda_.17} parent=1 // pred_check_branch
      %50 = sbr.rel (0) target = $region17
    $region16: #{_lambda_.17} parent=1 // pred_region
      %s52 = ssub.s32 128, 128
      %53 = vsyncadd [#allocation9], %s52
      %s54 = sshll.u32 [#allocation8], 4
      %s55 = int_to_ptr.vmem [resolvable:$true] %s54
      %60 = dma.hbm_to_vmem [thread:$0]  %s3, 128, %s55, [#allocation9], 64, 64, 4
    $region17: #{_lambda_.17} parent=1 // pred_fallthru
      _
    // Predicated region
    $region18: #{_lambda_.17} parent=1 // pred_check
      _
    $region19: #{_lambda_.17} parent=1 // pred_check_branch
      %62 = sbr.rel (0) target = $region21
    $region20: #{_lambda_.17} parent=1 // pred_region
      %s64 = ssub.s32 16, 16
      %65 = vsyncadd [#allocation9], %s64
      %s67 = sshll.u32 [#allocation10], 4
      %s68 = int_to_ptr.vmem [resolvable:$true] %s67
      %70 = dma.hbm_to_vmem [thread:$0]  %s4, 16, %s68, [#allocation9]
    $region21: #{_lambda_.17} parent=1 // pred_fallthru
      _
    // Predicated region
    $region22: #{_lambda_.17} parent=1 // pred_check
      _
    $region23: #{_lambda_.17} parent=1 // pred_check_branch
      %72 = sbr.rel (0) target = $region25
    $region24: #{_lambda_.17} parent=1 // pred_region
      %s74 = ssub.s32 512, 512
      %75 = vsyncadd [#allocation12], %s74
      %s76 = sshll.u32 [#allocation11], 4
      %s77 = int_to_ptr.vmem [resolvable:$true] %s76
      %82 = dma.hbm_to_vmem [thread:$0]  %s5, 512, %s77, [#allocation12], 64, 64, 4
    $region25: #{_lambda_.17} parent=1 // pred_fallthru
      _
    // Predicated region
    $region26: #{_lambda_.17} parent=1 // pred_check
      _
    $region27: #{_lambda_.17} parent=1 // pred_check_branch
      %84 = sbr.rel (0) target = $region29
    $region28: #{_lambda_.17} parent=1 // pred_region
      %s86 = ssub.s32 16, 16
      %87 = vsyncadd [#allocation12], %s86
      %s89 = sshll.u32 [#allocation13], 4
      %s90 = int_to_ptr.vmem [resolvable:$true] %s89
      %92 = dma.hbm_to_vmem [thread:$0]  %s6, 16, %s90, [#allocation12]
    $region29: #{_lambda_.17} parent=1 // pred_fallthru
      _
    // Predicated region
    $region30: #{_lambda_.17} parent=1 // pred_check
      _
    $region31: #{_lambda_.17} parent=1 // pred_check_branch
      %94 = sbr.rel (0) target = $region33
    $region32: #{_lambda_.17} parent=1 // pred_region
      %95 = dma.done [#allocation3], 256
    $region33: #{_lambda_.17} parent=1 // pred_fallthru
      _
    // Predicated region
    $region34: #{_lambda_.17} parent=1 // pred_check
      _
    $region35: #{_lambda_.17} parent=1 // pred_check_branch
      %97 = sbr.rel (0) target = $region37
    $region36: #{_lambda_.17} parent=1 // pred_region
      %98 = dma.done [#allocation6], 16
    $region37: #{_lambda_.17} parent=1 // pred_fallthru
      _
    // Predicated region
    $region38: #{_lambda_.17} parent=1 // pred_check
      _
    $region39: #{_lambda_.17} parent=1 // pred_check_branch
      %100 = sbr.rel (0) target = $region41
    $region40: #{_lambda_.17} parent=1 // pred_region
      %101 = dma.done [#allocation6], 16
    $region41: #{_lambda_.17} parent=1 // pred_fallthru
      _
    // Predicated region
    $region42: #{_lambda_.17} parent=1 // pred_check
      _
    $region43: #{_lambda_.17} parent=1 // pred_check_branch
      %103 = sbr.rel (0) target = $region45
    $region44: #{_lambda_.17} parent=1 // pred_region
      %104 = dma.done [#allocation9], 128
    $region45: #{_lambda_.17} parent=1 // pred_fallthru
      _
    // Predicated region
    $region46: #{_lambda_.17} parent=1 // pred_check
      _
    $region47: #{_lambda_.17} parent=1 // pred_check_branch
      %106 = sbr.rel (0) target = $region49
    $region48: #{_lambda_.17} parent=1 // pred_region
      %107 = dma.done [#allocation9], 16
    $region49: #{_lambda_.17} parent=1 // pred_fallthru
      _
    // Predicated region
    $region50: #{_lambda_.17} parent=1 // pred_check
      _
    $region51: #{_lambda_.17} parent=1 // pred_check_branch
      %109 = sbr.rel (0) target = $region53
    $region52: #{_lambda_.17} parent=1 // pred_region
      %110 = dma.done [#allocation12], 512
    $region53: #{_lambda_.17} parent=1 // pred_fallthru
      _
    // Predicated region
    $region54: #{_lambda_.17} parent=1 // pred_check
      _
    $region55: #{_lambda_.17} parent=1 // pred_check_branch
      %112 = sbr.rel (0) target = $region57
    $region56: #{_lambda_.17} parent=1 // pred_region
      %113 = dma.done [#allocation12], 16
    $region57: #{_lambda_.17} parent=1 // pred_fallthru
      _
    %v115 = vld [vmem:[#allocation2] sm:$0xff]
    %v116 = vld [vmem:[#allocation2 + $0x8] sm:$0x3]
    %v117 = vld [vmem:[#allocation5] sm:$0x1]
    %v118 = vld [vmem:[#allocation7] sm:$0x1]
    %vm119 = vcmask 130048
    %v120 = vsel %vm119, %v115, 0.0
    %121 = vadd.xlane.f32.xlu0 %v120
    %v122 = vpop.xlane.xlu0 %121
    %vm123 = vcmask 123904
    %v124 = vsel %vm123, %v116, 0.0
    %125 = vadd.xlane.f32.xlu0 %v124
    %v126 = vpop.xlane.xlu0 %125
    %v127 = vrcp.pop 16.0
    %v128 = vmul.f32 %v122, %v127
    %v129 = vmul.f32 %v126, %v127
    %v130 = vsub.f32 %v115, %v128
    %v131 = vsub.f32 %v116, %v129
    %v132 = vmul.f32 %v130, %v130
    %v133 = vmul.f32 %v131, %v131
    %v134 = vsel %vm119, %v132, 0.0
    %135 = vadd.xlane.f32.xlu0 %v134
    %v136 = vpop.xlane.xlu0 %135
    %v137 = vsel %vm123, %v133, 0.0
    %138 = vadd.xlane.f32.xlu0 %v137
    %v139 = vpop.xlane.xlu0 %138
    %v140 = vmul.f32 %v136, %v127
    %v141 = vmul.f32 %v139, %v127
    %v142 = vadd.f32 %v140, 1e-05
    %v143 = vadd.f32 %v141, 1e-05
    %v144 = vrsqrt.pop %v142
    %v145 = vrsqrt.pop %v143
    %v146 = vmul.f32 %v130, %v144
    %v147 = vmul.f32 %v131, %v145
    %v149 = vlaneseq
    %v150 = vshrl.u32 %v149, 7
    %v151 = vsub.s32 0, %v150
    %v152 = vrot.slane %v117, %v151
    %v154 = vmul.f32 %v146, %v152
    %v155 = vmul.f32 %v147, %v152
    %v157 = vlaneseq
    %v158 = vshrl.u32 %v157, 7
    %v159 = vsub.s32 0, %v158
    %v160 = vrot.slane %v118, %v159
    %v162 = vadd.f32 %v154, %v160
    %v163 = vadd.f32 %v155, %v160
    %v164 = vpack.c.bf16 %v163, %v162
    %v165 = vld [vmem:[#allocation8] sm:$0xf]
    %v166 = vld [vmem:[#allocation8 + $0x4] sm:$0xf]
    %v167 = vld [vmem:[#allocation10] sm:$0x1]
    %v169 = vlaneseq
    %v170 = vshrl.u32 %v169, 7
    %v171 = vsub.s32 0, %v170
    %v172 = vrot.slane %v167, %v171
    %v176 = vunpack.c.l.b16 %v165
    %v177 = vunpack.c.l.b16 %v166
    %v178 = vpack.c.b16 %v177, %v176
    %v181 = vsel %vm119, %v164, 0
    %183 = vmatprep.subr.bf16.mxu0 0
    %184 = vmatpush1.bf16.msra.mxu0 %v178
    %185 = vmatprep.subr.bf16.mxu0 0
    %186 = vmatpush1.bf16.msra.mxu0 0
    %187 = vmatprep.subr.bf16.mxu0 0
    %188 = vmatpush1.bf16.msra.mxu0 0
    %189 = vmatprep.subr.bf16.mxu0 0
    %190 = vmatpush1.bf16.msra.mxu0 0
    %191 = vmatprep.subr.bf16.mxu0 0
    %192 = vmatpush1.bf16.msra.mxu0 0
    %193 = vmatprep.subr.bf16.mxu0 0
    %194 = vmatpush1.bf16.msra.mxu0 0
    %195 = vmatprep.subr.bf16.mxu0 0
    %196 = vmatpush1.bf16.msra.mxu0 0
    %197 = vmatprep.subr.bf16.mxu0 0
    %198 = vmatpush1.bf16.msra.mxu0 0
    %199 = vmatprep.subr.bf16.mxu0 0
    %200 = vmatpush1.bf16.msra.mxu0 0
    %201 = vmatprep.subr.bf16.mxu0 0
    %202 = vmatpush1.bf16.msra.mxu0 0
    %203 = vmatprep.subr.bf16.mxu0 0
    %204 = vmatpush1.bf16.msra.mxu0 0
    %205 = vmatprep.subr.bf16.mxu0 0
    %206 = vmatpush1.bf16.msra.mxu0 0
    %207 = vmatprep.subr.bf16.mxu0 0
    %208 = vmatpush1.bf16.msra.mxu0 0
    %209 = vmatprep.subr.bf16.mxu0 0
    %210 = vmatpush1.bf16.msra.mxu0 0
    %211 = vmatprep.subr.bf16.mxu0 0
    %212 = vmatpush1.bf16.msra.mxu0 0
    %213 = vmatprep.subr.bf16.mxu0 0
    %214 = vmatpush1.bf16.msra.mxu0 0
    %215 = vmatprep.mubr.bf16.mxu0 0
    %216 = vmatmul.mubr.bf16.gmra.mrb[0].mxu0 %v181
    %v217 = vpop.f32.mrb[0].mxu0
    %v218 = vadd.f32 %v172, %v217
    %v219 = vpop.f32.mrb[0].mxu0
    %v220 = vpop.f32.mrb[0].mxu0
    %v221 = vadd.f32 %v172, %v220
    %v222 = vpop.f32.mrb[0].mxu0
    %223 = vdwg.mxu0
    %v224 = vmul.f32 %v218, 0.5
    %v225 = vmul.f32 %v221, 0.5
    %v226 = vmul.f32 %v218, 0.70710677
    %v227 = vmul.f32 %v221, 0.70710677
    %vm228 = vcmp.ge.f32.partialorder %v226, 0.0
    %vm229 = vcmp.ge.f32.partialorder %v227, 0.0
    %v230 = vsel %vm228, 1.0, -1.0
    %v231 = vsel %vm229, 1.0, -1.0
    %v232 = vand.u32 2147483647, %v226
    %v233 = vand.u32 2147483647, %v227
    %v234 = vmul.f32 %v232, 0.3275911
    %v235 = vmul.f32 %v233, 0.3275911
    %v236 = vadd.f32 %v234, 1.0
    %v237 = vadd.f32 %v235, 1.0
    %v238 = vrcp.pop %v236
    %v239 = vmul.f32 1.0, %v238
    %v240 = vrcp.pop %v237
    %v241 = vmul.f32 1.0, %v240
    %v242 = vmul.f32 %v239, 1.0614054
    %v243 = vmul.f32 %v241, 1.0614054
    %v244 = vadd.f32 %v242, -1.4531521
    %v245 = vadd.f32 %v243, -1.4531521
    %v246 = vmul.f32 %v244, %v239
    %v247 = vmul.f32 %v245, %v241
    %v248 = vadd.f32 %v246, 1.4214138
    %v249 = vadd.f32 %v247, 1.4214138
    %v250 = vmul.f32 %v248, %v239
    %v251 = vmul.f32 %v249, %v241
    %v252 = vadd.f32 %v250, -0.28449672
    %v253 = vadd.f32 %v251, -0.28449672
    %v254 = vmul.f32 %v252, %v239
    %v255 = vmul.f32 %v253, %v241
    %v256 = vadd.f32 %v254, 0.2548296
    %v257 = vadd.f32 %v255, 0.2548296
    %v258 = vmul.f32 %v256, %v239
    %v259 = vmul.f32 %v257, %v241
    %v260 = vsub.f32 0.0, %v232
    %v261 = vsub.f32 0.0, %v233
    %v262 = vmul.f32 %v260, %v232
    %v263 = vmul.f32 %v261, %v233
    %v264 = vmul.f32 %v262, 1.442695
    %v265 = vpow.pop %v264
    %v266 = vmul.f32 %v263, 1.442695
    %v267 = vpow.pop %v266
    %v268 = vmul.f32 %v258, %v265
    %v269 = vmul.f32 %v259, %v267
    %v270 = vsub.f32 1.0, %v268
    %v271 = vsub.f32 1.0, %v269
    %v272 = vmul.f32 %v230, %v270
    %v273 = vmul.f32 %v231, %v271
    %v274 = vadd.f32 %v272, 1.0
    %v275 = vadd.f32 %v273, 1.0
    %v276 = vmul.f32 %v224, %v274
    %v277 = vmul.f32 %v225, %v275
    %v278 = vpack.c.bf16 %v277, %v276
    %v279 = vld [vmem:[#allocation11] sm:$0xf]
    %v280 = vld [vmem:[#allocation11 + $0x4] sm:$0xf]
    %v281 = vld [vmem:[#allocation11 + $0x8] sm:$0xf]
    %v282 = vld [vmem:[#allocation11 + $0xc] sm:$0xf]
    %v283 = vld [vmem:[#allocation11 + $0x10] sm:$0xf]
    %v284 = vld [vmem:[#allocation11 + $0x14] sm:$0xf]
    %v285 = vld [vmem:[#allocation11 + $0x18] sm:$0xf]
    %v286 = vld [vmem:[#allocation11 + $0x1c] sm:$0xf]
    %v295 = vunpack.c.l.b16 %v279
    %v296 = vunpack.c.l.b16 %v280
    %v297 = vunpack.c.l.b16 %v281
    %v298 = vunpack.c.l.b16 %v282
    %v299 = vunpack.c.l.b16 %v283
    %v300 = vunpack.c.l.b16 %v284
    %v301 = vunpack.c.l.b16 %v285
    %v302 = vunpack.c.l.b16 %v286
    %v303 = vpack.c.b16 %v296, %v295
    %v304 = vpack.c.b16 %v298, %v297
    %v305 = vpack.c.b16 %v300, %v299
    %v306 = vpack.c.b16 %v302, %v301
    %vm311 = vcmask 523264
    %v313 = vsel %vm311, %v278, 0
    %315 = vmatprep.subr.bf16.mxu0 0
    %316 = vmatpush1.bf16.msra.mxu0 %v303
    %317 = vmatprep.subr.bf16.mxu0 0
    %318 = vmatpush1.bf16.msra.mxu0 %v304
    %319 = vmatprep.subr.bf16.mxu0 0
    %320 = vmatpush1.bf16.msra.mxu0 %v305
    %321 = vmatprep.subr.bf16.mxu0 0
    %322 = vmatpush1.bf16.msra.mxu0 %v306
    %323 = vmatprep.subr.bf16.mxu0 0
    %324 = vmatpush1.bf16.msra.mxu0 0
    %325 = vmatprep.subr.bf16.mxu0 0
    %326 = vmatpush1.bf16.msra.mxu0 0
    %327 = vmatprep.subr.bf16.mxu0 0
    %328 = vmatpush1.bf16.msra.mxu0 0
    %329 = vmatprep.subr.bf16.mxu0 0
    %330 = vmatpush1.bf16.msra.mxu0 0
    %331 = vmatprep.subr.bf16.mxu0 0
    %332 = vmatpush1.bf16.msra.mxu0 0
    %333 = vmatprep.subr.bf16.mxu0 0
    %334 = vmatpush1.bf16.msra.mxu0 0
    %335 = vmatprep.subr.bf16.mxu0 0
    %336 = vmatpush1.bf16.msra.mxu0 0
    %337 = vmatprep.subr.bf16.mxu0 0
    %338 = vmatpush1.bf16.msra.mxu0 0
    %339 = vmatprep.subr.bf16.mxu0 0
    %340 = vmatpush1.bf16.msra.mxu0 0
    %341 = vmatprep.subr.bf16.mxu0 0
    %342 = vmatpush1.bf16.msra.mxu0 0
    %343 = vmatprep.subr.bf16.mxu0 0
    %344 = vmatpush1.bf16.msra.mxu0 0
    %345 = vmatprep.subr.bf16.mxu0 0
    %346 = vmatpush1.bf16.msra.mxu0 0
    %347 = vmatprep.mubr.bf16.mxu0 0
    %348 = vmatmul.mubr.bf16.gmra.mrb[0].mxu0 %v313
    %v349 = vpop.f32.mrb[0].mxu0
    %v350 = vadd.f32 0.0, %v349
    %v351 = vpop.f32.mrb[0].mxu0
    %v352 = vpop.f32.mrb[0].mxu0
    %v353 = vadd.f32 0.0, %v352
    %v354 = vpop.f32.mrb[0].mxu0
    %355 = vdwg.mxu0
    %v356 = vadd.f32 %v115, %v350
    %v357 = vadd.f32 %v116, %v353
    %v358 = vld [vmem:[#allocation13] sm:$0x1]
    %v360 = vlaneseq
    %v361 = vshrl.u32 %v360, 7
    %v362 = vsub.s32 0, %v361
    %v363 = vrot.slane %v358, %v362
    %v365 = vadd.f32 %v356, %v363
    %v366 = vadd.f32 %v357, %v363
    %367 = vst.msk [vmem:[#allocation14] sm:$0xff] %vm119, %v365
    %368 = vst.msk [vmem:[#allocation14 + $0x8] sm:$0x3] %vm123, %v366
    // Predicated region
    $region58: #{_lambda_.17} parent=1 // pred_check
      _
    $region59: #{_lambda_.17} parent=1 // pred_check_branch
      %370 = sbr.rel (0) target = $region61
    $region60: #{_lambda_.17} parent=1 // pred_region
      %s372 = ssub.s32 256, 256
      %373 = vsyncadd [#allocation4], %s372
      %s374 = sshll.u32 [#allocation14], 4
      %s375 = int_to_ptr.vmem [resolvable:$true] %s374
      %380 = dma.vmem_to_hbm [thread:$0]  %s375, 256, %s7, [#allocation4], 128, 128, 8
    $region61: #{_lambda_.17} parent=1 // pred_fallthru
      _
    // Predicated region
    $region62: #{_lambda_.17} parent=1 // pred_check
      _
    $region63: #{_lambda_.17} parent=1 // pred_check_branch
      %382 = sbr.rel (0) target = $region65
    $region64: #{_lambda_.17} parent=1 // pred_region
      %383 = dma.done [#allocation4], 256
    $region65: #{_lambda_.17} parent=1 // pred_fallthru
      _
    %384 = vsyncpa [#allocation3], 1
    %385 = vsyncpa [#allocation6], 1
    %386 = vsyncpa [#allocation9], 1
    %387 = vsyncpa [#allocation12], 1
    %388 = vsyncpa [#allocation4], 1

// kernel: _lambda_.23
$region0: #{_lambda_.23}
  #allocation0 [shape = 'u32[]', space=smem, size = 0x4, offset = 0x4, fixed_abs, tag = 'smem constant byte address 0x4 - core index']
  #allocation1 [shape = 'u32[144,128]{1,0:T(1,128)}', space=vmem, size = 0x12000, scoped, tag = 'internal scratch']
  %s0 = inlined_call_operand.vmem [shape: f32[2,16], index: 0, kind: input, shape index: {}]
  %s1 = inlined_call_operand.vmem [shape: f32[1,16], index: 1, kind: input, shape index: {}]
  %s2 = inlined_call_operand.vmem [shape: f32[1,16], index: 2, kind: input, shape index: {}]
  %s3 = inlined_call_operand.vmem [shape: bf16[16,32], index: 3, kind: input, shape index: {}]
  %s4 = inlined_call_operand.vmem [shape: f32[1,32], index: 4, kind: input, shape index: {}]
  %s5 = inlined_call_operand.vmem [shape: bf16[32,10], index: 5, kind: input, shape index: {}]
  %s6 = inlined_call_operand.vmem [shape: f32[1,10], index: 6, kind: input, shape index: {}]
  %s7 = inlined_call_operand.hbm [shape: f32[2,10], index: 7, kind: output, shape index: {}]
  %s8 = sld [smem:[#allocation0]]
  $region38: #{_lambda_.23} parent=0
    _
  %s10 = ssub.s32 1, %s8
  %s11 = scalar_select 0, %s10, %s8
  $region1: #{_lambda_.23} parent=0
    #allocation2 [shape = 'u8[1024]{0}', space=vmem, size = 0x400, scoped, tag = 'output window, operand 0, single buffered']
    #allocation3 [shape = 's32[1]{0}', space=sflag, size = 0x4, scoped, tag = 'scoped memory for _lambda_.23']
    %12 = vsyncpa [#allocation3], 0
    // Predicated region
    $region2: #{_lambda_.23} parent=1 // pred_check
      _
    $region3: #{_lambda_.23} parent=1 // pred_check_branch
      %14 = sbr.rel (0) target = $region5
    $region4: #{_lambda_.23} parent=1 // pred_region
      _
    $region5: #{_lambda_.23} parent=1 // pred_fallthru
      _
    // Predicated region
    $region6: #{_lambda_.23} parent=1 // pred_check
      _
    $region7: #{_lambda_.23} parent=1 // pred_check_branch
      %16 = sbr.rel (0) target = $region9
    $region8: #{_lambda_.23} parent=1 // pred_region
      _
    $region9: #{_lambda_.23} parent=1 // pred_fallthru
      _
    // Predicated region
    $region10: #{_lambda_.23} parent=1 // pred_check
      _
    $region11: #{_lambda_.23} parent=1 // pred_check_branch
      %18 = sbr.rel (0) target = $region13
    $region12: #{_lambda_.23} parent=1 // pred_region
      _
    $region13: #{_lambda_.23} parent=1 // pred_fallthru
      _
    // Predicated region
    $region14: #{_lambda_.23} parent=1 // pred_check
      _
    $region15: #{_lambda_.23} parent=1 // pred_check_branch
      %20 = sbr.rel (0) target = $region17
    $region16: #{_lambda_.23} parent=1 // pred_region
      _
    $region17: #{_lambda_.23} parent=1 // pred_fallthru
      _
    // Predicated region
    $region18: #{_lambda_.23} parent=1 // pred_check
      _
    $region19: #{_lambda_.23} parent=1 // pred_check_branch
      %22 = sbr.rel (0) target = $region21
    $region20: #{_lambda_.23} parent=1 // pred_region
      _
    $region21: #{_lambda_.23} parent=1 // pred_fallthru
      _
    // Predicated region
    $region22: #{_lambda_.23} parent=1 // pred_check
      _
    $region23: #{_lambda_.23} parent=1 // pred_check_branch
      %24 = sbr.rel (0) target = $region25
    $region24: #{_lambda_.23} parent=1 // pred_region
      _
    $region25: #{_lambda_.23} parent=1 // pred_fallthru
      _
    // Predicated region
    $region26: #{_lambda_.23} parent=1 // pred_check
      _
    $region27: #{_lambda_.23} parent=1 // pred_check_branch
      %26 = sbr.rel (0) target = $region29
    $region28: #{_lambda_.23} parent=1 // pred_region
      _
    $region29: #{_lambda_.23} parent=1 // pred_fallthru
      _
    %v28 = vld [vmem:[%s0] sm:$0x3]
    %v29 = vld [vmem:[%s1] sm:$0x1]
    %v30 = vld [vmem:[%s2] sm:$0x1]
    %vm31 = vcmask 123904
    %v32 = vsel %vm31, %v28, 0.0
    %33 = vadd.xlane.f32.xlu0 %v32
    %v34 = vpop.xlane.xlu0 %33
    %v35 = vrcp.pop 16.0
    %v36 = vmul.f32 %v34, %v35
    %v37 = vsub.f32 %v28, %v36
    %v38 = vmul.f32 %v37, %v37
    %v39 = vsel %vm31, %v38, 0.0
    %40 = vadd.xlane.f32.xlu0 %v39
    %v41 = vpop.xlane.xlu0 %40
    %v42 = vmul.f32 %v41, %v35
    %v43 = vadd.f32 %v42, 1e-05
    %v44 = vrsqrt.pop %v43
    %v45 = vmul.f32 %v37, %v44
    %v47 = vlaneseq
    %v48 = vshrl.u32 %v47, 7
    %v49 = vsub.s32 0, %v48
    %v50 = vrot.slane %v29, %v49
    %v52 = vmul.f32 %v45, %v50
    %v54 = vlaneseq
    %v55 = vshrl.u32 %v54, 7
    %v56 = vsub.s32 0, %v55
    %v57 = vrot.slane %v30, %v56
    %v59 = vadd.f32 %v52, %v57
    %v60 = vpack.c.bf16 %v59, %v59
    %v61 = vld [vmem:[%s3] sm:$0xf]
    %v62 = vld [vmem:[%s3 + $0x4] sm:$0xf]
    %v63 = vld [vmem:[%s4] sm:$0x1]
    %v65 = vlaneseq
    %v66 = vshrl.u32 %v65, 7
    %v67 = vsub.s32 0, %v66
    %v68 = vrot.slane %v63, %v67
    %v72 = vunpack.c.l.b16 %v61
    %v73 = vunpack.c.l.b16 %v62
    %v74 = vpack.c.b16 %v73, %v72
    %vm76 = vcmask 130048
    %v78 = vsel %vm76, %v60, 0
    %80 = vmatprep.subr.bf16.mxu0 0
    %81 = vmatpush1.bf16.msra.mxu0 %v74
    %82 = vmatprep.subr.bf16.mxu0 0
    %83 = vmatpush1.bf16.msra.mxu0 0
    %84 = vmatprep.subr.bf16.mxu0 0
    %85 = vmatpush1.bf16.msra.mxu0 0
    %86 = vmatprep.subr.bf16.mxu0 0
    %87 = vmatpush1.bf16.msra.mxu0 0
    %88 = vmatprep.subr.bf16.mxu0 0
    %89 = vmatpush1.bf16.msra.mxu0 0
    %90 = vmatprep.subr.bf16.mxu0 0
    %91 = vmatpush1.bf16.msra.mxu0 0
    %92 = vmatprep.subr.bf16.mxu0 0
    %93 = vmatpush1.bf16.msra.mxu0 0
    %94 = vmatprep.subr.bf16.mxu0 0
    %95 = vmatpush1.bf16.msra.mxu0 0
    %96 = vmatprep.subr.bf16.mxu0 0
    %97 = vmatpush1.bf16.msra.mxu0 0
    %98 = vmatprep.subr.bf16.mxu0 0
    %99 = vmatpush1.bf16.msra.mxu0 0
    %100 = vmatprep.subr.bf16.mxu0 0
    %101 = vmatpush1.bf16.msra.mxu0 0
    %102 = vmatprep.subr.bf16.mxu0 0
    %103 = vmatpush1.bf16.msra.mxu0 0
    %104 = vmatprep.subr.bf16.mxu0 0
    %105 = vmatpush1.bf16.msra.mxu0 0
    %106 = vmatprep.subr.bf16.mxu0 0
    %107 = vmatpush1.bf16.msra.mxu0 0
    %108 = vmatprep.subr.bf16.mxu0 0
    %109 = vmatpush1.bf16.msra.mxu0 0
    %110 = vmatprep.subr.bf16.mxu0 0
    %111 = vmatpush1.bf16.msra.mxu0 0
    %112 = vmatprep.mubr.bf16.mxu0 0
    %113 = vmatmul.mubr.bf16.gmra.mrb[0].mxu0 %v78
    %v114 = vpop.f32.mrb[0].mxu0
    %v115 = vadd.f32 %v68, %v114
    %v116 = vpop.f32.mrb[0].mxu0
    %v117 = vpop.f32.mrb[0].mxu0
    %v118 = vpop.f32.mrb[0].mxu0
    %119 = vdwg.mxu0
    %v120 = vpack.c.bf16 %v115, %v115
    %v121 = vld [vmem:[%s5] sm:$0xf]
    %v122 = vld [vmem:[%s5 + $0x4] sm:$0xf]
    %v123 = vld [vmem:[%s5 + $0x8] sm:$0xf]
    %v124 = vld [vmem:[%s5 + $0xc] sm:$0xf]
    %v125 = vld [vmem:[%s6] sm:$0x1]
    %v127 = vlaneseq
    %v128 = vshrl.u32 %v127, 7
    %v129 = vsub.s32 0, %v128
    %v130 = vrot.slane %v125, %v129
    %v136 = vunpack.c.l.b16 %v121
    %v137 = vunpack.c.l.b16 %v122
    %v138 = vunpack.c.l.b16 %v123
    %v139 = vunpack.c.l.b16 %v124
    %v140 = vpack.c.b16 %v137, %v136
    %v141 = vpack.c.b16 %v139, %v138
    %vm144 = vcmask 261120
    %v146 = vsel %vm144, %v120, 0
    %148 = vmatprep.subr.bf16.mxu0 0
    %149 = vmatpush1.bf16.msra.mxu0 %v140
    %150 = vmatprep.subr.bf16.mxu0 0
    %151 = vmatpush1.bf16.msra.mxu0 %v141
    %152 = vmatprep.subr.bf16.mxu0 0
    %153 = vmatpush1.bf16.msra.mxu0 0
    %154 = vmatprep.subr.bf16.mxu0 0
    %155 = vmatpush1.bf16.msra.mxu0 0
    %156 = vmatprep.subr.bf16.mxu0 0
    %157 = vmatpush1.bf16.msra.mxu0 0
    %158 = vmatprep.subr.bf16.mxu0 0
    %159 = vmatpush1.bf16.msra.mxu0 0
    %160 = vmatprep.subr.bf16.mxu0 0
    %161 = vmatpush1.bf16.msra.mxu0 0
    %162 = vmatprep.subr.bf16.mxu0 0
    %163 = vmatpush1.bf16.msra.mxu0 0
    %164 = vmatprep.subr.bf16.mxu0 0
    %165 = vmatpush1.bf16.msra.mxu0 0
    %166 = vmatprep.subr.bf16.mxu0 0
    %167 = vmatpush1.bf16.msra.mxu0 0
    %168 = vmatprep.subr.bf16.mxu0 0
    %169 = vmatpush1.bf16.msra.mxu0 0
    %170 = vmatprep.subr.bf16.mxu0 0
    %171 = vmatpush1.bf16.msra.mxu0 0
    %172 = vmatprep.subr.bf16.mxu0 0
    %173 = vmatpush1.bf16.msra.mxu0 0
    %174 = vmatprep.subr.bf16.mxu0 0
    %175 = vmatpush1.bf16.msra.mxu0 0
    %176 = vmatprep.subr.bf16.mxu0 0
    %177 = vmatpush1.bf16.msra.mxu0 0
    %178 = vmatprep.subr.bf16.mxu0 0
    %179 = vmatpush1.bf16.msra.mxu0 0
    %180 = vmatprep.mubr.bf16.mxu0 0
    %181 = vmatmul.mubr.bf16.gmra.mrb[0].mxu0 %v146
    %v182 = vpop.f32.mrb[0].mxu0
    %v183 = vadd.f32 %v130, %v182
    %v184 = vpop.f32.mrb[0].mxu0
    %v185 = vpop.f32.mrb[0].mxu0
    %v186 = vpop.f32.mrb[0].mxu0
    %187 = vdwg.mxu0
    %v188 = vmul.f32 %v183, 0.5
    %v189 = vmul.f32 %v183, 0.70710677
    %vm190 = vcmp.ge.f32.partialorder %v189, 0.0
    %v191 = vsel %vm190, 1.0, -1.0
    %v192 = vand.u32 2147483647, %v189
    %v193 = vmul.f32 %v192, 0.3275911
    %v194 = vadd.f32 %v193, 1.0
    %v195 = vrcp.pop %v194
    %v196 = vmul.f32 1.0, %v195
    %v197 = vmul.f32 %v196, 1.0614054
    %v198 = vadd.f32 %v197, -1.4531521
    %v199 = vmul.f32 %v198, %v196
    %v200 = vadd.f32 %v199, 1.4214138
    %v201 = vmul.f32 %v200, %v196
    %v202 = vadd.f32 %v201, -0.28449672
    %v203 = vmul.f32 %v202, %v196
    %v204 = vadd.f32 %v203, 0.2548296
    %v205 = vmul.f32 %v204, %v196
    %v206 = vsub.f32 0.0, %v192
    %v207 = vmul.f32 %v206, %v192
    %v208 = vmul.f32 %v207, 1.442695
    %v209 = vpow.pop %v208
    %v210 = vmul.f32 %v205, %v209
    %v211 = vsub.f32 1.0, %v210
    %v212 = vmul.f32 %v191, %v211
    %v213 = vadd.f32 %v212, 1.0
    %v214 = vmul.f32 %v188, %v213
    %vm215 = vcmask 74752
    %216 = vst.msk [vmem:[#allocation2] sm:$0x3] %vm215, %v214
    // Predicated region
    $region30: #{_lambda_.23} parent=1 // pred_check
      _
    $region31: #{_lambda_.23} parent=1 // pred_check_branch
      %218 = sbr.rel (0) target = $region33
    $region32: #{_lambda_.23} parent=1 // pred_region
      %s220 = ssub.s32 32, 32
      %221 = vsyncadd [#allocation3], %s220
      %s223 = sshll.u32 [#allocation2], 4
      %s224 = int_to_ptr.vmem [resolvable:$true] %s223
      %226 = dma.vmem_to_hbm [thread:$0]  %s224, 32, %s7, [#allocation3]
    $region33: #{_lambda_.23} parent=1 // pred_fallthru
      _
    // Predicated region
    $region34: #{_lambda_.23} parent=1 // pred_check
      _
    $region35: #{_lambda_.23} parent=1 // pred_check_branch
      %228 = sbr.rel (0) target = $region37
    $region36: #{_lambda_.23} parent=1 // pred_region
      %229 = dma.done [#allocation3], 32
    $region37: #{_lambda_.23} parent=1 // pred_fallthru
      _
    %230 = vsyncpa [#allocation3], 1

</llo_original>
